<compile_context>
chip_gen: v6e
topology: v6e:2x2x1
jax: 0.10.0
libtpu: 0.0.40
codegen_flags: <defaults>
</compile_context>

<pallas_src>
import math

import jax
import jax.numpy as jnp
import numpy as np
from jax import lax
from jax.experimental import pallas as pl
from jax.experimental.pallas import tpu as pltpu

D_MODEL = 32
N_HEADS = 4
HEAD_DIM = D_MODEL // N_HEADS
FFN_DIM = 64
LN_EPS = 1e-5
NEG_INF = -1e9

E = D_MODEL
F = FFN_DIM
LANES = 128

# ---------------------------------------------------------------------------
# weight-slab row layout (matrices stored as (in_dim, out_dim), padded to 128 lanes)
# ---------------------------------------------------------------------------
R_SELF_QKV = 0            # (E, 3E)  q-part pre-scaled
R_SELF_O = R_SELF_QKV + E  # (E, E)
R_A2_Q = R_SELF_O + E      # (E, E)   pre-scaled
R_A2_KV = R_A2_Q + E       # (E, 2E)
R_A2_O = R_A2_KV + E       # (E, E)
R_A3_Q = R_A2_O + E
R_A3_KV = R_A3_Q + E
R_A3_O = R_A3_KV + E
R_FC1 = R_A3_O + E         # (E, F)
R_FC2 = R_FC1 + E          # (F, E)
R_VECS = R_FC2 + F         # vector section: one row per bias / LN param
(V_SELF_QKV_B, V_SELF_O_B,
 V_A2_Q_B, V_A2_KV_B, V_A2_O_B,
 V_A3_Q_B, V_A3_KV_B, V_A3_O_B,
 V_FC1_B, V_FC2_B,
 V_SA_LN_G, V_SA_LN_B,
 V_CA_LN_G, V_CA_LN_B,
 V_FI_LN_G, V_FI_LN_B) = range(R_VECS, R_VECS + 16)
R_TOTAL = -(-(R_VECS + 16) // 8) * 8   # 368, multiple of 8


def _gelu(x):
    # exact (erf-based) gelu == torch.nn.functional.gelu == ACT2FN["gelu"]
    return 0.5 * x * (1.0 + lax.erf(x * (1.0 / math.sqrt(2.0))))


# ---------------------------------------------------------------------------
# fused decoder-layer kernel (single invocation; batch folded into sublanes)
# ---------------------------------------------------------------------------
def _decoder_layer_kernel(x_ref, smask_ref, enc2_ref, m2_ref, enc3_ref, m3_ref, w_ref, out_ref):
    f32 = jnp.float32

    def mat(row, rows, cols):            # lazy static slice of the weight slab
        return w_ref[row:row + rows, 0:cols]

    def vec(row, cols):                  # (1, cols) bias / LN row
        return w_ref[row:row + 1, 0:cols]

    def layer_norm(z, g_row):
        mean = jnp.mean(z, axis=-1, keepdims=True)
        var = jnp.mean((z - mean) ** 2, axis=-1, keepdims=True)
        return (z - mean) * lax.rsqrt(var + LN_EPS) * vec(g_row, E) + vec(g_row + 1, E)

    def attend(q, k, v, mask, r_o, b_o):
        # q: (N, E), k/v: (M, E), mask: (N, M) additive (block-diagonal across batches).
        ctx = []
        for h in range(N_HEADS):         # per-head score / prob@V; projections already fused
            lo, hi = h * HEAD_DIM, (h + 1) * HEAD_DIM
            s = lax.dot_general(q[:, lo:hi], k[:, lo:hi],
                                (((1,), (1,)), ((), ())),
                                preferred_element_type=f32) + mask
            s = s - jnp.max(s, axis=-1, keepdims=True)
            p = jnp.exp(s)
            p = p / jnp.sum(p, axis=-1, keepdims=True)
            ctx.append(jnp.dot(p, v[:, lo:hi], preferred_element_type=f32))
        ctx = jnp.concatenate(ctx, axis=-1)                     # (N, E), head-major columns
        return jnp.dot(ctx, mat(r_o, E, E), preferred_element_type=f32) + vec(b_o, E)

    def cross_attn(hq, enc, mask, r_q, b_q, r_kv, b_kv, r_o, b_o):
        q = jnp.dot(hq, mat(r_q, E, E), preferred_element_type=f32) + vec(b_q, E)
        kv = jnp.dot(enc, mat(r_kv, E, 2 * E), preferred_element_type=f32) + vec(b_kv, 2 * E)
        return attend(q, kv[:, :E], kv[:, E:], mask, r_o, b_o)

    x = x_ref[...]                                              # (B*T, E)

    # --- self-attention (fused QKV projection) + residual + LayerNorm ---
    qkv = (jnp.dot(x, mat(R_SELF_QKV, E, 3 * E), preferred_element_type=f32)
           + vec(V_SELF_QKV_B, 3 * E))
    sa = attend(qkv[:, :E], qkv[:, E:2 * E], qkv[:, 2 * E:], smask_ref[...],
                R_SELF_O, V_SELF_O_B)
    hs = layer_norm(x + sa, V_SA_LN_G)

    # --- multi-source cross-attention block ---
    # hidden_states1 = residual + dropout(hidden_states) = 2*hs (attn1 output discarded, ref bug)
    # combined = LayerNorm(hs1 + hs2 + hs3) = LN(4*hs + a2 + a3)
    a2 = cross_attn(hs, enc2_ref[...], m2_ref[...],
                    R_A2_Q, V_A2_Q_B, R_A2_KV, V_A2_KV_B, R_A2_O, V_A2_O_B)
    a3 = cross_attn(hs, enc3_ref[...], m3_ref[...],
                    R_A3_Q, V_A3_Q_B, R_A3_KV, V_A3_KV_B, R_A3_O, V_A3_O_B)
    hs = layer_norm(4.0 * hs + a2 + a3, V_CA_LN_G)

    # --- feed-forward + residual + LayerNorm ---
    h1 = _gelu(jnp.dot(hs, mat(R_FC1, E, F), preferred_element_type=f32) + vec(V_FC1_B, F))
    y = jnp.dot(h1, mat(R_FC2, F, E), preferred_element_type=f32) + vec(V_FC2_B, E)
    out_ref[...] = layer_norm(hs + y, V_FI_LN_G)


# ---------------------------------------------------------------------------
# host-side helpers: weight slab packing + block-diagonal mask construction
# ---------------------------------------------------------------------------
def _pack_weights(params):
    """torch nn.Linear layout (out,in)/(out,) -> one lane-dense (R_TOTAL, 128) f32 slab."""
    scale = HEAD_DIM ** -0.5
    slab = jnp.zeros((R_TOTAL, LANES), jnp.float32)

    def put(s, row, arr):
        arr = jnp.asarray(arr, jnp.float32)
        if arr.ndim == 1:
            return s.at[row, :arr.shape[0]].set(arr)
        return s.at[row:row + arr.shape[0], :arr.shape[1]].set(arr)

    qw, qb, kw, kb, vw, vb, ow, ob = params["self_attn"]
    slab = put(slab, R_SELF_QKV, jnp.concatenate([qw.T * scale, kw.T, vw.T], axis=1))
    slab = put(slab, V_SELF_QKV_B, jnp.concatenate([qb * scale, kb, vb]))
    slab = put(slab, R_SELF_O, ow.T)
    slab = put(slab, V_SELF_O_B, ob)

    for p, rq, bq, rkv, bkv, ro, bo in (
        (params["enc_attn2"], R_A2_Q, V_A2_Q_B, R_A2_KV, V_A2_KV_B, R_A2_O, V_A2_O_B),
        (params["enc_attn3"], R_A3_Q, V_A3_Q_B, R_A3_KV, V_A3_KV_B, R_A3_O, V_A3_O_B),
    ):
        qw, qb, kw, kb, vw, vb, ow, ob = p
        slab = put(slab, rq, qw.T * scale)
        slab = put(slab, bq, qb * scale)
        slab = put(slab, rkv, jnp.concatenate([kw.T, vw.T], axis=1))
        slab = put(slab, bkv, jnp.concatenate([kb, vb]))
        slab = put(slab, ro, ow.T)
        slab = put(slab, bo, ob)

    w1, b1, w2, b2 = params["ffn"]
    slab = put(slab, R_FC1, w1.T)
    slab = put(slab, V_FC1_B, b1)
    slab = put(slab, R_FC2, w2.T)
    slab = put(slab, V_FC2_B, b2)

    for row, (g, b) in ((V_SA_LN_G, params["self_attn_ln"]),
                        (V_CA_LN_G, params["enc_attn_ln"]),
                        (V_FI_LN_G, params["final_ln"])):
        slab = put(slab, row, g)
        slab = put(slab, row + 1, b)
    return slab


def _block_diag_mask(mask, tgt, src):
    """(B,1,tgt,src) additive mask -> (B*tgt, B*src) block-diagonal additive mask."""
    B = mask.shape[0]
    m = mask[:, 0].astype(jnp.float32)                  # (B, tgt, src)
    row_b = jnp.repeat(jnp.arange(B), tgt)              # (B*tgt,)
    col_b = jnp.repeat(jnp.arange(B), src)              # (B*src,)
    row_i = jnp.tile(jnp.arange(tgt), B)
    col_j = jnp.tile(jnp.arange(src), B)
    vals = m[row_b[:, None], row_i[:, None], col_j[None, :]]   # (B*tgt, B*src)
    return jnp.where(row_b[:, None] == col_b[None, :], vals, NEG_INF)


# ---------------------------------------------------------------------------
# pallas_call wrapper
# ---------------------------------------------------------------------------
@jax.jit
def bart_decoder_layer(hidden_states, attention_mask,
                       encoder_hidden_states1, encoder_hidden_states2, encoder_hidden_states3,
                       encoder_attention_mask, encoder_attention_mask2, encoder_attention_mask3,
                       params):
    B, T, E_ = hidden_states.shape
    S = encoder_hidden_states2.shape[1]
    # encoder source #1's attention output is computed-but-discarded by the reference forward.
    del encoder_hidden_states1, encoder_attention_mask

    x = hidden_states.reshape(B * T, E_)
    e2 = encoder_hidden_states2.reshape(B * S, E_)
    e3 = encoder_hidden_states3.reshape(B * S, E_)
    smask = _block_diag_mask(attention_mask, T, T)
    cm2 = _block_diag_mask(encoder_attention_mask2, T, S)
    cm3 = _block_diag_mask(encoder_attention_mask3, T, S)
    slab = _pack_weights(params)

    def full(shape):
        nd = len(shape)
        return pl.BlockSpec(shape, lambda i, _nd=nd: (0,) * _nd)

    out = pl.pallas_call(
        _decoder_layer_kernel,
        out_shape=jax.ShapeDtypeStruct((B * T, E_), jnp.float32),
        grid=(1,),
        in_specs=[full((B * T, E_)),          # hidden states (batch folded into rows)
                  full((B * T, B * T)),       # block-diagonal self-attn mask
                  full((B * S, E_)),          # encoder source 2 (flattened)
                  full((B * T, B * S)),       # block-diagonal cross mask 2
                  full((B * S, E_)),          # encoder source 3
                  full((B * T, B * S)),       # block-diagonal cross mask 3
                  full((R_TOTAL, LANES))],    # packed weight slab (one DMA)
        out_specs=full((B * T, E_)),
        compiler_params=pltpu.CompilerParams(dimension_semantics=("arbitrary",)),
    )(x, smask, e2, cm2, e3, cm3, slab)
    return out.reshape(B, T, E_)


# ---------------------------------------------------------------------------
# pure-JAX reference (mirrors the PyTorch forward exactly, eval mode)
# ---------------------------------------------------------------------------
def _ref_attention(hs, kv, mask, p):
    qw, qb, kw, kb, vw, vb, ow, ob = p
    B, T, _ = hs.shape
    S = kv.shape[1]
    q = (hs @ qw.T + qb) * (HEAD_DIM ** -0.5)
    k = kv @ kw.T + kb
    v = kv @ vw.T + vb
    q = q.reshape(B, T, N_HEADS, HEAD_DIM).transpose(0, 2, 1, 3)
    k = k.reshape(B, S, N_HEADS, HEAD_DIM).transpose(0, 2, 1, 3)
    v = v.reshape(B, S, N_HEADS, HEAD_DIM).transpose(0, 2, 1, 3)
    s = jnp.einsum("bhtd,bhsd->bhts", q, k) + mask
    p_ = jax.nn.softmax(s, axis=-1)
    ctx = jnp.einsum("bhts,bhsd->bhtd", p_, v).transpose(0, 2, 1, 3).reshape(B, T, E)
    return ctx @ ow.T + ob


def _ref_ln(x, g, b):
    m = x.mean(-1, keepdims=True)
    v = ((x - m) ** 2).mean(-1, keepdims=True)
    return (x - m) / jnp.sqrt(v + LN_EPS) * g + b


def bart_decoder_layer_ref(hs, attn_mask, enc1, enc2, enc3, m1, m2, m3, params):
    residual = hs
    x = _ref_attention(hs, hs, attn_mask, params["self_attn"])
    hs = _ref_ln(residual + x, *params["self_attn_ln"])
    residual = hs
    hs1 = residual + hs  # reference bug: attn1 output overwritten by dropout(hidden_states)
    hs2 = residual + _ref_attention(hs, enc2, m2, params["enc_attn2"])
    hs3 = residual + _ref_attention(hs, enc3, m3, params["enc_attn3"])
    hs = _ref_ln(hs1 + hs2 + hs3, *params["enc_attn_ln"])
    residual = hs
    w1, b1, w2, b2 = params["ffn"]
    y = _gelu(hs @ w1.T + b1) @ w2.T + b2
    return _ref_ln(residual + y, *params["final_ln"])


# ---------------------------------------------------------------------------
# deterministic parameter init (shapes from BartDecoderLayer.__init__)
# ---------------------------------------------------------------------------
def init_params(key):
    def linear(k, out_dim, in_dim):
        k1, k2 = jax.random.split(k)
        w = jax.random.normal(k1, (out_dim, in_dim), jnp.float32) * 0.02
        b = jax.random.normal(k2, (out_dim,), jnp.float32) * 0.02
        return w, b

    def attn_params(k):
        ks = jax.random.split(k, 4)
        return (linear(ks[0], D_MODEL, D_MODEL) + linear(ks[1], D_MODEL, D_MODEL)
                + linear(ks[2], D_MODEL, D_MODEL) + linear(ks[3], D_MODEL, D_MODEL))

    def ln_params(k):
        k1, k2 = jax.random.split(k)
        return (1.0 + 0.1 * jax.random.normal(k1, (D_MODEL,), jnp.float32),
                0.1 * jax.random.normal(k2, (D_MODEL,), jnp.float32))

    keys = jax.random.split(key, 9)
    return {
        "self_attn": attn_params(keys[0]),
        "enc_attn1": attn_params(keys[1]),   # exists in __init__; output unused by forward
        "enc_attn2": attn_params(keys[2]),
        "enc_attn3": attn_params(keys[3]),
        "self_attn_ln": ln_params(keys[4]),
        "enc_attn_ln": ln_params(keys[5]),
        "final_ln": ln_params(keys[6]),
        "ffn": linear(keys[7], FFN_DIM, D_MODEL) + linear(keys[8], D_MODEL, FFN_DIM),
    }


if __name__ == "__main__":
    B, T, S = 2, 8, 16
    key = jax.random.PRNGKey(0)
    kx, k1, k2, k3, kp = jax.random.split(key, 5)
    hidden = jax.random.normal(kx, (B, T, D_MODEL), jnp.float32)
    enc1 = jax.random.normal(k1, (B, S, D_MODEL), jnp.float32)
    enc2 = jax.random.normal(k2, (B, S, D_MODEL), jnp.float32)
    enc3 = jax.random.normal(k3, (B, S, D_MODEL), jnp.float32)

    # causal additive mask for decoder self-attention, (B, 1, T, T)
    causal = jnp.where(jnp.arange(T)[:, None] >= jnp.arange(T)[None, :], 0.0, NEG_INF)
    attn_mask = jnp.broadcast_to(causal, (B, 1, T, T)).astype(jnp.float32)
    # cross-attention padding masks (B, 1, T, S): mask last 3 encoder positions of batch 1
    pad = jnp.zeros((B, 1, T, S), jnp.float32).at[1, :, :, S - 3:].set(NEG_INF)
    m1, m2, m3 = pad, pad, pad

    params = init_params(kp)

    out = bart_decoder_layer(hidden, attn_mask, enc1, enc2, enc3, m1, m2, m3, params)
    out = jax.block_until_ready(out)

    ref = bart_decoder_layer_ref(hidden, attn_mask, enc1, enc2, enc3, m1, m2, m3, params)
    assert out.shape == (B, T, D_MODEL)
    np.testing.assert_allclose(np.asarray(out), np.asarray(ref), atol=1e-3, rtol=1e-3)
    print("KERNEL_OK")
</pallas_src>

<mosaic_0001>
module attributes {stable_mosaic.version = 11 : i64} {
  func.func @_decoder_layer_kernel(%arg0: i32, %arg1: memref<16x32xf32, #tpu.memory_space<vmem>>, %arg2: memref<16x16xf32, #tpu.memory_space<vmem>>, %arg3: memref<32x32xf32, #tpu.memory_space<vmem>>, %arg4: memref<16x32xf32, #tpu.memory_space<vmem>>, %arg5: memref<32x32xf32, #tpu.memory_space<vmem>>, %arg6: memref<16x32xf32, #tpu.memory_space<vmem>>, %arg7: memref<368x128xf32, #tpu.memory_space<vmem>>, %arg8: memref<16x32xf32, #tpu.memory_space<vmem>>) attributes {dimension_semantics = [#tpu.dimension_semantics<arbitrary>], iteration_bounds = array<i64: 1>, scalar_prefetch = 0 : i64, scratch_operands = 0 : i64, tpu.core_type = #tpu.core_type<tc>, window_params = [{pipeline_mode = #tpu.pipeline_mode<synchronous>, transform_indices = @transform_0, window_bounds = array<i64: 16, 32>}, {pipeline_mode = #tpu.pipeline_mode<synchronous>, transform_indices = @transform_1, window_bounds = array<i64: 16, 16>}, {pipeline_mode = #tpu.pipeline_mode<synchronous>, transform_indices = @transform_2, window_bounds = array<i64: 32, 32>}, {pipeline_mode = #tpu.pipeline_mode<synchronous>, transform_indices = @transform_3, window_bounds = array<i64: 16, 32>}, {pipeline_mode = #tpu.pipeline_mode<synchronous>, transform_indices = @transform_4, window_bounds = array<i64: 32, 32>}, {pipeline_mode = #tpu.pipeline_mode<synchronous>, transform_indices = @transform_5, window_bounds = array<i64: 16, 32>}, {pipeline_mode = #tpu.pipeline_mode<synchronous>, transform_indices = @transform_6, window_bounds = array<i64: 368, 128>}, {pipeline_mode = #tpu.pipeline_mode<synchronous>, transform_indices = @transform_7, window_bounds = array<i64: 16, 32>}]} {
    %c0 = arith.constant 0 : index
    %c0_0 = arith.constant 0 : index
    %0 = vector.load %arg1[%c0, %c0_0] : memref<16x32xf32, #tpu.memory_space<vmem>>, vector<16x32xf32>
    %c0_1 = arith.constant 0 : index
    %c0_2 = arith.constant 0 : index
    %1 = vector.load %arg7[%c0_1, %c0_2] : memref<368x128xf32, #tpu.memory_space<vmem>>, vector<32x96xf32>
    %cst = arith.constant dense<0.000000e+00> : vector<16x96xf32>
    %2 = tpu.matmul %0, %1, %cst {dimension_numbers = #tpu.dot_dimension_numbers<[1], [0], [0], [1], [0, 0, 1, 1], [], []>} : vector<16x32xf32>, vector<32x96xf32>, vector<16x96xf32> -> vector<16x96xf32>
    %c352 = arith.constant 352 : index
    %c0_3 = arith.constant 0 : index
    %3 = vector.load %arg7[%c352, %c0_3] : memref<368x128xf32, #tpu.memory_space<vmem>>, vector<1x96xf32>
    %4 = vector.broadcast %3 : vector<1x96xf32> to vector<16x96xf32>
    %5 = arith.addf %2, %4 : vector<16x96xf32>
    %6 = vector.extract_strided_slice %5 {offsets = [0, 0], sizes = [16, 32], strides = [1, 1]} : vector<16x96xf32> to vector<16x32xf32>
    %7 = vector.extract_strided_slice %5 {offsets = [0, 32], sizes = [16, 32], strides = [1, 1]} : vector<16x96xf32> to vector<16x32xf32>
    %8 = vector.extract_strided_slice %5 {offsets = [0, 64], sizes = [16, 32], strides = [1, 1]} : vector<16x96xf32> to vector<16x32xf32>
    %c0_4 = arith.constant 0 : index
    %c0_5 = arith.constant 0 : index
    %9 = vector.load %arg2[%c0_4, %c0_5] : memref<16x16xf32, #tpu.memory_space<vmem>>, vector<16x16xf32>
    %10 = vector.extract_strided_slice %6 {offsets = [0, 0], sizes = [16, 8], strides = [1, 1]} : vector<16x32xf32> to vector<16x8xf32>
    %11 = vector.extract_strided_slice %7 {offsets = [0, 0], sizes = [16, 8], strides = [1, 1]} : vector<16x32xf32> to vector<16x8xf32>
    %cst_6 = arith.constant dense<0.000000e+00> : vector<16x16xf32>
    %12 = tpu.matmul %10, %11, %cst_6 {dimension_numbers = #tpu.dot_dimension_numbers<[1], [1], [0], [0], [0, 0, 1, 0], [], []>} : vector<16x8xf32>, vector<16x8xf32>, vector<16x16xf32> -> vector<16x16xf32>
    %13 = arith.addf %12, %9 : vector<16x16xf32>
    %cst_7 = arith.constant dense<0xFF800000> : vector<16xf32>
    %14 = vector.multi_reduction <maximumf>, %13, %cst_7 [1] : vector<16x16xf32> to vector<16xf32>
    %15 = vector.shape_cast %14 : vector<16xf32> to vector<16x1xf32>
    %16 = vector.broadcast %15 : vector<16x1xf32> to vector<16x16xf32>
    %17 = arith.subf %13, %16 : vector<16x16xf32>
    %18 = math.exp %17 : vector<16x16xf32>
    %cst_8 = arith.constant dense<0.000000e+00> : vector<16xf32>
    %19 = vector.multi_reduction <add>, %18, %cst_8 [1] : vector<16x16xf32> to vector<16xf32>
    %20 = vector.shape_cast %19 : vector<16xf32> to vector<16x1xf32>
    %21 = vector.broadcast %20 : vector<16x1xf32> to vector<16x16xf32>
    %22 = arith.divf %18, %21 : vector<16x16xf32>
    %23 = vector.extract_strided_slice %8 {offsets = [0, 0], sizes = [16, 8], strides = [1, 1]} : vector<16x32xf32> to vector<16x8xf32>
    %cst_9 = arith.constant dense<0.000000e+00> : vector<16x8xf32>
    %24 = tpu.matmul %22, %23, %cst_9 {dimension_numbers = #tpu.dot_dimension_numbers<[1], [0], [0], [1], [0, 0, 1, 1], [], []>} : vector<16x16xf32>, vector<16x8xf32>, vector<16x8xf32> -> vector<16x8xf32>
    %25 = vector.extract_strided_slice %6 {offsets = [0, 8], sizes = [16, 8], strides = [1, 1]} : vector<16x32xf32> to vector<16x8xf32>
    %26 = vector.extract_strided_slice %7 {offsets = [0, 8], sizes = [16, 8], strides = [1, 1]} : vector<16x32xf32> to vector<16x8xf32>
    %cst_10 = arith.constant dense<0.000000e+00> : vector<16x16xf32>
    %27 = tpu.matmul %25, %26, %cst_10 {dimension_numbers = #tpu.dot_dimension_numbers<[1], [1], [0], [0], [0, 0, 1, 0], [], []>} : vector<16x8xf32>, vector<16x8xf32>, vector<16x16xf32> -> vector<16x16xf32>
    %28 = arith.addf %27, %9 : vector<16x16xf32>
    %cst_11 = arith.constant dense<0xFF800000> : vector<16xf32>
    %29 = vector.multi_reduction <maximumf>, %28, %cst_11 [1] : vector<16x16xf32> to vector<16xf32>
    %30 = vector.shape_cast %29 : vector<16xf32> to vector<16x1xf32>
    %31 = vector.broadcast %30 : vector<16x1xf32> to vector<16x16xf32>
    %32 = arith.subf %28, %31 : vector<16x16xf32>
    %33 = math.exp %32 : vector<16x16xf32>
    %cst_12 = arith.constant dense<0.000000e+00> : vector<16xf32>
    %34 = vector.multi_reduction <add>, %33, %cst_12 [1] : vector<16x16xf32> to vector<16xf32>
    %35 = vector.shape_cast %34 : vector<16xf32> to vector<16x1xf32>
    %36 = vector.broadcast %35 : vector<16x1xf32> to vector<16x16xf32>
    %37 = arith.divf %33, %36 : vector<16x16xf32>
    %38 = vector.extract_strided_slice %8 {offsets = [0, 8], sizes = [16, 8], strides = [1, 1]} : vector<16x32xf32> to vector<16x8xf32>
    %cst_13 = arith.constant dense<0.000000e+00> : vector<16x8xf32>
    %39 = tpu.matmul %37, %38, %cst_13 {dimension_numbers = #tpu.dot_dimension_numbers<[1], [0], [0], [1], [0, 0, 1, 1], [], []>} : vector<16x16xf32>, vector<16x8xf32>, vector<16x8xf32> -> vector<16x8xf32>
    %40 = vector.extract_strided_slice %6 {offsets = [0, 16], sizes = [16, 8], strides = [1, 1]} : vector<16x32xf32> to vector<16x8xf32>
    %41 = vector.extract_strided_slice %7 {offsets = [0, 16], sizes = [16, 8], strides = [1, 1]} : vector<16x32xf32> to vector<16x8xf32>
    %cst_14 = arith.constant dense<0.000000e+00> : vector<16x16xf32>
    %42 = tpu.matmul %40, %41, %cst_14 {dimension_numbers = #tpu.dot_dimension_numbers<[1], [1], [0], [0], [0, 0, 1, 0], [], []>} : vector<16x8xf32>, vector<16x8xf32>, vector<16x16xf32> -> vector<16x16xf32>
    %43 = arith.addf %42, %9 : vector<16x16xf32>
    %cst_15 = arith.constant dense<0xFF800000> : vector<16xf32>
    %44 = vector.multi_reduction <maximumf>, %43, %cst_15 [1] : vector<16x16xf32> to vector<16xf32>
    %45 = vector.shape_cast %44 : vector<16xf32> to vector<16x1xf32>
    %46 = vector.broadcast %45 : vector<16x1xf32> to vector<16x16xf32>
    %47 = arith.subf %43, %46 : vector<16x16xf32>
    %48 = math.exp %47 : vector<16x16xf32>
    %cst_16 = arith.constant dense<0.000000e+00> : vector<16xf32>
    %49 = vector.multi_reduction <add>, %48, %cst_16 [1] : vector<16x16xf32> to vector<16xf32>
    %50 = vector.shape_cast %49 : vector<16xf32> to vector<16x1xf32>
    %51 = vector.broadcast %50 : vector<16x1xf32> to vector<16x16xf32>
    %52 = arith.divf %48, %51 : vector<16x16xf32>
    %53 = vector.extract_strided_slice %8 {offsets = [0, 16], sizes = [16, 8], strides = [1, 1]} : vector<16x32xf32> to vector<16x8xf32>
    %cst_17 = arith.constant dense<0.000000e+00> : vector<16x8xf32>
    %54 = tpu.matmul %52, %53, %cst_17 {dimension_numbers = #tpu.dot_dimension_numbers<[1], [0], [0], [1], [0, 0, 1, 1], [], []>} : vector<16x16xf32>, vector<16x8xf32>, vector<16x8xf32> -> vector<16x8xf32>
    %55 = vector.extract_strided_slice %6 {offsets = [0, 24], sizes = [16, 8], strides = [1, 1]} : vector<16x32xf32> to vector<16x8xf32>
    %56 = vector.extract_strided_slice %7 {offsets = [0, 24], sizes = [16, 8], strides = [1, 1]} : vector<16x32xf32> to vector<16x8xf32>
    %cst_18 = arith.constant dense<0.000000e+00> : vector<16x16xf32>
    %57 = tpu.matmul %55, %56, %cst_18 {dimension_numbers = #tpu.dot_dimension_numbers<[1], [1], [0], [0], [0, 0, 1, 0], [], []>} : vector<16x8xf32>, vector<16x8xf32>, vector<16x16xf32> -> vector<16x16xf32>
    %58 = arith.addf %57, %9 : vector<16x16xf32>
    %cst_19 = arith.constant dense<0xFF800000> : vector<16xf32>
    %59 = vector.multi_reduction <maximumf>, %58, %cst_19 [1] : vector<16x16xf32> to vector<16xf32>
    %60 = vector.shape_cast %59 : vector<16xf32> to vector<16x1xf32>
    %61 = vector.broadcast %60 : vector<16x1xf32> to vector<16x16xf32>
    %62 = arith.subf %58, %61 : vector<16x16xf32>
    %63 = math.exp %62 : vector<16x16xf32>
    %cst_20 = arith.constant dense<0.000000e+00> : vector<16xf32>
    %64 = vector.multi_reduction <add>, %63, %cst_20 [1] : vector<16x16xf32> to vector<16xf32>
    %65 = vector.shape_cast %64 : vector<16xf32> to vector<16x1xf32>
    %66 = vector.broadcast %65 : vector<16x1xf32> to vector<16x16xf32>
    %67 = arith.divf %63, %66 : vector<16x16xf32>
    %68 = vector.extract_strided_slice %8 {offsets = [0, 24], sizes = [16, 8], strides = [1, 1]} : vector<16x32xf32> to vector<16x8xf32>
    %cst_21 = arith.constant dense<0.000000e+00> : vector<16x8xf32>
    %69 = tpu.matmul %67, %68, %cst_21 {dimension_numbers = #tpu.dot_dimension_numbers<[1], [0], [0], [1], [0, 0, 1, 1], [], []>} : vector<16x16xf32>, vector<16x8xf32>, vector<16x8xf32> -> vector<16x8xf32>
    %70 = tpu.concatenate %24, %39, %54, %69 in 1 : vector<16x8xf32>, vector<16x8xf32>, vector<16x8xf32>, vector<16x8xf32> -> vector<16x32xf32>
    %c32 = arith.constant 32 : index
    %c0_22 = arith.constant 0 : index
    %71 = vector.load %arg7[%c32, %c0_22] : memref<368x128xf32, #tpu.memory_space<vmem>>, vector<32x32xf32>
    %cst_23 = arith.constant dense<0.000000e+00> : vector<16x32xf32>
    %72 = tpu.matmul %70, %71, %cst_23 {dimension_numbers = #tpu.dot_dimension_numbers<[1], [0], [0], [1], [0, 0, 1, 1], [], []>} : vector<16x32xf32>, vector<32x32xf32>, vector<16x32xf32> -> vector<16x32xf32>
    %c353 = arith.constant 353 : index
    %c0_24 = arith.constant 0 : index
    %73 = vector.load %arg7[%c353, %c0_24] : memref<368x128xf32, #tpu.memory_space<vmem>>, vector<1x32xf32>
    %74 = vector.broadcast %73 : vector<1x32xf32> to vector<16x32xf32>
    %75 = arith.addf %72, %74 : vector<16x32xf32>
    %76 = arith.addf %0, %75 : vector<16x32xf32>
    %cst_25 = arith.constant dense<0.000000e+00> : vector<16xf32>
    %77 = vector.multi_reduction <add>, %76, %cst_25 [1] : vector<16x32xf32> to vector<16xf32>
    %78 = vector.shape_cast %77 : vector<16xf32> to vector<16x1xf32>
    %cst_26 = arith.constant 3.200000e+01 : f32
    %79 = vector.broadcast %cst_26 : f32 to vector<16x1xf32>
    %80 = arith.divf %78, %79 : vector<16x1xf32>
    %81 = vector.broadcast %80 : vector<16x1xf32> to vector<16x32xf32>
    %82 = arith.subf %76, %81 : vector<16x32xf32>
    %83 = arith.mulf %82, %82 : vector<16x32xf32>
    %cst_27 = arith.constant dense<0.000000e+00> : vector<16xf32>
    %84 = vector.multi_reduction <add>, %83, %cst_27 [1] : vector<16x32xf32> to vector<16xf32>
    %85 = vector.shape_cast %84 : vector<16xf32> to vector<16x1xf32>
    %cst_28 = arith.constant 3.200000e+01 : f32
    %86 = vector.broadcast %cst_28 : f32 to vector<16x1xf32>
    %87 = arith.divf %85, %86 : vector<16x1xf32>
    %88 = vector.broadcast %80 : vector<16x1xf32> to vector<16x32xf32>
    %89 = arith.subf %76, %88 : vector<16x32xf32>
    %cst_29 = arith.constant 9.99999974E-6 : f32
    %90 = vector.broadcast %cst_29 : f32 to vector<16x1xf32>
    %91 = arith.addf %87, %90 : vector<16x1xf32>
    %92 = math.rsqrt %91 : vector<16x1xf32>
    %93 = vector.broadcast %92 : vector<16x1xf32> to vector<16x32xf32>
    %94 = arith.mulf %89, %93 : vector<16x32xf32>
    %c362 = arith.constant 362 : index
    %c0_30 = arith.constant 0 : index
    %95 = vector.load %arg7[%c362, %c0_30] : memref<368x128xf32, #tpu.memory_space<vmem>>, vector<1x32xf32>
    %96 = vector.broadcast %95 : vector<1x32xf32> to vector<16x32xf32>
    %97 = arith.mulf %94, %96 : vector<16x32xf32>
    %c363 = arith.constant 363 : index
    %c0_31 = arith.constant 0 : index
    %98 = vector.load %arg7[%c363, %c0_31] : memref<368x128xf32, #tpu.memory_space<vmem>>, vector<1x32xf32>
    %99 = vector.broadcast %98 : vector<1x32xf32> to vector<16x32xf32>
    %100 = arith.addf %97, %99 : vector<16x32xf32>
    %c0_32 = arith.constant 0 : index
    %c0_33 = arith.constant 0 : index
    %101 = vector.load %arg3[%c0_32, %c0_33] : memref<32x32xf32, #tpu.memory_space<vmem>>, vector<32x32xf32>
    %c0_34 = arith.constant 0 : index
    %c0_35 = arith.constant 0 : index
    %102 = vector.load %arg4[%c0_34, %c0_35] : memref<16x32xf32, #tpu.memory_space<vmem>>, vector<16x32xf32>
    %c64 = arith.constant 64 : index
    %c0_36 = arith.constant 0 : index
    %103 = vector.load %arg7[%c64, %c0_36] : memref<368x128xf32, #tpu.memory_space<vmem>>, vector<32x32xf32>
    %cst_37 = arith.constant dense<0.000000e+00> : vector<16x32xf32>
    %104 = tpu.matmul %100, %103, %cst_37 {dimension_numbers = #tpu.dot_dimension_numbers<[1], [0], [0], [1], [0, 0, 1, 1], [], []>} : vector<16x32xf32>, vector<32x32xf32>, vector<16x32xf32> -> vector<16x32xf32>
    %c354 = arith.constant 354 : index
    %c0_38 = arith.constant 0 : index
    %105 = vector.load %arg7[%c354, %c0_38] : memref<368x128xf32, #tpu.memory_space<vmem>>, vector<1x32xf32>
    %106 = vector.broadcast %105 : vector<1x32xf32> to vector<16x32xf32>
    %107 = arith.addf %104, %106 : vector<16x32xf32>
    %c96 = arith.constant 96 : index
    %c0_39 = arith.constant 0 : index
    %108 = vector.load %arg7[%c96, %c0_39] : memref<368x128xf32, #tpu.memory_space<vmem>>, vector<32x64xf32>
    %cst_40 = arith.constant dense<0.000000e+00> : vector<32x64xf32>
    %109 = tpu.matmul %101, %108, %cst_40 {dimension_numbers = #tpu.dot_dimension_numbers<[1], [0], [0], [1], [0, 0, 1, 1], [], []>} : vector<32x32xf32>, vector<32x64xf32>, vector<32x64xf32> -> vector<32x64xf32>
    %c355 = arith.constant 355 : index
    %c0_41 = arith.constant 0 : index
    %110 = vector.load %arg7[%c355, %c0_41] : memref<368x128xf32, #tpu.memory_space<vmem>>, vector<1x64xf32>
    %111 = vector.broadcast %110 : vector<1x64xf32> to vector<32x64xf32>
    %112 = arith.addf %109, %111 : vector<32x64xf32>
    %113 = vector.extract_strided_slice %112 {offsets = [0, 0], sizes = [32, 32], strides = [1, 1]} : vector<32x64xf32> to vector<32x32xf32>
    %114 = vector.extract_strided_slice %112 {offsets = [0, 32], sizes = [32, 32], strides = [1, 1]} : vector<32x64xf32> to vector<32x32xf32>
    %115 = vector.extract_strided_slice %107 {offsets = [0, 0], sizes = [16, 8], strides = [1, 1]} : vector<16x32xf32> to vector<16x8xf32>
    %116 = vector.extract_strided_slice %113 {offsets = [0, 0], sizes = [32, 8], strides = [1, 1]} : vector<32x32xf32> to vector<32x8xf32>
    %cst_42 = arith.constant dense<0.000000e+00> : vector<16x32xf32>
    %117 = tpu.matmul %115, %116, %cst_42 {dimension_numbers = #tpu.dot_dimension_numbers<[1], [1], [0], [0], [0, 0, 1, 0], [], []>} : vector<16x8xf32>, vector<32x8xf32>, vector<16x32xf32> -> vector<16x32xf32>
    %118 = arith.addf %117, %102 : vector<16x32xf32>
    %cst_43 = arith.constant dense<0xFF800000> : vector<16xf32>
    %119 = vector.multi_reduction <maximumf>, %118, %cst_43 [1] : vector<16x32xf32> to vector<16xf32>
    %120 = vector.shape_cast %119 : vector<16xf32> to vector<16x1xf32>
    %121 = vector.broadcast %120 : vector<16x1xf32> to vector<16x32xf32>
    %122 = arith.subf %118, %121 : vector<16x32xf32>
    %123 = math.exp %122 : vector<16x32xf32>
    %cst_44 = arith.constant dense<0.000000e+00> : vector<16xf32>
    %124 = vector.multi_reduction <add>, %123, %cst_44 [1] : vector<16x32xf32> to vector<16xf32>
    %125 = vector.shape_cast %124 : vector<16xf32> to vector<16x1xf32>
    %126 = vector.broadcast %125 : vector<16x1xf32> to vector<16x32xf32>
    %127 = arith.divf %123, %126 : vector<16x32xf32>
    %128 = vector.extract_strided_slice %114 {offsets = [0, 0], sizes = [32, 8], strides = [1, 1]} : vector<32x32xf32> to vector<32x8xf32>
    %cst_45 = arith.constant dense<0.000000e+00> : vector<16x8xf32>
    %129 = tpu.matmul %127, %128, %cst_45 {dimension_numbers = #tpu.dot_dimension_numbers<[1], [0], [0], [1], [0, 0, 1, 1], [], []>} : vector<16x32xf32>, vector<32x8xf32>, vector<16x8xf32> -> vector<16x8xf32>
    %130 = vector.extract_strided_slice %107 {offsets = [0, 8], sizes = [16, 8], strides = [1, 1]} : vector<16x32xf32> to vector<16x8xf32>
    %131 = vector.extract_strided_slice %113 {offsets = [0, 8], sizes = [32, 8], strides = [1, 1]} : vector<32x32xf32> to vector<32x8xf32>
    %cst_46 = arith.constant dense<0.000000e+00> : vector<16x32xf32>
    %132 = tpu.matmul %130, %131, %cst_46 {dimension_numbers = #tpu.dot_dimension_numbers<[1], [1], [0], [0], [0, 0, 1, 0], [], []>} : vector<16x8xf32>, vector<32x8xf32>, vector<16x32xf32> -> vector<16x32xf32>
    %133 = arith.addf %132, %102 : vector<16x32xf32>
    %cst_47 = arith.constant dense<0xFF800000> : vector<16xf32>
    %134 = vector.multi_reduction <maximumf>, %133, %cst_47 [1] : vector<16x32xf32> to vector<16xf32>
    %135 = vector.shape_cast %134 : vector<16xf32> to vector<16x1xf32>
    %136 = vector.broadcast %135 : vector<16x1xf32> to vector<16x32xf32>
    %137 = arith.subf %133, %136 : vector<16x32xf32>
    %138 = math.exp %137 : vector<16x32xf32>
    %cst_48 = arith.constant dense<0.000000e+00> : vector<16xf32>
    %139 = vector.multi_reduction <add>, %138, %cst_48 [1] : vector<16x32xf32> to vector<16xf32>
    %140 = vector.shape_cast %139 : vector<16xf32> to vector<16x1xf32>
    %141 = vector.broadcast %140 : vector<16x1xf32> to vector<16x32xf32>
    %142 = arith.divf %138, %141 : vector<16x32xf32>
    %143 = vector.extract_strided_slice %114 {offsets = [0, 8], sizes = [32, 8], strides = [1, 1]} : vector<32x32xf32> to vector<32x8xf32>
    %cst_49 = arith.constant dense<0.000000e+00> : vector<16x8xf32>
    %144 = tpu.matmul %142, %143, %cst_49 {dimension_numbers = #tpu.dot_dimension_numbers<[1], [0], [0], [1], [0, 0, 1, 1], [], []>} : vector<16x32xf32>, vector<32x8xf32>, vector<16x8xf32> -> vector<16x8xf32>
    %145 = vector.extract_strided_slice %107 {offsets = [0, 16], sizes = [16, 8], strides = [1, 1]} : vector<16x32xf32> to vector<16x8xf32>
    %146 = vector.extract_strided_slice %113 {offsets = [0, 16], sizes = [32, 8], strides = [1, 1]} : vector<32x32xf32> to vector<32x8xf32>
    %cst_50 = arith.constant dense<0.000000e+00> : vector<16x32xf32>
    %147 = tpu.matmul %145, %146, %cst_50 {dimension_numbers = #tpu.dot_dimension_numbers<[1], [1], [0], [0], [0, 0, 1, 0], [], []>} : vector<16x8xf32>, vector<32x8xf32>, vector<16x32xf32> -> vector<16x32xf32>
    %148 = arith.addf %147, %102 : vector<16x32xf32>
    %cst_51 = arith.constant dense<0xFF800000> : vector<16xf32>
    %149 = vector.multi_reduction <maximumf>, %148, %cst_51 [1] : vector<16x32xf32> to vector<16xf32>
    %150 = vector.shape_cast %149 : vector<16xf32> to vector<16x1xf32>
    %151 = vector.broadcast %150 : vector<16x1xf32> to vector<16x32xf32>
    %152 = arith.subf %148, %151 : vector<16x32xf32>
    %153 = math.exp %152 : vector<16x32xf32>
    %cst_52 = arith.constant dense<0.000000e+00> : vector<16xf32>
    %154 = vector.multi_reduction <add>, %153, %cst_52 [1] : vector<16x32xf32> to vector<16xf32>
    %155 = vector.shape_cast %154 : vector<16xf32> to vector<16x1xf32>
    %156 = vector.broadcast %155 : vector<16x1xf32> to vector<16x32xf32>
    %157 = arith.divf %153, %156 : vector<16x32xf32>
    %158 = vector.extract_strided_slice %114 {offsets = [0, 16], sizes = [32, 8], strides = [1, 1]} : vector<32x32xf32> to vector<32x8xf32>
    %cst_53 = arith.constant dense<0.000000e+00> : vector<16x8xf32>
    %159 = tpu.matmul %157, %158, %cst_53 {dimension_numbers = #tpu.dot_dimension_numbers<[1], [0], [0], [1], [0, 0, 1, 1], [], []>} : vector<16x32xf32>, vector<32x8xf32>, vector<16x8xf32> -> vector<16x8xf32>
    %160 = vector.extract_strided_slice %107 {offsets = [0, 24], sizes = [16, 8], strides = [1, 1]} : vector<16x32xf32> to vector<16x8xf32>
    %161 = vector.extract_strided_slice %113 {offsets = [0, 24], sizes = [32, 8], strides = [1, 1]} : vector<32x32xf32> to vector<32x8xf32>
    %cst_54 = arith.constant dense<0.000000e+00> : vector<16x32xf32>
    %162 = tpu.matmul %160, %161, %cst_54 {dimension_numbers = #tpu.dot_dimension_numbers<[1], [1], [0], [0], [0, 0, 1, 0], [], []>} : vector<16x8xf32>, vector<32x8xf32>, vector<16x32xf32> -> vector<16x32xf32>
    %163 = arith.addf %162, %102 : vector<16x32xf32>
    %cst_55 = arith.constant dense<0xFF800000> : vector<16xf32>
    %164 = vector.multi_reduction <maximumf>, %163, %cst_55 [1] : vector<16x32xf32> to vector<16xf32>
    %165 = vector.shape_cast %164 : vector<16xf32> to vector<16x1xf32>
    %166 = vector.broadcast %165 : vector<16x1xf32> to vector<16x32xf32>
    %167 = arith.subf %163, %166 : vector<16x32xf32>
    %168 = math.exp %167 : vector<16x32xf32>
    %cst_56 = arith.constant dense<0.000000e+00> : vector<16xf32>
    %169 = vector.multi_reduction <add>, %168, %cst_56 [1] : vector<16x32xf32> to vector<16xf32>
    %170 = vector.shape_cast %169 : vector<16xf32> to vector<16x1xf32>
    %171 = vector.broadcast %170 : vector<16x1xf32> to vector<16x32xf32>
    %172 = arith.divf %168, %171 : vector<16x32xf32>
    %173 = vector.extract_strided_slice %114 {offsets = [0, 24], sizes = [32, 8], strides = [1, 1]} : vector<32x32xf32> to vector<32x8xf32>
    %cst_57 = arith.constant dense<0.000000e+00> : vector<16x8xf32>
    %174 = tpu.matmul %172, %173, %cst_57 {dimension_numbers = #tpu.dot_dimension_numbers<[1], [0], [0], [1], [0, 0, 1, 1], [], []>} : vector<16x32xf32>, vector<32x8xf32>, vector<16x8xf32> -> vector<16x8xf32>
    %175 = tpu.concatenate %129, %144, %159, %174 in 1 : vector<16x8xf32>, vector<16x8xf32>, vector<16x8xf32>, vector<16x8xf32> -> vector<16x32xf32>
    %c128 = arith.constant 128 : index
    %c0_58 = arith.constant 0 : index
    %176 = vector.load %arg7[%c128, %c0_58] : memref<368x128xf32, #tpu.memory_space<vmem>>, vector<32x32xf32>
    %cst_59 = arith.constant dense<0.000000e+00> : vector<16x32xf32>
    %177 = tpu.matmul %175, %176, %cst_59 {dimension_numbers = #tpu.dot_dimension_numbers<[1], [0], [0], [1], [0, 0, 1, 1], [], []>} : vector<16x32xf32>, vector<32x32xf32>, vector<16x32xf32> -> vector<16x32xf32>
    %c356 = arith.constant 356 : index
    %c0_60 = arith.constant 0 : index
    %178 = vector.load %arg7[%c356, %c0_60] : memref<368x128xf32, #tpu.memory_space<vmem>>, vector<1x32xf32>
    %179 = vector.broadcast %178 : vector<1x32xf32> to vector<16x32xf32>
    %180 = arith.addf %177, %179 : vector<16x32xf32>
    %c0_61 = arith.constant 0 : index
    %c0_62 = arith.constant 0 : index
    %181 = vector.load %arg5[%c0_61, %c0_62] : memref<32x32xf32, #tpu.memory_space<vmem>>, vector<32x32xf32>
    %c0_63 = arith.constant 0 : index
    %c0_64 = arith.constant 0 : index
    %182 = vector.load %arg6[%c0_63, %c0_64] : memref<16x32xf32, #tpu.memory_space<vmem>>, vector<16x32xf32>
    %c160 = arith.constant 160 : index
    %c0_65 = arith.constant 0 : index
    %183 = vector.load %arg7[%c160, %c0_65] : memref<368x128xf32, #tpu.memory_space<vmem>>, vector<32x32xf32>
    %cst_66 = arith.constant dense<0.000000e+00> : vector<16x32xf32>
    %184 = tpu.matmul %100, %183, %cst_66 {dimension_numbers = #tpu.dot_dimension_numbers<[1], [0], [0], [1], [0, 0, 1, 1], [], []>} : vector<16x32xf32>, vector<32x32xf32>, vector<16x32xf32> -> vector<16x32xf32>
    %c357 = arith.constant 357 : index
    %c0_67 = arith.constant 0 : index
    %185 = vector.load %arg7[%c357, %c0_67] : memref<368x128xf32, #tpu.memory_space<vmem>>, vector<1x32xf32>
    %186 = vector.broadcast %185 : vector<1x32xf32> to vector<16x32xf32>
    %187 = arith.addf %184, %186 : vector<16x32xf32>
    %c192 = arith.constant 192 : index
    %c0_68 = arith.constant 0 : index
    %188 = vector.load %arg7[%c192, %c0_68] : memref<368x128xf32, #tpu.memory_space<vmem>>, vector<32x64xf32>
    %cst_69 = arith.constant dense<0.000000e+00> : vector<32x64xf32>
    %189 = tpu.matmul %181, %188, %cst_69 {dimension_numbers = #tpu.dot_dimension_numbers<[1], [0], [0], [1], [0, 0, 1, 1], [], []>} : vector<32x32xf32>, vector<32x64xf32>, vector<32x64xf32> -> vector<32x64xf32>
    %c358 = arith.constant 358 : index
    %c0_70 = arith.constant 0 : index
    %190 = vector.load %arg7[%c358, %c0_70] : memref<368x128xf32, #tpu.memory_space<vmem>>, vector<1x64xf32>
    %191 = vector.broadcast %190 : vector<1x64xf32> to vector<32x64xf32>
    %192 = arith.addf %189, %191 : vector<32x64xf32>
    %193 = vector.extract_strided_slice %192 {offsets = [0, 0], sizes = [32, 32], strides = [1, 1]} : vector<32x64xf32> to vector<32x32xf32>
    %194 = vector.extract_strided_slice %192 {offsets = [0, 32], sizes = [32, 32], strides = [1, 1]} : vector<32x64xf32> to vector<32x32xf32>
    %195 = vector.extract_strided_slice %187 {offsets = [0, 0], sizes = [16, 8], strides = [1, 1]} : vector<16x32xf32> to vector<16x8xf32>
    %196 = vector.extract_strided_slice %193 {offsets = [0, 0], sizes = [32, 8], strides = [1, 1]} : vector<32x32xf32> to vector<32x8xf32>
    %cst_71 = arith.constant dense<0.000000e+00> : vector<16x32xf32>
    %197 = tpu.matmul %195, %196, %cst_71 {dimension_numbers = #tpu.dot_dimension_numbers<[1], [1], [0], [0], [0, 0, 1, 0], [], []>} : vector<16x8xf32>, vector<32x8xf32>, vector<16x32xf32> -> vector<16x32xf32>
    %198 = arith.addf %197, %182 : vector<16x32xf32>
    %cst_72 = arith.constant dense<0xFF800000> : vector<16xf32>
    %199 = vector.multi_reduction <maximumf>, %198, %cst_72 [1] : vector<16x32xf32> to vector<16xf32>
    %200 = vector.shape_cast %199 : vector<16xf32> to vector<16x1xf32>
    %201 = vector.broadcast %200 : vector<16x1xf32> to vector<16x32xf32>
    %202 = arith.subf %198, %201 : vector<16x32xf32>
    %203 = math.exp %202 : vector<16x32xf32>
    %cst_73 = arith.constant dense<0.000000e+00> : vector<16xf32>
    %204 = vector.multi_reduction <add>, %203, %cst_73 [1] : vector<16x32xf32> to vector<16xf32>
    %205 = vector.shape_cast %204 : vector<16xf32> to vector<16x1xf32>
    %206 = vector.broadcast %205 : vector<16x1xf32> to vector<16x32xf32>
    %207 = arith.divf %203, %206 : vector<16x32xf32>
    %208 = vector.extract_strided_slice %194 {offsets = [0, 0], sizes = [32, 8], strides = [1, 1]} : vector<32x32xf32> to vector<32x8xf32>
    %cst_74 = arith.constant dense<0.000000e+00> : vector<16x8xf32>
    %209 = tpu.matmul %207, %208, %cst_74 {dimension_numbers = #tpu.dot_dimension_numbers<[1], [0], [0], [1], [0, 0, 1, 1], [], []>} : vector<16x32xf32>, vector<32x8xf32>, vector<16x8xf32> -> vector<16x8xf32>
    %210 = vector.extract_strided_slice %187 {offsets = [0, 8], sizes = [16, 8], strides = [1, 1]} : vector<16x32xf32> to vector<16x8xf32>
    %211 = vector.extract_strided_slice %193 {offsets = [0, 8], sizes = [32, 8], strides = [1, 1]} : vector<32x32xf32> to vector<32x8xf32>
    %cst_75 = arith.constant dense<0.000000e+00> : vector<16x32xf32>
    %212 = tpu.matmul %210, %211, %cst_75 {dimension_numbers = #tpu.dot_dimension_numbers<[1], [1], [0], [0], [0, 0, 1, 0], [], []>} : vector<16x8xf32>, vector<32x8xf32>, vector<16x32xf32> -> vector<16x32xf32>
    %213 = arith.addf %212, %182 : vector<16x32xf32>
    %cst_76 = arith.constant dense<0xFF800000> : vector<16xf32>
    %214 = vector.multi_reduction <maximumf>, %213, %cst_76 [1] : vector<16x32xf32> to vector<16xf32>
    %215 = vector.shape_cast %214 : vector<16xf32> to vector<16x1xf32>
    %216 = vector.broadcast %215 : vector<16x1xf32> to vector<16x32xf32>
    %217 = arith.subf %213, %216 : vector<16x32xf32>
    %218 = math.exp %217 : vector<16x32xf32>
    %cst_77 = arith.constant dense<0.000000e+00> : vector<16xf32>
    %219 = vector.multi_reduction <add>, %218, %cst_77 [1] : vector<16x32xf32> to vector<16xf32>
    %220 = vector.shape_cast %219 : vector<16xf32> to vector<16x1xf32>
    %221 = vector.broadcast %220 : vector<16x1xf32> to vector<16x32xf32>
    %222 = arith.divf %218, %221 : vector<16x32xf32>
    %223 = vector.extract_strided_slice %194 {offsets = [0, 8], sizes = [32, 8], strides = [1, 1]} : vector<32x32xf32> to vector<32x8xf32>
    %cst_78 = arith.constant dense<0.000000e+00> : vector<16x8xf32>
    %224 = tpu.matmul %222, %223, %cst_78 {dimension_numbers = #tpu.dot_dimension_numbers<[1], [0], [0], [1], [0, 0, 1, 1], [], []>} : vector<16x32xf32>, vector<32x8xf32>, vector<16x8xf32> -> vector<16x8xf32>
    %225 = vector.extract_strided_slice %187 {offsets = [0, 16], sizes = [16, 8], strides = [1, 1]} : vector<16x32xf32> to vector<16x8xf32>
    %226 = vector.extract_strided_slice %193 {offsets = [0, 16], sizes = [32, 8], strides = [1, 1]} : vector<32x32xf32> to vector<32x8xf32>
    %cst_79 = arith.constant dense<0.000000e+00> : vector<16x32xf32>
    %227 = tpu.matmul %225, %226, %cst_79 {dimension_numbers = #tpu.dot_dimension_numbers<[1], [1], [0], [0], [0, 0, 1, 0], [], []>} : vector<16x8xf32>, vector<32x8xf32>, vector<16x32xf32> -> vector<16x32xf32>
    %228 = arith.addf %227, %182 : vector<16x32xf32>
    %cst_80 = arith.constant dense<0xFF800000> : vector<16xf32>
    %229 = vector.multi_reduction <maximumf>, %228, %cst_80 [1] : vector<16x32xf32> to vector<16xf32>
    %230 = vector.shape_cast %229 : vector<16xf32> to vector<16x1xf32>
    %231 = vector.broadcast %230 : vector<16x1xf32> to vector<16x32xf32>
    %232 = arith.subf %228, %231 : vector<16x32xf32>
    %233 = math.exp %232 : vector<16x32xf32>
    %cst_81 = arith.constant dense<0.000000e+00> : vector<16xf32>
    %234 = vector.multi_reduction <add>, %233, %cst_81 [1] : vector<16x32xf32> to vector<16xf32>
    %235 = vector.shape_cast %234 : vector<16xf32> to vector<16x1xf32>
    %236 = vector.broadcast %235 : vector<16x1xf32> to vector<16x32xf32>
    %237 = arith.divf %233, %236 : vector<16x32xf32>
    %238 = vector.extract_strided_slice %194 {offsets = [0, 16], sizes = [32, 8], strides = [1, 1]} : vector<32x32xf32> to vector<32x8xf32>
    %cst_82 = arith.constant dense<0.000000e+00> : vector<16x8xf32>
    %239 = tpu.matmul %237, %238, %cst_82 {dimension_numbers = #tpu.dot_dimension_numbers<[1], [0], [0], [1], [0, 0, 1, 1], [], []>} : vector<16x32xf32>, vector<32x8xf32>, vector<16x8xf32> -> vector<16x8xf32>
    %240 = vector.extract_strided_slice %187 {offsets = [0, 24], sizes = [16, 8], strides = [1, 1]} : vector<16x32xf32> to vector<16x8xf32>
    %241 = vector.extract_strided_slice %193 {offsets = [0, 24], sizes = [32, 8], strides = [1, 1]} : vector<32x32xf32> to vector<32x8xf32>
    %cst_83 = arith.constant dense<0.000000e+00> : vector<16x32xf32>
    %242 = tpu.matmul %240, %241, %cst_83 {dimension_numbers = #tpu.dot_dimension_numbers<[1], [1], [0], [0], [0, 0, 1, 0], [], []>} : vector<16x8xf32>, vector<32x8xf32>, vector<16x32xf32> -> vector<16x32xf32>
    %243 = arith.addf %242, %182 : vector<16x32xf32>
    %cst_84 = arith.constant dense<0xFF800000> : vector<16xf32>
    %244 = vector.multi_reduction <maximumf>, %243, %cst_84 [1] : vector<16x32xf32> to vector<16xf32>
    %245 = vector.shape_cast %244 : vector<16xf32> to vector<16x1xf32>
    %246 = vector.broadcast %245 : vector<16x1xf32> to vector<16x32xf32>
    %247 = arith.subf %243, %246 : vector<16x32xf32>
    %248 = math.exp %247 : vector<16x32xf32>
    %cst_85 = arith.constant dense<0.000000e+00> : vector<16xf32>
    %249 = vector.multi_reduction <add>, %248, %cst_85 [1] : vector<16x32xf32> to vector<16xf32>
    %250 = vector.shape_cast %249 : vector<16xf32> to vector<16x1xf32>
    %251 = vector.broadcast %250 : vector<16x1xf32> to vector<16x32xf32>
    %252 = arith.divf %248, %251 : vector<16x32xf32>
    %253 = vector.extract_strided_slice %194 {offsets = [0, 24], sizes = [32, 8], strides = [1, 1]} : vector<32x32xf32> to vector<32x8xf32>
    %cst_86 = arith.constant dense<0.000000e+00> : vector<16x8xf32>
    %254 = tpu.matmul %252, %253, %cst_86 {dimension_numbers = #tpu.dot_dimension_numbers<[1], [0], [0], [1], [0, 0, 1, 1], [], []>} : vector<16x32xf32>, vector<32x8xf32>, vector<16x8xf32> -> vector<16x8xf32>
    %255 = tpu.concatenate %209, %224, %239, %254 in 1 : vector<16x8xf32>, vector<16x8xf32>, vector<16x8xf32>, vector<16x8xf32> -> vector<16x32xf32>
    %c224 = arith.constant 224 : index
    %c0_87 = arith.constant 0 : index
    %256 = vector.load %arg7[%c224, %c0_87] : memref<368x128xf32, #tpu.memory_space<vmem>>, vector<32x32xf32>
    %cst_88 = arith.constant dense<0.000000e+00> : vector<16x32xf32>
    %257 = tpu.matmul %255, %256, %cst_88 {dimension_numbers = #tpu.dot_dimension_numbers<[1], [0], [0], [1], [0, 0, 1, 1], [], []>} : vector<16x32xf32>, vector<32x32xf32>, vector<16x32xf32> -> vector<16x32xf32>
    %c359 = arith.constant 359 : index
    %c0_89 = arith.constant 0 : index
    %258 = vector.load %arg7[%c359, %c0_89] : memref<368x128xf32, #tpu.memory_space<vmem>>, vector<1x32xf32>
    %259 = vector.broadcast %258 : vector<1x32xf32> to vector<16x32xf32>
    %260 = arith.addf %257, %259 : vector<16x32xf32>
    %cst_90 = arith.constant 4.000000e+00 : f32
    %261 = vector.broadcast %cst_90 : f32 to vector<16x32xf32>
    %262 = arith.mulf %261, %100 : vector<16x32xf32>
    %263 = arith.addf %262, %180 : vector<16x32xf32>
    %264 = arith.addf %263, %260 : vector<16x32xf32>
    %cst_91 = arith.constant dense<0.000000e+00> : vector<16xf32>
    %265 = vector.multi_reduction <add>, %264, %cst_91 [1] : vector<16x32xf32> to vector<16xf32>
    %266 = vector.shape_cast %265 : vector<16xf32> to vector<16x1xf32>
    %cst_92 = arith.constant 3.200000e+01 : f32
    %267 = vector.broadcast %cst_92 : f32 to vector<16x1xf32>
    %268 = arith.divf %266, %267 : vector<16x1xf32>
    %269 = vector.broadcast %268 : vector<16x1xf32> to vector<16x32xf32>
    %270 = arith.subf %264, %269 : vector<16x32xf32>
    %271 = arith.mulf %270, %270 : vector<16x32xf32>
    %cst_93 = arith.constant dense<0.000000e+00> : vector<16xf32>
    %272 = vector.multi_reduction <add>, %271, %cst_93 [1] : vector<16x32xf32> to vector<16xf32>
    %273 = vector.shape_cast %272 : vector<16xf32> to vector<16x1xf32>
    %cst_94 = arith.constant 3.200000e+01 : f32
    %274 = vector.broadcast %cst_94 : f32 to vector<16x1xf32>
    %275 = arith.divf %273, %274 : vector<16x1xf32>
    %276 = vector.broadcast %268 : vector<16x1xf32> to vector<16x32xf32>
    %277 = arith.subf %264, %276 : vector<16x32xf32>
    %cst_95 = arith.constant 9.99999974E-6 : f32
    %278 = vector.broadcast %cst_95 : f32 to vector<16x1xf32>
    %279 = arith.addf %275, %278 : vector<16x1xf32>
    %280 = math.rsqrt %279 : vector<16x1xf32>
    %281 = vector.broadcast %280 : vector<16x1xf32> to vector<16x32xf32>
    %282 = arith.mulf %277, %281 : vector<16x32xf32>
    %c364 = arith.constant 364 : index
    %c0_96 = arith.constant 0 : index
    %283 = vector.load %arg7[%c364, %c0_96] : memref<368x128xf32, #tpu.memory_space<vmem>>, vector<1x32xf32>
    %284 = vector.broadcast %283 : vector<1x32xf32> to vector<16x32xf32>
    %285 = arith.mulf %282, %284 : vector<16x32xf32>
    %c365 = arith.constant 365 : index
    %c0_97 = arith.constant 0 : index
    %286 = vector.load %arg7[%c365, %c0_97] : memref<368x128xf32, #tpu.memory_space<vmem>>, vector<1x32xf32>
    %287 = vector.broadcast %286 : vector<1x32xf32> to vector<16x32xf32>
    %288 = arith.addf %285, %287 : vector<16x32xf32>
    %c256 = arith.constant 256 : index
    %c0_98 = arith.constant 0 : index
    %289 = vector.load %arg7[%c256, %c0_98] : memref<368x128xf32, #tpu.memory_space<vmem>>, vector<32x64xf32>
    %cst_99 = arith.constant dense<0.000000e+00> : vector<16x64xf32>
    %290 = tpu.matmul %288, %289, %cst_99 {dimension_numbers = #tpu.dot_dimension_numbers<[1], [0], [0], [1], [0, 0, 1, 1], [], []>} : vector<16x32xf32>, vector<32x64xf32>, vector<16x64xf32> -> vector<16x64xf32>
    %c360 = arith.constant 360 : index
    %c0_100 = arith.constant 0 : index
    %291 = vector.load %arg7[%c360, %c0_100] : memref<368x128xf32, #tpu.memory_space<vmem>>, vector<1x64xf32>
    %292 = vector.broadcast %291 : vector<1x64xf32> to vector<16x64xf32>
    %293 = arith.addf %290, %292 : vector<16x64xf32>
    %cst_101 = arith.constant 5.000000e-01 : f32
    %294 = vector.broadcast %cst_101 : f32 to vector<16x64xf32>
    %295 = arith.mulf %294, %293 : vector<16x64xf32>
    %cst_102 = arith.constant 0.707106769 : f32
    %296 = vector.broadcast %cst_102 : f32 to vector<16x64xf32>
    %297 = arith.mulf %293, %296 : vector<16x64xf32>
    %298 = math.erf %297 : vector<16x64xf32>
    %cst_103 = arith.constant 1.000000e+00 : f32
    %299 = vector.broadcast %cst_103 : f32 to vector<16x64xf32>
    %300 = arith.addf %299, %298 : vector<16x64xf32>
    %301 = arith.mulf %295, %300 : vector<16x64xf32>
    %c288 = arith.constant 288 : index
    %c0_104 = arith.constant 0 : index
    %302 = vector.load %arg7[%c288, %c0_104] : memref<368x128xf32, #tpu.memory_space<vmem>>, vector<64x32xf32>
    %cst_105 = arith.constant dense<0.000000e+00> : vector<16x32xf32>
    %303 = tpu.matmul %301, %302, %cst_105 {dimension_numbers = #tpu.dot_dimension_numbers<[1], [0], [0], [1], [0, 0, 1, 1], [], []>} : vector<16x64xf32>, vector<64x32xf32>, vector<16x32xf32> -> vector<16x32xf32>
    %c361 = arith.constant 361 : index
    %c0_106 = arith.constant 0 : index
    %304 = vector.load %arg7[%c361, %c0_106] : memref<368x128xf32, #tpu.memory_space<vmem>>, vector<1x32xf32>
    %305 = vector.broadcast %304 : vector<1x32xf32> to vector<16x32xf32>
    %306 = arith.addf %303, %305 : vector<16x32xf32>
    %307 = arith.addf %288, %306 : vector<16x32xf32>
    %cst_107 = arith.constant dense<0.000000e+00> : vector<16xf32>
    %308 = vector.multi_reduction <add>, %307, %cst_107 [1] : vector<16x32xf32> to vector<16xf32>
    %309 = vector.shape_cast %308 : vector<16xf32> to vector<16x1xf32>
    %cst_108 = arith.constant 3.200000e+01 : f32
    %310 = vector.broadcast %cst_108 : f32 to vector<16x1xf32>
    %311 = arith.divf %309, %310 : vector<16x1xf32>
    %312 = vector.broadcast %311 : vector<16x1xf32> to vector<16x32xf32>
    %313 = arith.subf %307, %312 : vector<16x32xf32>
    %314 = arith.mulf %313, %313 : vector<16x32xf32>
    %cst_109 = arith.constant dense<0.000000e+00> : vector<16xf32>
    %315 = vector.multi_reduction <add>, %314, %cst_109 [1] : vector<16x32xf32> to vector<16xf32>
    %316 = vector.shape_cast %315 : vector<16xf32> to vector<16x1xf32>
    %cst_110 = arith.constant 3.200000e+01 : f32
    %317 = vector.broadcast %cst_110 : f32 to vector<16x1xf32>
    %318 = arith.divf %316, %317 : vector<16x1xf32>
    %319 = vector.broadcast %311 : vector<16x1xf32> to vector<16x32xf32>
    %320 = arith.subf %307, %319 : vector<16x32xf32>
    %cst_111 = arith.constant 9.99999974E-6 : f32
    %321 = vector.broadcast %cst_111 : f32 to vector<16x1xf32>
    %322 = arith.addf %318, %321 : vector<16x1xf32>
    %323 = math.rsqrt %322 : vector<16x1xf32>
    %324 = vector.broadcast %323 : vector<16x1xf32> to vector<16x32xf32>
    %325 = arith.mulf %320, %324 : vector<16x32xf32>
    %c366 = arith.constant 366 : index
    %c0_112 = arith.constant 0 : index
    %326 = vector.load %arg7[%c366, %c0_112] : memref<368x128xf32, #tpu.memory_space<vmem>>, vector<1x32xf32>
    %327 = vector.broadcast %326 : vector<1x32xf32> to vector<16x32xf32>
    %328 = arith.mulf %325, %327 : vector<16x32xf32>
    %c367 = arith.constant 367 : index
    %c0_113 = arith.constant 0 : index
    %329 = vector.load %arg7[%c367, %c0_113] : memref<368x128xf32, #tpu.memory_space<vmem>>, vector<1x32xf32>
    %330 = vector.broadcast %329 : vector<1x32xf32> to vector<16x32xf32>
    %331 = arith.addf %328, %330 : vector<16x32xf32>
    %c0_114 = arith.constant 0 : index
    %c0_115 = arith.constant 0 : index
    %332 = vector.load %arg8[%c0_114, %c0_115] : memref<16x32xf32, #tpu.memory_space<vmem>>, vector<16x32xf32>
    tpu.vector_store %arg8[%c0_114, %c0_115], %331 {strides = array<i32>} : memref<16x32xf32, #tpu.memory_space<vmem>>, vector<16x32xf32>,
    return
  }
  func.func @transform_0(%arg0: i32) -> (i32, i32) {
    %c0_i32 = arith.constant 0 : i32
    %c0_i32_0 = arith.constant 0 : i32
    %c0_i32_1 = arith.constant 0 : i32
    return %c0_i32, %c0_i32_0 : i32, i32
  }
  func.func @transform_1(%arg0: i32) -> (i32, i32) {
    %c0_i32 = arith.constant 0 : i32
    %c0_i32_0 = arith.constant 0 : i32
    %c0_i32_1 = arith.constant 0 : i32
    return %c0_i32, %c0_i32_0 : i32, i32
  }
  func.func @transform_2(%arg0: i32) -> (i32, i32) {
    %c0_i32 = arith.constant 0 : i32
    %c0_i32_0 = arith.constant 0 : i32
    %c0_i32_1 = arith.constant 0 : i32
    return %c0_i32, %c0_i32_0 : i32, i32
  }
  func.func @transform_3(%arg0: i32) -> (i32, i32) {
    %c0_i32 = arith.constant 0 : i32
    %c0_i32_0 = arith.constant 0 : i32
    %c0_i32_1 = arith.constant 0 : i32
    return %c0_i32, %c0_i32_0 : i32, i32
  }
  func.func @transform_4(%arg0: i32) -> (i32, i32) {
    %c0_i32 = arith.constant 0 : i32
    %c0_i32_0 = arith.constant 0 : i32
    %c0_i32_1 = arith.constant 0 : i32
    return %c0_i32, %c0_i32_0 : i32, i32
  }
  func.func @transform_5(%arg0: i32) -> (i32, i32) {
    %c0_i32 = arith.constant 0 : i32
    %c0_i32_0 = arith.constant 0 : i32
    %c0_i32_1 = arith.constant 0 : i32
    return %c0_i32, %c0_i32_0 : i32, i32
  }
  func.func @transform_6(%arg0: i32) -> (i32, i32) {
    %c0_i32 = arith.constant 0 : i32
    %c0_i32_0 = arith.constant 0 : i32
    %c0_i32_1 = arith.constant 0 : i32
    return %c0_i32, %c0_i32_0 : i32, i32
  }
  func.func @transform_7(%arg0: i32) -> (i32, i32) {
    %c0_i32 = arith.constant 0 : i32
    %c0_i32_0 = arith.constant 0 : i32
    %c0_i32_1 = arith.constant 0 : i32
    return %c0_i32, %c0_i32_0 : i32, i32
  }
}

</mosaic_0001>

<llo_original>
// kernel: eq.22
$region0: #{eq.22}
  %s0 = inlined_call_operand.vmem [shape: s32[2,8], index: 0, kind: input, shape index: {}]
  %s1 = inlined_call_operand.vmem [shape: s32[16], index: 1, kind: output, shape index: {}]
  $region1: #{eq.22} parent=0
    #allocation0 [shape = 'u8[4096]{0}', space=vmem, size = 0x1000, scoped, tag = 'scoped mem for output reshape']
    #allocation1 [shape = 'u8[4096]{0}', space=vmem, size = 0x1000, scoped, tag = 'scoped mem for input reshape']
    %s3 = sshll.u32 1, 2
    %s4 = ssub.s32 %s3, 1
    %v5 = vld [vmem:[%s0] sm:%s4]
    %6 = vst [vmem:[#allocation1] sm:%s4] %v5
    %v7 = vld [vmem:[#allocation1] sm:$0x1]
    %vm8 = vcmask 64512
    %9 = vst.msk [vmem:[#allocation0] sm:$0x1] %vm8, %v7
    %s10 = scalar_lea.vmem [#allocation1], 1
    %v11 = vld [vmem:[%s10] sm:$0x1]
    %12 = vrot.lane.b32.xlu0 %v11, 8
    %v13 = vpop.permute.xlu0 %12
    %vm14 = vcmask 130112
    %15 = vst.msk [vmem:[#allocation0] sm:$0x1] %vm14, %v13
    %s17 = sshll.u32 1, 1
    %s18 = ssub.s32 %s17, 1
    %v20 = vld [vmem:[#allocation0] sm:%s18]
    %s21 = sshll.u32 1, 1
    %s22 = ssub.s32 %s21, 1
    %23 = vst [vmem:[%s1] sm:%s22] %v20

// kernel: bart_decoder_layer.1
$region0: #{bart_decoder_layer.1}
  #allocation0 [shape = 'u32[]', space=smem, size = 0x4, offset = 0x4, fixed_abs, tag = 'smem constant byte address 0x4 - core index']
  #allocation1 [shape = 'u32[144,128]{1,0:T(1,128)}', space=vmem, size = 0x12000, scoped, tag = 'internal scratch']
  %s0 = inlined_call_operand.vmem [shape: f32[16,32], index: 0, kind: input, shape index: {}]
  %s1 = inlined_call_operand.vmem [shape: f32[16,16], index: 1, kind: input, shape index: {}]
  %s2 = inlined_call_operand.vmem [shape: f32[32,32], index: 2, kind: input, shape index: {}]
  %s3 = inlined_call_operand.vmem [shape: f32[16,32], index: 3, kind: input, shape index: {}]
  %s4 = inlined_call_operand.vmem [shape: f32[32,32], index: 4, kind: input, shape index: {}]
  %s5 = inlined_call_operand.vmem [shape: f32[16,32], index: 5, kind: input, shape index: {}]
  %s6 = inlined_call_operand.vmem [shape: f32[368,128], index: 6, kind: input, shape index: {}]
  %s7 = inlined_call_operand.hbm [shape: f32[16,32], index: 7, kind: output, shape index: {}]
  %s8 = sld [smem:[#allocation0]]
  $region38: #{bart_decoder_layer.1} parent=0
    _
  %s10 = ssub.s32 1, %s8
  %s11 = scalar_select 0, %s10, %s8
  $region1: #{bart_decoder_layer.1} parent=0
    #allocation2 [shape = 'u8[8192]{0}', space=vmem, size = 0x2000, scoped, tag = 'output window, operand 0, single buffered']
    #allocation3 [shape = 's32[1]{0}', space=sflag, size = 0x4, scoped, tag = 'scoped memory for bart_decoder_layer.1']
    %12 = vsyncpa [#allocation3], 0
    // Predicated region
    $region2: #{bart_decoder_layer.1} parent=1 // pred_check
      _
    $region3: #{bart_decoder_layer.1} parent=1 // pred_check_branch
      %14 = sbr.rel (0) target = $region5
    $region4: #{bart_decoder_layer.1} parent=1 // pred_region
      _
    $region5: #{bart_decoder_layer.1} parent=1 // pred_fallthru
      _
    // Predicated region
    $region6: #{bart_decoder_layer.1} parent=1 // pred_check
      _
    $region7: #{bart_decoder_layer.1} parent=1 // pred_check_branch
      %16 = sbr.rel (0) target = $region9
    $region8: #{bart_decoder_layer.1} parent=1 // pred_region
      _
    $region9: #{bart_decoder_layer.1} parent=1 // pred_fallthru
      _
    // Predicated region
    $region10: #{bart_decoder_layer.1} parent=1 // pred_check
      _
    $region11: #{bart_decoder_layer.1} parent=1 // pred_check_branch
      %18 = sbr.rel (0) target = $region13
    $region12: #{bart_decoder_layer.1} parent=1 // pred_region
      _
    $region13: #{bart_decoder_layer.1} parent=1 // pred_fallthru
      _
    // Predicated region
    $region14: #{bart_decoder_layer.1} parent=1 // pred_check
      _
    $region15: #{bart_decoder_layer.1} parent=1 // pred_check_branch
      %20 = sbr.rel (0) target = $region17
    $region16: #{bart_decoder_layer.1} parent=1 // pred_region
      _
    $region17: #{bart_decoder_layer.1} parent=1 // pred_fallthru
      _
    // Predicated region
    $region18: #{bart_decoder_layer.1} parent=1 // pred_check
      _
    $region19: #{bart_decoder_layer.1} parent=1 // pred_check_branch
      %22 = sbr.rel (0) target = $region21
    $region20: #{bart_decoder_layer.1} parent=1 // pred_region
      _
    $region21: #{bart_decoder_layer.1} parent=1 // pred_fallthru
      _
    // Predicated region
    $region22: #{bart_decoder_layer.1} parent=1 // pred_check
      _
    $region23: #{bart_decoder_layer.1} parent=1 // pred_check_branch
      %24 = sbr.rel (0) target = $region25
    $region24: #{bart_decoder_layer.1} parent=1 // pred_region
      _
    $region25: #{bart_decoder_layer.1} parent=1 // pred_fallthru
      _
    // Predicated region
    $region26: #{bart_decoder_layer.1} parent=1 // pred_check
      _
    $region27: #{bart_decoder_layer.1} parent=1 // pred_check_branch
      %26 = sbr.rel (0) target = $region29
    $region28: #{bart_decoder_layer.1} parent=1 // pred_region
      _
    $region29: #{bart_decoder_layer.1} parent=1 // pred_fallthru
      _
    %v27 = vld [vmem:[%s0] sm:$0xff]
    %v28 = vld [vmem:[%s0 + $0x8] sm:$0xff]
    %v29 = vld [vmem:[%s6] sm:$0xff]
    %v30 = vld [vmem:[%s6 + $0x8] sm:$0xff]
    %v31 = vld [vmem:[%s6 + $0x10] sm:$0xff]
    %v32 = vld [vmem:[%s6 + $0x18] sm:$0xff]
    %v33 = vld [vmem:[%s6 + $0x160] sm:$0x1]
    %v34 = vlaneseq
    %v35 = vshrl.u32 %v34, 7
    %v36 = vsub.s32 0, %v35
    %v37 = vrot.slane %v33, %v36
    %vm38 = vcmask 261120
    %v40 = vsel %vm38, %v27, 0
    %v43 = vsel %vm38, %v28, 0
    %45 = vmatprep.subr.mxu0 0.0
    %46 = vmatpush1.msra.mxu0 0.0
    %47 = vmatprep.subr.mxu0 0.0
    %48 = vmatpush1.msra.mxu0 0.0
    %49 = vmatprep.subr.mxu0 0.0
    %50 = vmatpush1.msra.mxu0 0.0
    %51 = vmatprep.subr.mxu0 0.0
    %52 = vmatpush1.msra.mxu0 0.0
    %53 = vmatprep.subr.mxu0 0.0
    %54 = vmatpush1.msra.mxu0 0.0
    %55 = vmatprep.subr.mxu0 0.0
    %56 = vmatpush1.msra.mxu0 0.0
    %57 = vmatprep.subr.mxu0 0.0
    %58 = vmatpush1.msra.mxu0 0.0
    %59 = vmatprep.subr.mxu0 0.0
    %60 = vmatpush1.msra.mxu0 0.0
    %61 = vmatprep.subr.mxu0 0.0
    %62 = vmatpush1.msra.mxu0 0.0
    %63 = vmatprep.subr.mxu0 0.0
    %64 = vmatpush1.msra.mxu0 0.0
    %65 = vmatprep.subr.mxu0 0.0
    %66 = vmatpush1.msra.mxu0 0.0
    %67 = vmatprep.subr.mxu0 0.0
    %68 = vmatpush1.msra.mxu0 0.0
    %69 = vmatprep.subr.mxu0 0.0
    %70 = vmatpush1.msra.mxu0 %v32
    %71 = vmatprep.subr.mxu0 0.0
    %72 = vmatpush1.msra.mxu0 %v31
    %73 = vmatprep.subr.mxu0 0.0
    %74 = vmatpush1.msra.mxu0 %v30
    %75 = vmatprep.subr.mxu0 0.0
    %76 = vmatpush1.msra.mxu0 %v29
    %77 = vmatprep.subr.mxu0 0.0
    %78 = vmatpush2.msra.mxu0 0.0
    %79 = vmatprep.subr.mxu0 0.0
    %80 = vmatpush2.msra.mxu0 0.0
    %81 = vmatprep.subr.mxu0 0.0
    %82 = vmatpush2.msra.mxu0 0.0
    %83 = vmatprep.subr.mxu0 0.0
    %84 = vmatpush2.msra.mxu0 0.0
    %85 = vmatprep.subr.mxu0 0.0
    %86 = vmatpush2.msra.mxu0 0.0
    %87 = vmatprep.subr.mxu0 0.0
    %88 = vmatpush2.msra.mxu0 0.0
    %89 = vmatprep.subr.mxu0 0.0
    %90 = vmatpush2.msra.mxu0 0.0
    %91 = vmatprep.subr.mxu0 0.0
    %92 = vmatpush2.msra.mxu0 0.0
    %93 = vmatprep.subr.mxu0 0.0
    %94 = vmatpush2.msra.mxu0 0.0
    %95 = vmatprep.subr.mxu0 0.0
    %96 = vmatpush2.msra.mxu0 0.0
    %97 = vmatprep.subr.mxu0 0.0
    %98 = vmatpush2.msra.mxu0 0.0
    %99 = vmatprep.subr.mxu0 0.0
    %100 = vmatpush2.msra.mxu0 0.0
    %101 = vmatprep.subr.mxu0 0.0
    %102 = vmatpush2.msra.mxu0 0.0
    %103 = vmatprep.subr.mxu0 0.0
    %104 = vmatpush2.msra.mxu0 0.0
    %105 = vmatprep.subr.mxu0 0.0
    %106 = vmatpush2.msra.mxu0 0.0
    %107 = vmatprep.subr.mxu0 0.0
    %108 = vmatpush2.msra.mxu0 0.0
    %109 = vmatprep.mubr.f32.mxu0 0.0
    %110 = vmatmul.mubr.f32.gmra.mxu0 %v40
    %v111 = vpop.f32.mrf.mxu0
    %v112 = vadd.f32 %v37, %v111
    %v113 = vpop.f32.mrf.mxu0
    %114 = vmatprep.mubr.f32.mxu0 0.0
    %115 = vmatmul.mubr.f32.gmra.mxu0 %v43
    %v116 = vpop.f32.mrf.mxu0
    %v117 = vadd.f32 %v37, %v116
    %v118 = vpop.f32.mrf.mxu0
    %119 = vdwg.mxu0
    %v120 = vld [vmem:[%s1] sm:$0xff]
    %v121 = vld [vmem:[%s1 + $0x8] sm:$0xff]
    %124 = vrot.lane.b32.xlu0 %v112, 96
    %v125 = vpop.permute.xlu0 %124
    %126 = vrot.lane.b32.xlu0 %v117, 96
    %v127 = vpop.permute.xlu0 %126
    %vm128 = vcmask 64512
    %v129 = vsel %vm128, %v112, 0
    %v131 = vsel %vm128, %v117, 0
    %v133 = vsel %vm128, %v125, 0
    %v135 = vsel %vm128, %v127, 0
    %137 = vmatprep.subr.mxu0 0.0
    %138 = vmatpush1.xpose.msra.mxu0 0.0
    %139 = vmatprep.subr.mxu0 0.0
    %140 = vmatpush1.xpose.msra.mxu0 0.0
    %141 = vmatprep.subr.mxu0 0.0
    %142 = vmatpush1.xpose.msra.mxu0 0.0
    %143 = vmatprep.subr.mxu0 0.0
    %144 = vmatpush1.xpose.msra.mxu0 0.0
    %145 = vmatprep.subr.mxu0 0.0
    %146 = vmatpush1.xpose.msra.mxu0 0.0
    %147 = vmatprep.subr.mxu0 0.0
    %148 = vmatpush1.xpose.msra.mxu0 0.0
    %149 = vmatprep.subr.mxu0 0.0
    %150 = vmatpush1.xpose.msra.mxu0 0.0
    %151 = vmatprep.subr.mxu0 0.0
    %152 = vmatpush1.xpose.msra.mxu0 0.0
    %153 = vmatprep.subr.mxu0 0.0
    %154 = vmatpush1.xpose.msra.mxu0 0.0
    %155 = vmatprep.subr.mxu0 0.0
    %156 = vmatpush1.xpose.msra.mxu0 0.0
    %157 = vmatprep.subr.mxu0 0.0
    %158 = vmatpush1.xpose.msra.mxu0 0.0
    %159 = vmatprep.subr.mxu0 0.0
    %160 = vmatpush1.xpose.msra.mxu0 0.0
    %161 = vmatprep.subr.mxu0 0.0
    %162 = vmatpush1.xpose.msra.mxu0 0.0
    %163 = vmatprep.subr.mxu0 0.0
    %164 = vmatpush1.xpose.msra.mxu0 0.0
    %165 = vmatprep.subr.mxu0 0.0
    %166 = vmatpush1.xpose.msra.mxu0 %v135
    %167 = vmatprep.subr.mxu0 0.0
    %168 = vmatpush1.xpose.msra.mxu0 %v133
    %169 = vmatprep.subr.mxu0 0.0
    %170 = vmatpush2.xpose.msra.mxu0 0.0
    %171 = vmatprep.subr.mxu0 0.0
    %172 = vmatpush2.xpose.msra.mxu0 0.0
    %173 = vmatprep.subr.mxu0 0.0
    %174 = vmatpush2.xpose.msra.mxu0 0.0
    %175 = vmatprep.subr.mxu0 0.0
    %176 = vmatpush2.xpose.msra.mxu0 0.0
    %177 = vmatprep.subr.mxu0 0.0
    %178 = vmatpush2.xpose.msra.mxu0 0.0
    %179 = vmatprep.subr.mxu0 0.0
    %180 = vmatpush2.xpose.msra.mxu0 0.0
    %181 = vmatprep.subr.mxu0 0.0
    %182 = vmatpush2.xpose.msra.mxu0 0.0
    %183 = vmatprep.subr.mxu0 0.0
    %184 = vmatpush2.xpose.msra.mxu0 0.0
    %185 = vmatprep.subr.mxu0 0.0
    %186 = vmatpush2.xpose.msra.mxu0 0.0
    %187 = vmatprep.subr.mxu0 0.0
    %188 = vmatpush2.xpose.msra.mxu0 0.0
    %189 = vmatprep.subr.mxu0 0.0
    %190 = vmatpush2.xpose.msra.mxu0 0.0
    %191 = vmatprep.subr.mxu0 0.0
    %192 = vmatpush2.xpose.msra.mxu0 0.0
    %193 = vmatprep.subr.mxu0 0.0
    %194 = vmatpush2.xpose.msra.mxu0 0.0
    %195 = vmatprep.subr.mxu0 0.0
    %196 = vmatpush2.xpose.msra.mxu0 0.0
    %197 = vmatprep.subr.mxu0 0.0
    %198 = vmatpush2.xpose.msra.mxu0 0.0
    %199 = vmatprep.subr.mxu0 0.0
    %200 = vmatpush2.xpose.msra.mxu0 0.0
    %201 = vmatprep.mubr.f32.mxu0 0.0
    %202 = vmatmul.mubr.f32.gmra.mxu0 %v129
    %v203 = vpop.f32.mrf.mxu0
    %v204 = vadd.f32 %v120, %v203
    %v205 = vpop.f32.mrf.mxu0
    %206 = vmatprep.mubr.f32.mxu0 0.0
    %207 = vmatmul.mubr.f32.gmra.mxu0 %v131
    %v208 = vpop.f32.mrf.mxu0
    %v209 = vadd.f32 %v121, %v208
    %v210 = vpop.f32.mrf.mxu0
    %211 = vdwg.mxu0
    %vm212 = vcmask 130048
    %v213 = vsel %vm212, %v204, -inf
    %214 = vmax.xlane.f32.xlu0 %v213
    %v215 = vpop.xlane.xlu0 %214
    %v216 = vsel %vm212, %v209, -inf
    %217 = vmax.xlane.f32.xlu0 %v216
    %v218 = vpop.xlane.xlu0 %217
    %v219 = vsub.f32 %v204, %v215
    %v220 = vsub.f32 %v209, %v218
    %v221 = vmul.f32 %v219, 1.442695
    %v222 = vpow.pop %v221
    %v223 = vmul.f32 %v220, 1.442695
    %v224 = vpow.pop %v223
    %v225 = vsel %vm212, %v222, 0.0
    %226 = vadd.xlane.f32.xlu0 %v225
    %v227 = vpop.xlane.xlu0 %226
    %v228 = vsel %vm212, %v224, 0.0
    %229 = vadd.xlane.f32.xlu0 %v228
    %v230 = vpop.xlane.xlu0 %229
    %v231 = vrcp.pop %v227
    %v232 = vmul.f32 %v222, %v231
    %v233 = vrcp.pop %v230
    %v234 = vmul.f32 %v224, %v233
    %235 = vrot.lane.b32.xlu0 %v112, 64
    %v236 = vpop.permute.xlu0 %235
    %237 = vrot.lane.b32.xlu0 %v117, 64
    %v238 = vpop.permute.xlu0 %237
    %v242 = vsel %vm212, %v232, 0
    %v245 = vsel %vm212, %v234, 0
    %247 = vmatprep.subr.mxu0 0.0
    %248 = vmatpush1.msra.mxu0 0.0
    %249 = vmatprep.subr.mxu0 0.0
    %250 = vmatpush1.msra.mxu0 0.0
    %251 = vmatprep.subr.mxu0 0.0
    %252 = vmatpush1.msra.mxu0 0.0
    %253 = vmatprep.subr.mxu0 0.0
    %254 = vmatpush1.msra.mxu0 0.0
    %255 = vmatprep.subr.mxu0 0.0
    %256 = vmatpush1.msra.mxu0 0.0
    %257 = vmatprep.subr.mxu0 0.0
    %258 = vmatpush1.msra.mxu0 0.0
    %259 = vmatprep.subr.mxu0 0.0
    %260 = vmatpush1.msra.mxu0 0.0
    %261 = vmatprep.subr.mxu0 0.0
    %262 = vmatpush1.msra.mxu0 0.0
    %263 = vmatprep.subr.mxu0 0.0
    %264 = vmatpush1.msra.mxu0 0.0
    %265 = vmatprep.subr.mxu0 0.0
    %266 = vmatpush1.msra.mxu0 0.0
    %267 = vmatprep.subr.mxu0 0.0
    %268 = vmatpush1.msra.mxu0 0.0
    %269 = vmatprep.subr.mxu0 0.0
    %270 = vmatpush1.msra.mxu0 0.0
    %271 = vmatprep.subr.mxu0 0.0
    %272 = vmatpush1.msra.mxu0 0.0
    %273 = vmatprep.subr.mxu0 0.0
    %274 = vmatpush1.msra.mxu0 0.0
    %275 = vmatprep.subr.mxu0 0.0
    %276 = vmatpush1.msra.mxu0 %v238
    %277 = vmatprep.subr.mxu0 0.0
    %278 = vmatpush1.msra.mxu0 %v236
    %279 = vmatprep.subr.mxu0 0.0
    %280 = vmatpush2.msra.mxu0 0.0
    %281 = vmatprep.subr.mxu0 0.0
    %282 = vmatpush2.msra.mxu0 0.0
    %283 = vmatprep.subr.mxu0 0.0
    %284 = vmatpush2.msra.mxu0 0.0
    %285 = vmatprep.subr.mxu0 0.0
    %286 = vmatpush2.msra.mxu0 0.0
    %287 = vmatprep.subr.mxu0 0.0
    %288 = vmatpush2.msra.mxu0 0.0
    %289 = vmatprep.subr.mxu0 0.0
    %290 = vmatpush2.msra.mxu0 0.0
    %291 = vmatprep.subr.mxu0 0.0
    %292 = vmatpush2.msra.mxu0 0.0
    %293 = vmatprep.subr.mxu0 0.0
    %294 = vmatpush2.msra.mxu0 0.0
    %295 = vmatprep.subr.mxu0 0.0
    %296 = vmatpush2.msra.mxu0 0.0
    %297 = vmatprep.subr.mxu0 0.0
    %298 = vmatpush2.msra.mxu0 0.0
    %299 = vmatprep.subr.mxu0 0.0
    %300 = vmatpush2.msra.mxu0 0.0
    %301 = vmatprep.subr.mxu0 0.0
    %302 = vmatpush2.msra.mxu0 0.0
    %303 = vmatprep.subr.mxu0 0.0
    %304 = vmatpush2.msra.mxu0 0.0
    %305 = vmatprep.subr.mxu0 0.0
    %306 = vmatpush2.msra.mxu0 0.0
    %307 = vmatprep.subr.mxu0 0.0
    %308 = vmatpush2.msra.mxu0 0.0
    %309 = vmatprep.subr.mxu0 0.0
    %310 = vmatpush2.msra.mxu0 0.0
    %311 = vmatprep.mubr.f32.mxu0 0.0
    %312 = vmatmul.mubr.f32.gmra.mxu0 %v242
    %v313 = vpop.f32.mrf.mxu0
    %v314 = vadd.f32 0.0, %v313
    %v315 = vpop.f32.mrf.mxu0
    %316 = vmatprep.mubr.f32.mxu0 0.0
    %317 = vmatmul.mubr.f32.gmra.mxu0 %v245
    %v318 = vpop.f32.mrf.mxu0
    %v319 = vadd.f32 0.0, %v318
    %v320 = vpop.f32.mrf.mxu0
    %321 = vdwg.mxu0
    %322 = vrot.lane.b32.xlu0 %v112, 120
    %v323 = vpop.permute.xlu0 %322
    %324 = vrot.lane.b32.xlu0 %v117, 120
    %v325 = vpop.permute.xlu0 %324
    %326 = vrot.lane.b32.xlu0 %v112, 88
    %v327 = vpop.permute.xlu0 %326
    %328 = vrot.lane.b32.xlu0 %v117, 88
    %v329 = vpop.permute.xlu0 %328
    %v330 = vsel %vm128, %v323, 0
    %v332 = vsel %vm128, %v325, 0
    %v334 = vsel %vm128, %v327, 0
    %v336 = vsel %vm128, %v329, 0
    %338 = vmatprep.subr.mxu0 0.0
    %339 = vmatpush1.xpose.msra.mxu0 0.0
    %340 = vmatprep.subr.mxu0 0.0
    %341 = vmatpush1.xpose.msra.mxu0 0.0
    %342 = vmatprep.subr.mxu0 0.0
    %343 = vmatpush1.xpose.msra.mxu0 0.0
    %344 = vmatprep.subr.mxu0 0.0
    %345 = vmatpush1.xpose.msra.mxu0 0.0
    %346 = vmatprep.subr.mxu0 0.0
    %347 = vmatpush1.xpose.msra.mxu0 0.0
    %348 = vmatprep.subr.mxu0 0.0
    %349 = vmatpush1.xpose.msra.mxu0 0.0
    %350 = vmatprep.subr.mxu0 0.0
    %351 = vmatpush1.xpose.msra.mxu0 0.0
    %352 = vmatprep.subr.mxu0 0.0
    %353 = vmatpush1.xpose.msra.mxu0 0.0
    %354 = vmatprep.subr.mxu0 0.0
    %355 = vmatpush1.xpose.msra.mxu0 0.0
    %356 = vmatprep.subr.mxu0 0.0
    %357 = vmatpush1.xpose.msra.mxu0 0.0
    %358 = vmatprep.subr.mxu0 0.0
    %359 = vmatpush1.xpose.msra.mxu0 0.0
    %360 = vmatprep.subr.mxu0 0.0
    %361 = vmatpush1.xpose.msra.mxu0 0.0
    %362 = vmatprep.subr.mxu0 0.0
    %363 = vmatpush1.xpose.msra.mxu0 0.0
    %364 = vmatprep.subr.mxu0 0.0
    %365 = vmatpush1.xpose.msra.mxu0 0.0
    %366 = vmatprep.subr.mxu0 0.0
    %367 = vmatpush1.xpose.msra.mxu0 %v336
    %368 = vmatprep.subr.mxu0 0.0
    %369 = vmatpush1.xpose.msra.mxu0 %v334
    %370 = vmatprep.subr.mxu0 0.0
    %371 = vmatpush2.xpose.msra.mxu0 0.0
    %372 = vmatprep.subr.mxu0 0.0
    %373 = vmatpush2.xpose.msra.mxu0 0.0
    %374 = vmatprep.subr.mxu0 0.0
    %375 = vmatpush2.xpose.msra.mxu0 0.0
    %376 = vmatprep.subr.mxu0 0.0
    %377 = vmatpush2.xpose.msra.mxu0 0.0
    %378 = vmatprep.subr.mxu0 0.0
    %379 = vmatpush2.xpose.msra.mxu0 0.0
    %380 = vmatprep.subr.mxu0 0.0
    %381 = vmatpush2.xpose.msra.mxu0 0.0
    %382 = vmatprep.subr.mxu0 0.0
    %383 = vmatpush2.xpose.msra.mxu0 0.0
    %384 = vmatprep.subr.mxu0 0.0
    %385 = vmatpush2.xpose.msra.mxu0 0.0
    %386 = vmatprep.subr.mxu0 0.0
    %387 = vmatpush2.xpose.msra.mxu0 0.0
    %388 = vmatprep.subr.mxu0 0.0
    %389 = vmatpush2.xpose.msra.mxu0 0.0
    %390 = vmatprep.subr.mxu0 0.0
    %391 = vmatpush2.xpose.msra.mxu0 0.0
    %392 = vmatprep.subr.mxu0 0.0
    %393 = vmatpush2.xpose.msra.mxu0 0.0
    %394 = vmatprep.subr.mxu0 0.0
    %395 = vmatpush2.xpose.msra.mxu0 0.0
    %396 = vmatprep.subr.mxu0 0.0
    %397 = vmatpush2.xpose.msra.mxu0 0.0
    %398 = vmatprep.subr.mxu0 0.0
    %399 = vmatpush2.xpose.msra.mxu0 0.0
    %400 = vmatprep.subr.mxu0 0.0
    %401 = vmatpush2.xpose.msra.mxu0 0.0
    %402 = vmatprep.mubr.f32.mxu0 0.0
    %403 = vmatmul.mubr.f32.gmra.mxu0 %v330
    %v404 = vpop.f32.mrf.mxu0
    %v405 = vadd.f32 %v120, %v404
    %v406 = vpop.f32.mrf.mxu0
    %407 = vmatprep.mubr.f32.mxu0 0.0
    %408 = vmatmul.mubr.f32.gmra.mxu0 %v332
    %v409 = vpop.f32.mrf.mxu0
    %v410 = vadd.f32 %v121, %v409
    %v411 = vpop.f32.mrf.mxu0
    %412 = vdwg.mxu0
    %v413 = vsel %vm212, %v405, -inf
    %414 = vmax.xlane.f32.xlu0 %v413
    %v415 = vpop.xlane.xlu0 %414
    %v416 = vsel %vm212, %v410, -inf
    %417 = vmax.xlane.f32.xlu0 %v416
    %v418 = vpop.xlane.xlu0 %417
    %v419 = vsub.f32 %v405, %v415
    %v420 = vsub.f32 %v410, %v418
    %v421 = vmul.f32 %v419, 1.442695
    %v422 = vpow.pop %v421
    %v423 = vmul.f32 %v420, 1.442695
    %v424 = vpow.pop %v423
    %v425 = vsel %vm212, %v422, 0.0
    %426 = vadd.xlane.f32.xlu0 %v425
    %v427 = vpop.xlane.xlu0 %426
    %v428 = vsel %vm212, %v424, 0.0
    %429 = vadd.xlane.f32.xlu0 %v428
    %v430 = vpop.xlane.xlu0 %429
    %v431 = vrcp.pop %v427
    %v432 = vmul.f32 %v422, %v431
    %v433 = vrcp.pop %v430
    %v434 = vmul.f32 %v424, %v433
    %435 = vrot.lane.b32.xlu0 %v112, 56
    %v436 = vpop.permute.xlu0 %435
    %437 = vrot.lane.b32.xlu0 %v117, 56
    %v438 = vpop.permute.xlu0 %437
    %v442 = vsel %vm212, %v432, 0
    %v445 = vsel %vm212, %v434, 0
    %447 = vmatprep.subr.mxu0 0.0
    %448 = vmatpush1.msra.mxu0 0.0
    %449 = vmatprep.subr.mxu0 0.0
    %450 = vmatpush1.msra.mxu0 0.0
    %451 = vmatprep.subr.mxu0 0.0
    %452 = vmatpush1.msra.mxu0 0.0
    %453 = vmatprep.subr.mxu0 0.0
    %454 = vmatpush1.msra.mxu0 0.0
    %455 = vmatprep.subr.mxu0 0.0
    %456 = vmatpush1.msra.mxu0 0.0
    %457 = vmatprep.subr.mxu0 0.0
    %458 = vmatpush1.msra.mxu0 0.0
    %459 = vmatprep.subr.mxu0 0.0
    %460 = vmatpush1.msra.mxu0 0.0
    %461 = vmatprep.subr.mxu0 0.0
    %462 = vmatpush1.msra.mxu0 0.0
    %463 = vmatprep.subr.mxu0 0.0
    %464 = vmatpush1.msra.mxu0 0.0
    %465 = vmatprep.subr.mxu0 0.0
    %466 = vmatpush1.msra.mxu0 0.0
    %467 = vmatprep.subr.mxu0 0.0
    %468 = vmatpush1.msra.mxu0 0.0
    %469 = vmatprep.subr.mxu0 0.0
    %470 = vmatpush1.msra.mxu0 0.0
    %471 = vmatprep.subr.mxu0 0.0
    %472 = vmatpush1.msra.mxu0 0.0
    %473 = vmatprep.subr.mxu0 0.0
    %474 = vmatpush1.msra.mxu0 0.0
    %475 = vmatprep.subr.mxu0 0.0
    %476 = vmatpush1.msra.mxu0 %v438
    %477 = vmatprep.subr.mxu0 0.0
    %478 = vmatpush1.msra.mxu0 %v436
    %479 = vmatprep.subr.mxu0 0.0
    %480 = vmatpush2.msra.mxu0 0.0
    %481 = vmatprep.subr.mxu0 0.0
    %482 = vmatpush2.msra.mxu0 0.0
    %483 = vmatprep.subr.mxu0 0.0
    %484 = vmatpush2.msra.mxu0 0.0
    %485 = vmatprep.subr.mxu0 0.0
    %486 = vmatpush2.msra.mxu0 0.0
    %487 = vmatprep.subr.mxu0 0.0
    %488 = vmatpush2.msra.mxu0 0.0
    %489 = vmatprep.subr.mxu0 0.0
    %490 = vmatpush2.msra.mxu0 0.0
    %491 = vmatprep.subr.mxu0 0.0
    %492 = vmatpush2.msra.mxu0 0.0
    %493 = vmatprep.subr.mxu0 0.0
    %494 = vmatpush2.msra.mxu0 0.0
    %495 = vmatprep.subr.mxu0 0.0
    %496 = vmatpush2.msra.mxu0 0.0
    %497 = vmatprep.subr.mxu0 0.0
    %498 = vmatpush2.msra.mxu0 0.0
    %499 = vmatprep.subr.mxu0 0.0
    %500 = vmatpush2.msra.mxu0 0.0
    %501 = vmatprep.subr.mxu0 0.0
    %502 = vmatpush2.msra.mxu0 0.0
    %503 = vmatprep.subr.mxu0 0.0
    %504 = vmatpush2.msra.mxu0 0.0
    %505 = vmatprep.subr.mxu0 0.0
    %506 = vmatpush2.msra.mxu0 0.0
    %507 = vmatprep.subr.mxu0 0.0
    %508 = vmatpush2.msra.mxu0 0.0
    %509 = vmatprep.subr.mxu0 0.0
    %510 = vmatpush2.msra.mxu0 0.0
    %511 = vmatprep.mubr.f32.mxu0 0.0
    %512 = vmatmul.mubr.f32.gmra.mxu0 %v442
    %v513 = vpop.f32.mrf.mxu0
    %v514 = vadd.f32 0.0, %v513
    %v515 = vpop.f32.mrf.mxu0
    %516 = vmatprep.mubr.f32.mxu0 0.0
    %517 = vmatmul.mubr.f32.gmra.mxu0 %v445
    %v518 = vpop.f32.mrf.mxu0
    %v519 = vadd.f32 0.0, %v518
    %v520 = vpop.f32.mrf.mxu0
    %521 = vdwg.mxu0
    %522 = vrot.lane.b32.xlu0 %v112, 112
    %v523 = vpop.permute.xlu0 %522
    %524 = vrot.lane.b32.xlu0 %v117, 112
    %v525 = vpop.permute.xlu0 %524
    %526 = vrot.lane.b32.xlu0 %v112, 80
    %v527 = vpop.permute.xlu0 %526
    %528 = vrot.lane.b32.xlu0 %v117, 80
    %v529 = vpop.permute.xlu0 %528
    %v530 = vsel %vm128, %v523, 0
    %v532 = vsel %vm128, %v525, 0
    %v534 = vsel %vm128, %v527, 0
    %v536 = vsel %vm128, %v529, 0
    %538 = vmatprep.subr.mxu0 0.0
    %539 = vmatpush1.xpose.msra.mxu0 0.0
    %540 = vmatprep.subr.mxu0 0.0
    %541 = vmatpush1.xpose.msra.mxu0 0.0
    %542 = vmatprep.subr.mxu0 0.0
    %543 = vmatpush1.xpose.msra.mxu0 0.0
    %544 = vmatprep.subr.mxu0 0.0
    %545 = vmatpush1.xpose.msra.mxu0 0.0
    %546 = vmatprep.subr.mxu0 0.0
    %547 = vmatpush1.xpose.msra.mxu0 0.0
    %548 = vmatprep.subr.mxu0 0.0
    %549 = vmatpush1.xpose.msra.mxu0 0.0
    %550 = vmatprep.subr.mxu0 0.0
    %551 = vmatpush1.xpose.msra.mxu0 0.0
    %552 = vmatprep.subr.mxu0 0.0
    %553 = vmatpush1.xpose.msra.mxu0 0.0
    %554 = vmatprep.subr.mxu0 0.0
    %555 = vmatpush1.xpose.msra.mxu0 0.0
    %556 = vmatprep.subr.mxu0 0.0
    %557 = vmatpush1.xpose.msra.mxu0 0.0
    %558 = vmatprep.subr.mxu0 0.0
    %559 = vmatpush1.xpose.msra.mxu0 0.0
    %560 = vmatprep.subr.mxu0 0.0
    %561 = vmatpush1.xpose.msra.mxu0 0.0
    %562 = vmatprep.subr.mxu0 0.0
    %563 = vmatpush1.xpose.msra.mxu0 0.0
    %564 = vmatprep.subr.mxu0 0.0
    %565 = vmatpush1.xpose.msra.mxu0 0.0
    %566 = vmatprep.subr.mxu0 0.0
    %567 = vmatpush1.xpose.msra.mxu0 %v536
    %568 = vmatprep.subr.mxu0 0.0
    %569 = vmatpush1.xpose.msra.mxu0 %v534
    %570 = vmatprep.subr.mxu0 0.0
    %571 = vmatpush2.xpose.msra.mxu0 0.0
    %572 = vmatprep.subr.mxu0 0.0
    %573 = vmatpush2.xpose.msra.mxu0 0.0
    %574 = vmatprep.subr.mxu0 0.0
    %575 = vmatpush2.xpose.msra.mxu0 0.0
    %576 = vmatprep.subr.mxu0 0.0
    %577 = vmatpush2.xpose.msra.mxu0 0.0
    %578 = vmatprep.subr.mxu0 0.0
    %579 = vmatpush2.xpose.msra.mxu0 0.0
    %580 = vmatprep.subr.mxu0 0.0
    %581 = vmatpush2.xpose.msra.mxu0 0.0
    %582 = vmatprep.subr.mxu0 0.0
    %583 = vmatpush2.xpose.msra.mxu0 0.0
    %584 = vmatprep.subr.mxu0 0.0
    %585 = vmatpush2.xpose.msra.mxu0 0.0
    %586 = vmatprep.subr.mxu0 0.0
    %587 = vmatpush2.xpose.msra.mxu0 0.0
    %588 = vmatprep.subr.mxu0 0.0
    %589 = vmatpush2.xpose.msra.mxu0 0.0
    %590 = vmatprep.subr.mxu0 0.0
    %591 = vmatpush2.xpose.msra.mxu0 0.0
    %592 = vmatprep.subr.mxu0 0.0
    %593 = vmatpush2.xpose.msra.mxu0 0.0
    %594 = vmatprep.subr.mxu0 0.0
    %595 = vmatpush2.xpose.msra.mxu0 0.0
    %596 = vmatprep.subr.mxu0 0.0
    %597 = vmatpush2.xpose.msra.mxu0 0.0
    %598 = vmatprep.subr.mxu0 0.0
    %599 = vmatpush2.xpose.msra.mxu0 0.0
    %600 = vmatprep.subr.mxu0 0.0
    %601 = vmatpush2.xpose.msra.mxu0 0.0
    %602 = vmatprep.mubr.f32.mxu0 0.0
    %603 = vmatmul.mubr.f32.gmra.mxu0 %v530
    %v604 = vpop.f32.mrf.mxu0
    %v605 = vadd.f32 %v120, %v604
    %v606 = vpop.f32.mrf.mxu0
    %607 = vmatprep.mubr.f32.mxu0 0.0
    %608 = vmatmul.mubr.f32.gmra.mxu0 %v532
    %v609 = vpop.f32.mrf.mxu0
    %v610 = vadd.f32 %v121, %v609
    %v611 = vpop.f32.mrf.mxu0
    %612 = vdwg.mxu0
    %v613 = vsel %vm212, %v605, -inf
    %614 = vmax.xlane.f32.xlu0 %v613
    %v615 = vpop.xlane.xlu0 %614
    %v616 = vsel %vm212, %v610, -inf
    %617 = vmax.xlane.f32.xlu0 %v616
    %v618 = vpop.xlane.xlu0 %617
    %v619 = vsub.f32 %v605, %v615
    %v620 = vsub.f32 %v610, %v618
    %v621 = vmul.f32 %v619, 1.442695
    %v622 = vpow.pop %v621
    %v623 = vmul.f32 %v620, 1.442695
    %v624 = vpow.pop %v623
    %v625 = vsel %vm212, %v622, 0.0
    %626 = vadd.xlane.f32.xlu0 %v625
    %v627 = vpop.xlane.xlu0 %626
    %v628 = vsel %vm212, %v624, 0.0
    %629 = vadd.xlane.f32.xlu0 %v628
    %v630 = vpop.xlane.xlu0 %629
    %v631 = vrcp.pop %v627
    %v632 = vmul.f32 %v622, %v631
    %v633 = vrcp.pop %v630
    %v634 = vmul.f32 %v624, %v633
    %635 = vrot.lane.b32.xlu0 %v112, 48
    %v636 = vpop.permute.xlu0 %635
    %637 = vrot.lane.b32.xlu0 %v117, 48
    %v638 = vpop.permute.xlu0 %637
    %v642 = vsel %vm212, %v632, 0
    %v645 = vsel %vm212, %v634, 0
    %647 = vmatprep.subr.mxu0 0.0
    %648 = vmatpush1.msra.mxu0 0.0
    %649 = vmatprep.subr.mxu0 0.0
    %650 = vmatpush1.msra.mxu0 0.0
    %651 = vmatprep.subr.mxu0 0.0
    %652 = vmatpush1.msra.mxu0 0.0
    %653 = vmatprep.subr.mxu0 0.0
    %654 = vmatpush1.msra.mxu0 0.0
    %655 = vmatprep.subr.mxu0 0.0
    %656 = vmatpush1.msra.mxu0 0.0
    %657 = vmatprep.subr.mxu0 0.0
    %658 = vmatpush1.msra.mxu0 0.0
    %659 = vmatprep.subr.mxu0 0.0
    %660 = vmatpush1.msra.mxu0 0.0
    %661 = vmatprep.subr.mxu0 0.0
    %662 = vmatpush1.msra.mxu0 0.0
    %663 = vmatprep.subr.mxu0 0.0
    %664 = vmatpush1.msra.mxu0 0.0
    %665 = vmatprep.subr.mxu0 0.0
    %666 = vmatpush1.msra.mxu0 0.0
    %667 = vmatprep.subr.mxu0 0.0
    %668 = vmatpush1.msra.mxu0 0.0
    %669 = vmatprep.subr.mxu0 0.0
    %670 = vmatpush1.msra.mxu0 0.0
    %671 = vmatprep.subr.mxu0 0.0
    %672 = vmatpush1.msra.mxu0 0.0
    %673 = vmatprep.subr.mxu0 0.0
    %674 = vmatpush1.msra.mxu0 0.0
    %675 = vmatprep.subr.mxu0 0.0
    %676 = vmatpush1.msra.mxu0 %v638
    %677 = vmatprep.subr.mxu0 0.0
    %678 = vmatpush1.msra.mxu0 %v636
    %679 = vmatprep.subr.mxu0 0.0
    %680 = vmatpush2.msra.mxu0 0.0
    %681 = vmatprep.subr.mxu0 0.0
    %682 = vmatpush2.msra.mxu0 0.0
    %683 = vmatprep.subr.mxu0 0.0
    %684 = vmatpush2.msra.mxu0 0.0
    %685 = vmatprep.subr.mxu0 0.0
    %686 = vmatpush2.msra.mxu0 0.0
    %687 = vmatprep.subr.mxu0 0.0
    %688 = vmatpush2.msra.mxu0 0.0
    %689 = vmatprep.subr.mxu0 0.0
    %690 = vmatpush2.msra.mxu0 0.0
    %691 = vmatprep.subr.mxu0 0.0
    %692 = vmatpush2.msra.mxu0 0.0
    %693 = vmatprep.subr.mxu0 0.0
    %694 = vmatpush2.msra.mxu0 0.0
    %695 = vmatprep.subr.mxu0 0.0
    %696 = vmatpush2.msra.mxu0 0.0
    %697 = vmatprep.subr.mxu0 0.0
    %698 = vmatpush2.msra.mxu0 0.0
    %699 = vmatprep.subr.mxu0 0.0
    %700 = vmatpush2.msra.mxu0 0.0
    %701 = vmatprep.subr.mxu0 0.0
    %702 = vmatpush2.msra.mxu0 0.0
    %703 = vmatprep.subr.mxu0 0.0
    %704 = vmatpush2.msra.mxu0 0.0
    %705 = vmatprep.subr.mxu0 0.0
    %706 = vmatpush2.msra.mxu0 0.0
    %707 = vmatprep.subr.mxu0 0.0
    %708 = vmatpush2.msra.mxu0 0.0
    %709 = vmatprep.subr.mxu0 0.0
    %710 = vmatpush2.msra.mxu0 0.0
    %711 = vmatprep.mubr.f32.mxu0 0.0
    %712 = vmatmul.mubr.f32.gmra.mxu0 %v642
    %v713 = vpop.f32.mrf.mxu0
    %v714 = vadd.f32 0.0, %v713
    %v715 = vpop.f32.mrf.mxu0
    %716 = vmatprep.mubr.f32.mxu0 0.0
    %717 = vmatmul.mubr.f32.gmra.mxu0 %v645
    %v718 = vpop.f32.mrf.mxu0
    %v719 = vadd.f32 0.0, %v718
    %v720 = vpop.f32.mrf.mxu0
    %721 = vdwg.mxu0
    %722 = vrot.lane.b32.xlu0 %v112, 104
    %v723 = vpop.permute.xlu0 %722
    %724 = vrot.lane.b32.xlu0 %v117, 104
    %v725 = vpop.permute.xlu0 %724
    %726 = vrot.lane.b32.xlu0 %v112, 72
    %v727 = vpop.permute.xlu0 %726
    %728 = vrot.lane.b32.xlu0 %v117, 72
    %v729 = vpop.permute.xlu0 %728
    %v730 = vsel %vm128, %v723, 0
    %v732 = vsel %vm128, %v725, 0
    %v734 = vsel %vm128, %v727, 0
    %v736 = vsel %vm128, %v729, 0
    %738 = vmatprep.subr.mxu0 0.0
    %739 = vmatpush1.xpose.msra.mxu0 0.0
    %740 = vmatprep.subr.mxu0 0.0
    %741 = vmatpush1.xpose.msra.mxu0 0.0
    %742 = vmatprep.subr.mxu0 0.0
    %743 = vmatpush1.xpose.msra.mxu0 0.0
    %744 = vmatprep.subr.mxu0 0.0
    %745 = vmatpush1.xpose.msra.mxu0 0.0
    %746 = vmatprep.subr.mxu0 0.0
    %747 = vmatpush1.xpose.msra.mxu0 0.0
    %748 = vmatprep.subr.mxu0 0.0
    %749 = vmatpush1.xpose.msra.mxu0 0.0
    %750 = vmatprep.subr.mxu0 0.0
    %751 = vmatpush1.xpose.msra.mxu0 0.0
    %752 = vmatprep.subr.mxu0 0.0
    %753 = vmatpush1.xpose.msra.mxu0 0.0
    %754 = vmatprep.subr.mxu0 0.0
    %755 = vmatpush1.xpose.msra.mxu0 0.0
    %756 = vmatprep.subr.mxu0 0.0
    %757 = vmatpush1.xpose.msra.mxu0 0.0
    %758 = vmatprep.subr.mxu0 0.0
    %759 = vmatpush1.xpose.msra.mxu0 0.0
    %760 = vmatprep.subr.mxu0 0.0
    %761 = vmatpush1.xpose.msra.mxu0 0.0
    %762 = vmatprep.subr.mxu0 0.0
    %763 = vmatpush1.xpose.msra.mxu0 0.0
    %764 = vmatprep.subr.mxu0 0.0
    %765 = vmatpush1.xpose.msra.mxu0 0.0
    %766 = vmatprep.subr.mxu0 0.0
    %767 = vmatpush1.xpose.msra.mxu0 %v736
    %768 = vmatprep.subr.mxu0 0.0
    %769 = vmatpush1.xpose.msra.mxu0 %v734
    %770 = vmatprep.subr.mxu0 0.0
    %771 = vmatpush2.xpose.msra.mxu0 0.0
    %772 = vmatprep.subr.mxu0 0.0
    %773 = vmatpush2.xpose.msra.mxu0 0.0
    %774 = vmatprep.subr.mxu0 0.0
    %775 = vmatpush2.xpose.msra.mxu0 0.0
    %776 = vmatprep.subr.mxu0 0.0
    %777 = vmatpush2.xpose.msra.mxu0 0.0
    %778 = vmatprep.subr.mxu0 0.0
    %779 = vmatpush2.xpose.msra.mxu0 0.0
    %780 = vmatprep.subr.mxu0 0.0
    %781 = vmatpush2.xpose.msra.mxu0 0.0
    %782 = vmatprep.subr.mxu0 0.0
    %783 = vmatpush2.xpose.msra.mxu0 0.0
    %784 = vmatprep.subr.mxu0 0.0
    %785 = vmatpush2.xpose.msra.mxu0 0.0
    %786 = vmatprep.subr.mxu0 0.0
    %787 = vmatpush2.xpose.msra.mxu0 0.0
    %788 = vmatprep.subr.mxu0 0.0
    %789 = vmatpush2.xpose.msra.mxu0 0.0
    %790 = vmatprep.subr.mxu0 0.0
    %791 = vmatpush2.xpose.msra.mxu0 0.0
    %792 = vmatprep.subr.mxu0 0.0
    %793 = vmatpush2.xpose.msra.mxu0 0.0
    %794 = vmatprep.subr.mxu0 0.0
    %795 = vmatpush2.xpose.msra.mxu0 0.0
    %796 = vmatprep.subr.mxu0 0.0
    %797 = vmatpush2.xpose.msra.mxu0 0.0
    %798 = vmatprep.subr.mxu0 0.0
    %799 = vmatpush2.xpose.msra.mxu0 0.0
    %800 = vmatprep.subr.mxu0 0.0
    %801 = vmatpush2.xpose.msra.mxu0 0.0
    %802 = vmatprep.mubr.f32.mxu0 0.0
    %803 = vmatmul.mubr.f32.gmra.mxu0 %v730
    %v804 = vpop.f32.mrf.mxu0
    %v805 = vadd.f32 %v120, %v804
    %v806 = vpop.f32.mrf.mxu0
    %807 = vmatprep.mubr.f32.mxu0 0.0
    %808 = vmatmul.mubr.f32.gmra.mxu0 %v732
    %v809 = vpop.f32.mrf.mxu0
    %v810 = vadd.f32 %v121, %v809
    %v811 = vpop.f32.mrf.mxu0
    %812 = vdwg.mxu0
    %v813 = vsel %vm212, %v805, -inf
    %814 = vmax.xlane.f32.xlu0 %v813
    %v815 = vpop.xlane.xlu0 %814
    %v816 = vsel %vm212, %v810, -inf
    %817 = vmax.xlane.f32.xlu0 %v816
    %v818 = vpop.xlane.xlu0 %817
    %v819 = vsub.f32 %v805, %v815
    %v820 = vsub.f32 %v810, %v818
    %v821 = vmul.f32 %v819, 1.442695
    %v822 = vpow.pop %v821
    %v823 = vmul.f32 %v820, 1.442695
    %v824 = vpow.pop %v823
    %v825 = vsel %vm212, %v822, 0.0
    %826 = vadd.xlane.f32.xlu0 %v825
    %v827 = vpop.xlane.xlu0 %826
    %v828 = vsel %vm212, %v824, 0.0
    %829 = vadd.xlane.f32.xlu0 %v828
    %v830 = vpop.xlane.xlu0 %829
    %v831 = vrcp.pop %v827
    %v832 = vmul.f32 %v822, %v831
    %v833 = vrcp.pop %v830
    %v834 = vmul.f32 %v824, %v833
    %835 = vrot.lane.b32.xlu0 %v112, 40
    %v836 = vpop.permute.xlu0 %835
    %837 = vrot.lane.b32.xlu0 %v117, 40
    %v838 = vpop.permute.xlu0 %837
    %v842 = vsel %vm212, %v832, 0
    %v845 = vsel %vm212, %v834, 0
    %847 = vmatprep.subr.mxu0 0.0
    %848 = vmatpush1.msra.mxu0 0.0
    %849 = vmatprep.subr.mxu0 0.0
    %850 = vmatpush1.msra.mxu0 0.0
    %851 = vmatprep.subr.mxu0 0.0
    %852 = vmatpush1.msra.mxu0 0.0
    %853 = vmatprep.subr.mxu0 0.0
    %854 = vmatpush1.msra.mxu0 0.0
    %855 = vmatprep.subr.mxu0 0.0
    %856 = vmatpush1.msra.mxu0 0.0
    %857 = vmatprep.subr.mxu0 0.0
    %858 = vmatpush1.msra.mxu0 0.0
    %859 = vmatprep.subr.mxu0 0.0
    %860 = vmatpush1.msra.mxu0 0.0
    %861 = vmatprep.subr.mxu0 0.0
    %862 = vmatpush1.msra.mxu0 0.0
    %863 = vmatprep.subr.mxu0 0.0
    %864 = vmatpush1.msra.mxu0 0.0
    %865 = vmatprep.subr.mxu0 0.0
    %866 = vmatpush1.msra.mxu0 0.0
    %867 = vmatprep.subr.mxu0 0.0
    %868 = vmatpush1.msra.mxu0 0.0
    %869 = vmatprep.subr.mxu0 0.0
    %870 = vmatpush1.msra.mxu0 0.0
    %871 = vmatprep.subr.mxu0 0.0
    %872 = vmatpush1.msra.mxu0 0.0
    %873 = vmatprep.subr.mxu0 0.0
    %874 = vmatpush1.msra.mxu0 0.0
    %875 = vmatprep.subr.mxu0 0.0
    %876 = vmatpush1.msra.mxu0 %v838
    %877 = vmatprep.subr.mxu0 0.0
    %878 = vmatpush1.msra.mxu0 %v836
    %879 = vmatprep.subr.mxu0 0.0
    %880 = vmatpush2.msra.mxu0 0.0
    %881 = vmatprep.subr.mxu0 0.0
    %882 = vmatpush2.msra.mxu0 0.0
    %883 = vmatprep.subr.mxu0 0.0
    %884 = vmatpush2.msra.mxu0 0.0
    %885 = vmatprep.subr.mxu0 0.0
    %886 = vmatpush2.msra.mxu0 0.0
    %887 = vmatprep.subr.mxu0 0.0
    %888 = vmatpush2.msra.mxu0 0.0
    %889 = vmatprep.subr.mxu0 0.0
    %890 = vmatpush2.msra.mxu0 0.0
    %891 = vmatprep.subr.mxu0 0.0
    %892 = vmatpush2.msra.mxu0 0.0
    %893 = vmatprep.subr.mxu0 0.0
    %894 = vmatpush2.msra.mxu0 0.0
    %895 = vmatprep.subr.mxu0 0.0
    %896 = vmatpush2.msra.mxu0 0.0
    %897 = vmatprep.subr.mxu0 0.0
    %898 = vmatpush2.msra.mxu0 0.0
    %899 = vmatprep.subr.mxu0 0.0
    %900 = vmatpush2.msra.mxu0 0.0
    %901 = vmatprep.subr.mxu0 0.0
    %902 = vmatpush2.msra.mxu0 0.0
    %903 = vmatprep.subr.mxu0 0.0
    %904 = vmatpush2.msra.mxu0 0.0
    %905 = vmatprep.subr.mxu0 0.0
    %906 = vmatpush2.msra.mxu0 0.0
    %907 = vmatprep.subr.mxu0 0.0
    %908 = vmatpush2.msra.mxu0 0.0
    %909 = vmatprep.subr.mxu0 0.0
    %910 = vmatpush2.msra.mxu0 0.0
    %911 = vmatprep.mubr.f32.mxu0 0.0
    %912 = vmatmul.mubr.f32.gmra.mxu0 %v842
    %v913 = vpop.f32.mrf.mxu0
    %v914 = vadd.f32 0.0, %v913
    %v915 = vpop.f32.mrf.mxu0
    %916 = vmatprep.mubr.f32.mxu0 0.0
    %917 = vmatmul.mubr.f32.gmra.mxu0 %v845
    %v918 = vpop.f32.mrf.mxu0
    %v919 = vadd.f32 0.0, %v918
    %v920 = vpop.f32.mrf.mxu0
    %921 = vdwg.mxu0
    %924 = vrot.lane.b32.xlu0 %v514, 8
    %v925 = vpop.permute.xlu0 %924
    %926 = vrot.lane.b32.xlu0 %v519, 8
    %v927 = vpop.permute.xlu0 %926
    %932 = vrot.lane.b32.xlu0 %v714, 16
    %v933 = vpop.permute.xlu0 %932
    %934 = vrot.lane.b32.xlu0 %v719, 16
    %v935 = vpop.permute.xlu0 %934
    %940 = vrot.lane.b32.xlu0 %v914, 24
    %v941 = vpop.permute.xlu0 %940
    %942 = vrot.lane.b32.xlu0 %v919, 24
    %v943 = vpop.permute.xlu0 %942
    %v946 = vsel %vm128, %v314, %v925
    %v947 = vsel %vm128, %v319, %v927
    %v948 = vsel %vm212, %v946, %v933
    %v949 = vsel %vm212, %v947, %v935
    %vm950 = vcmask 195584
    %v951 = vsel %vm950, %v948, %v941
    %v952 = vsel %vm950, %v949, %v943
    %v953 = vld [vmem:[%s6 + $0x20] sm:$0xff]
    %v954 = vld [vmem:[%s6 + $0x28] sm:$0xff]
    %v955 = vld [vmem:[%s6 + $0x30] sm:$0xff]
    %v956 = vld [vmem:[%s6 + $0x38] sm:$0xff]
    %v957 = vld [vmem:[%s6 + $0x161] sm:$0x1]
    %v958 = vlaneseq
    %v959 = vshrl.u32 %v958, 7
    %v960 = vsub.s32 0, %v959
    %v961 = vrot.slane %v957, %v960
    %v963 = vsel %vm38, %v951, 0
    %v966 = vsel %vm38, %v952, 0
    %968 = vmatprep.subr.mxu0 0.0
    %969 = vmatpush1.msra.mxu0 0.0
    %970 = vmatprep.subr.mxu0 0.0
    %971 = vmatpush1.msra.mxu0 0.0
    %972 = vmatprep.subr.mxu0 0.0
    %973 = vmatpush1.msra.mxu0 0.0
    %974 = vmatprep.subr.mxu0 0.0
    %975 = vmatpush1.msra.mxu0 0.0
    %976 = vmatprep.subr.mxu0 0.0
    %977 = vmatpush1.msra.mxu0 0.0
    %978 = vmatprep.subr.mxu0 0.0
    %979 = vmatpush1.msra.mxu0 0.0
    %980 = vmatprep.subr.mxu0 0.0
    %981 = vmatpush1.msra.mxu0 0.0
    %982 = vmatprep.subr.mxu0 0.0
    %983 = vmatpush1.msra.mxu0 0.0
    %984 = vmatprep.subr.mxu0 0.0
    %985 = vmatpush1.msra.mxu0 0.0
    %986 = vmatprep.subr.mxu0 0.0
    %987 = vmatpush1.msra.mxu0 0.0
    %988 = vmatprep.subr.mxu0 0.0
    %989 = vmatpush1.msra.mxu0 0.0
    %990 = vmatprep.subr.mxu0 0.0
    %991 = vmatpush1.msra.mxu0 0.0
    %992 = vmatprep.subr.mxu0 0.0
    %993 = vmatpush1.msra.mxu0 %v956
    %994 = vmatprep.subr.mxu0 0.0
    %995 = vmatpush1.msra.mxu0 %v955
    %996 = vmatprep.subr.mxu0 0.0
    %997 = vmatpush1.msra.mxu0 %v954
    %998 = vmatprep.subr.mxu0 0.0
    %999 = vmatpush1.msra.mxu0 %v953
    %1000 = vmatprep.subr.mxu0 0.0
    %1001 = vmatpush2.msra.mxu0 0.0
    %1002 = vmatprep.subr.mxu0 0.0
    %1003 = vmatpush2.msra.mxu0 0.0
    %1004 = vmatprep.subr.mxu0 0.0
    %1005 = vmatpush2.msra.mxu0 0.0
    %1006 = vmatprep.subr.mxu0 0.0
    %1007 = vmatpush2.msra.mxu0 0.0
    %1008 = vmatprep.subr.mxu0 0.0
    %1009 = vmatpush2.msra.mxu0 0.0
    %1010 = vmatprep.subr.mxu0 0.0
    %1011 = vmatpush2.msra.mxu0 0.0
    %1012 = vmatprep.subr.mxu0 0.0
    %1013 = vmatpush2.msra.mxu0 0.0
    %1014 = vmatprep.subr.mxu0 0.0
    %1015 = vmatpush2.msra.mxu0 0.0
    %1016 = vmatprep.subr.mxu0 0.0
    %1017 = vmatpush2.msra.mxu0 0.0
    %1018 = vmatprep.subr.mxu0 0.0
    %1019 = vmatpush2.msra.mxu0 0.0
    %1020 = vmatprep.subr.mxu0 0.0
    %1021 = vmatpush2.msra.mxu0 0.0
    %1022 = vmatprep.subr.mxu0 0.0
    %1023 = vmatpush2.msra.mxu0 0.0
    %1024 = vmatprep.subr.mxu0 0.0
    %1025 = vmatpush2.msra.mxu0 0.0
    %1026 = vmatprep.subr.mxu0 0.0
    %1027 = vmatpush2.msra.mxu0 0.0
    %1028 = vmatprep.subr.mxu0 0.0
    %1029 = vmatpush2.msra.mxu0 0.0
    %1030 = vmatprep.subr.mxu0 0.0
    %1031 = vmatpush2.msra.mxu0 0.0
    %1032 = vmatprep.mubr.f32.mxu0 0.0
    %1033 = vmatmul.mubr.f32.gmra.mxu0 %v963
    %v1034 = vpop.f32.mrf.mxu0
    %v1035 = vadd.f32 %v961, %v1034
    %v1036 = vpop.f32.mrf.mxu0
    %1037 = vmatprep.mubr.f32.mxu0 0.0
    %1038 = vmatmul.mubr.f32.gmra.mxu0 %v966
    %v1039 = vpop.f32.mrf.mxu0
    %v1040 = vadd.f32 %v961, %v1039
    %v1041 = vpop.f32.mrf.mxu0
    %1042 = vdwg.mxu0
    %v1043 = vadd.f32 %v27, %v1035
    %v1044 = vadd.f32 %v28, %v1040
    %v1045 = vsel %vm38, %v1043, 0.0
    %1046 = vadd.xlane.f32.xlu0 %v1045
    %v1047 = vpop.xlane.xlu0 %1046
    %v1048 = vsel %vm38, %v1044, 0.0
    %1049 = vadd.xlane.f32.xlu0 %v1048
    %v1050 = vpop.xlane.xlu0 %1049
    %v1051 = vrcp.pop 32.0
    %v1052 = vmul.f32 %v1047, %v1051
    %v1053 = vmul.f32 %v1050, %v1051
    %v1054 = vsub.f32 %v1043, %v1052
    %v1055 = vsub.f32 %v1044, %v1053
    %v1056 = vmul.f32 %v1054, %v1054
    %v1057 = vmul.f32 %v1055, %v1055
    %v1058 = vsel %vm38, %v1056, 0.0
    %1059 = vadd.xlane.f32.xlu0 %v1058
    %v1060 = vpop.xlane.xlu0 %1059
    %v1061 = vsel %vm38, %v1057, 0.0
    %1062 = vadd.xlane.f32.xlu0 %v1061
    %v1063 = vpop.xlane.xlu0 %1062
    %v1064 = vmul.f32 %v1060, %v1051
    %v1065 = vmul.f32 %v1063, %v1051
    %v1066 = vadd.f32 %v1064, 1e-05
    %v1067 = vadd.f32 %v1065, 1e-05
    %v1068 = vrsqrt.pop %v1066
    %v1069 = vrsqrt.pop %v1067
    %v1070 = vmul.f32 %v1054, %v1068
    %v1071 = vmul.f32 %v1055, %v1069
    %v1072 = vld [vmem:[%s6 + $0x16a] sm:$0x1]
    %v1073 = vlaneseq
    %v1074 = vshrl.u32 %v1073, 7
    %v1075 = vsub.s32 0, %v1074
    %v1076 = vrot.slane %v1072, %v1075
    %v1077 = vmul.f32 %v1070, %v1076
    %v1078 = vmul.f32 %v1071, %v1076
    %v1079 = vld [vmem:[%s6 + $0x16b] sm:$0x1]
    %v1080 = vlaneseq
    %v1081 = vshrl.u32 %v1080, 7
    %v1082 = vsub.s32 0, %v1081
    %v1083 = vrot.slane %v1079, %v1082
    %v1084 = vadd.f32 %v1077, %v1083
    %v1085 = vadd.f32 %v1078, %v1083
    %v1086 = vld [vmem:[%s2] sm:$0xff]
    %v1087 = vld [vmem:[%s2 + $0x8] sm:$0xff]
    %v1088 = vld [vmem:[%s2 + $0x10] sm:$0xff]
    %v1089 = vld [vmem:[%s2 + $0x18] sm:$0xff]
    %v1090 = vld [vmem:[%s3] sm:$0xff]
    %v1091 = vld [vmem:[%s3 + $0x8] sm:$0xff]
    %v1092 = vld [vmem:[%s6 + $0x40] sm:$0xff]
    %v1093 = vld [vmem:[%s6 + $0x48] sm:$0xff]
    %v1094 = vld [vmem:[%s6 + $0x50] sm:$0xff]
    %v1095 = vld [vmem:[%s6 + $0x58] sm:$0xff]
    %v1096 = vld [vmem:[%s6 + $0x162] sm:$0x1]
    %v1097 = vlaneseq
    %v1098 = vshrl.u32 %v1097, 7
    %v1099 = vsub.s32 0, %v1098
    %v1100 = vrot.slane %v1096, %v1099
    %v1102 = vsel %vm38, %v1084, 0
    %v1105 = vsel %vm38, %v1085, 0
    %1107 = vmatprep.subr.mxu0 0.0
    %1108 = vmatpush1.msra.mxu0 0.0
    %1109 = vmatprep.subr.mxu0 0.0
    %1110 = vmatpush1.msra.mxu0 0.0
    %1111 = vmatprep.subr.mxu0 0.0
    %1112 = vmatpush1.msra.mxu0 0.0
    %1113 = vmatprep.subr.mxu0 0.0
    %1114 = vmatpush1.msra.mxu0 0.0
    %1115 = vmatprep.subr.mxu0 0.0
    %1116 = vmatpush1.msra.mxu0 0.0
    %1117 = vmatprep.subr.mxu0 0.0
    %1118 = vmatpush1.msra.mxu0 0.0
    %1119 = vmatprep.subr.mxu0 0.0
    %1120 = vmatpush1.msra.mxu0 0.0
    %1121 = vmatprep.subr.mxu0 0.0
    %1122 = vmatpush1.msra.mxu0 0.0
    %1123 = vmatprep.subr.mxu0 0.0
    %1124 = vmatpush1.msra.mxu0 0.0
    %1125 = vmatprep.subr.mxu0 0.0
    %1126 = vmatpush1.msra.mxu0 0.0
    %1127 = vmatprep.subr.mxu0 0.0
    %1128 = vmatpush1.msra.mxu0 0.0
    %1129 = vmatprep.subr.mxu0 0.0
    %1130 = vmatpush1.msra.mxu0 0.0
    %1131 = vmatprep.subr.mxu0 0.0
    %1132 = vmatpush1.msra.mxu0 %v1095
    %1133 = vmatprep.subr.mxu0 0.0
    %1134 = vmatpush1.msra.mxu0 %v1094
    %1135 = vmatprep.subr.mxu0 0.0
    %1136 = vmatpush1.msra.mxu0 %v1093
    %1137 = vmatprep.subr.mxu0 0.0
    %1138 = vmatpush1.msra.mxu0 %v1092
    %1139 = vmatprep.subr.mxu0 0.0
    %1140 = vmatpush2.msra.mxu0 0.0
    %1141 = vmatprep.subr.mxu0 0.0
    %1142 = vmatpush2.msra.mxu0 0.0
    %1143 = vmatprep.subr.mxu0 0.0
    %1144 = vmatpush2.msra.mxu0 0.0
    %1145 = vmatprep.subr.mxu0 0.0
    %1146 = vmatpush2.msra.mxu0 0.0
    %1147 = vmatprep.subr.mxu0 0.0
    %1148 = vmatpush2.msra.mxu0 0.0
    %1149 = vmatprep.subr.mxu0 0.0
    %1150 = vmatpush2.msra.mxu0 0.0
    %1151 = vmatprep.subr.mxu0 0.0
    %1152 = vmatpush2.msra.mxu0 0.0
    %1153 = vmatprep.subr.mxu0 0.0
    %1154 = vmatpush2.msra.mxu0 0.0
    %1155 = vmatprep.subr.mxu0 0.0
    %1156 = vmatpush2.msra.mxu0 0.0
    %1157 = vmatprep.subr.mxu0 0.0
    %1158 = vmatpush2.msra.mxu0 0.0
    %1159 = vmatprep.subr.mxu0 0.0
    %1160 = vmatpush2.msra.mxu0 0.0
    %1161 = vmatprep.subr.mxu0 0.0
    %1162 = vmatpush2.msra.mxu0 0.0
    %1163 = vmatprep.subr.mxu0 0.0
    %1164 = vmatpush2.msra.mxu0 0.0
    %1165 = vmatprep.subr.mxu0 0.0
    %1166 = vmatpush2.msra.mxu0 0.0
    %1167 = vmatprep.subr.mxu0 0.0
    %1168 = vmatpush2.msra.mxu0 0.0
    %1169 = vmatprep.subr.mxu0 0.0
    %1170 = vmatpush2.msra.mxu0 0.0
    %1171 = vmatprep.mubr.f32.mxu0 0.0
    %1172 = vmatmul.mubr.f32.gmra.mxu0 %v1102
    %v1173 = vpop.f32.mrf.mxu0
    %v1174 = vadd.f32 %v1100, %v1173
    %v1175 = vpop.f32.mrf.mxu0
    %1176 = vmatprep.mubr.f32.mxu0 0.0
    %1177 = vmatmul.mubr.f32.gmra.mxu0 %v1105
    %v1178 = vpop.f32.mrf.mxu0
    %v1179 = vadd.f32 %v1100, %v1178
    %v1180 = vpop.f32.mrf.mxu0
    %1181 = vdwg.mxu0
    %v1182 = vld [vmem:[%s6 + $0x60] sm:$0xff]
    %v1183 = vld [vmem:[%s6 + $0x68] sm:$0xff]
    %v1184 = vld [vmem:[%s6 + $0x70] sm:$0xff]
    %v1185 = vld [vmem:[%s6 + $0x78] sm:$0xff]
    %v1186 = vld [vmem:[%s6 + $0x163] sm:$0x1]
    %v1187 = vlaneseq
    %v1188 = vshrl.u32 %v1187, 7
    %v1189 = vsub.s32 0, %v1188
    %v1190 = vrot.slane %v1186, %v1189
    %v1192 = vsel %vm38, %v1086, 0
    %v1195 = vsel %vm38, %v1087, 0
    %v1198 = vsel %vm38, %v1088, 0
    %v1201 = vsel %vm38, %v1089, 0
    %1203 = vmatprep.subr.mxu0 0.0
    %1204 = vmatpush1.msra.mxu0 0.0
    %1205 = vmatprep.subr.mxu0 0.0
    %1206 = vmatpush1.msra.mxu0 0.0
    %1207 = vmatprep.subr.mxu0 0.0
    %1208 = vmatpush1.msra.mxu0 0.0
    %1209 = vmatprep.subr.mxu0 0.0
    %1210 = vmatpush1.msra.mxu0 0.0
    %1211 = vmatprep.subr.mxu0 0.0
    %1212 = vmatpush1.msra.mxu0 0.0
    %1213 = vmatprep.subr.mxu0 0.0
    %1214 = vmatpush1.msra.mxu0 0.0
    %1215 = vmatprep.subr.mxu0 0.0
    %1216 = vmatpush1.msra.mxu0 0.0
    %1217 = vmatprep.subr.mxu0 0.0
    %1218 = vmatpush1.msra.mxu0 0.0
    %1219 = vmatprep.subr.mxu0 0.0
    %1220 = vmatpush1.msra.mxu0 0.0
    %1221 = vmatprep.subr.mxu0 0.0
    %1222 = vmatpush1.msra.mxu0 0.0
    %1223 = vmatprep.subr.mxu0 0.0
    %1224 = vmatpush1.msra.mxu0 0.0
    %1225 = vmatprep.subr.mxu0 0.0
    %1226 = vmatpush1.msra.mxu0 0.0
    %1227 = vmatprep.subr.mxu0 0.0
    %1228 = vmatpush1.msra.mxu0 %v1185
    %1229 = vmatprep.subr.mxu0 0.0
    %1230 = vmatpush1.msra.mxu0 %v1184
    %1231 = vmatprep.subr.mxu0 0.0
    %1232 = vmatpush1.msra.mxu0 %v1183
    %1233 = vmatprep.subr.mxu0 0.0
    %1234 = vmatpush1.msra.mxu0 %v1182
    %1235 = vmatprep.subr.mxu0 0.0
    %1236 = vmatpush2.msra.mxu0 0.0
    %1237 = vmatprep.subr.mxu0 0.0
    %1238 = vmatpush2.msra.mxu0 0.0
    %1239 = vmatprep.subr.mxu0 0.0
    %1240 = vmatpush2.msra.mxu0 0.0
    %1241 = vmatprep.subr.mxu0 0.0
    %1242 = vmatpush2.msra.mxu0 0.0
    %1243 = vmatprep.subr.mxu0 0.0
    %1244 = vmatpush2.msra.mxu0 0.0
    %1245 = vmatprep.subr.mxu0 0.0
    %1246 = vmatpush2.msra.mxu0 0.0
    %1247 = vmatprep.subr.mxu0 0.0
    %1248 = vmatpush2.msra.mxu0 0.0
    %1249 = vmatprep.subr.mxu0 0.0
    %1250 = vmatpush2.msra.mxu0 0.0
    %1251 = vmatprep.subr.mxu0 0.0
    %1252 = vmatpush2.msra.mxu0 0.0
    %1253 = vmatprep.subr.mxu0 0.0
    %1254 = vmatpush2.msra.mxu0 0.0
    %1255 = vmatprep.subr.mxu0 0.0
    %1256 = vmatpush2.msra.mxu0 0.0
    %1257 = vmatprep.subr.mxu0 0.0
    %1258 = vmatpush2.msra.mxu0 0.0
    %1259 = vmatprep.subr.mxu0 0.0
    %1260 = vmatpush2.msra.mxu0 0.0
    %1261 = vmatprep.subr.mxu0 0.0
    %1262 = vmatpush2.msra.mxu0 0.0
    %1263 = vmatprep.subr.mxu0 0.0
    %1264 = vmatpush2.msra.mxu0 0.0
    %1265 = vmatprep.subr.mxu0 0.0
    %1266 = vmatpush2.msra.mxu0 0.0
    %1267 = vmatprep.mubr.f32.mxu0 0.0
    %1268 = vmatmul.mubr.f32.gmra.mxu0 %v1192
    %v1269 = vpop.f32.mrf.mxu0
    %v1270 = vadd.f32 %v1190, %v1269
    %v1271 = vpop.f32.mrf.mxu0
    %1272 = vmatprep.mubr.f32.mxu0 0.0
    %1273 = vmatmul.mubr.f32.gmra.mxu0 %v1195
    %v1274 = vpop.f32.mrf.mxu0
    %v1275 = vadd.f32 %v1190, %v1274
    %v1276 = vpop.f32.mrf.mxu0
    %1277 = vmatprep.mubr.f32.mxu0 0.0
    %1278 = vmatmul.mubr.f32.gmra.mxu0 %v1198
    %v1279 = vpop.f32.mrf.mxu0
    %v1280 = vadd.f32 %v1190, %v1279
    %v1281 = vpop.f32.mrf.mxu0
    %1282 = vmatprep.mubr.f32.mxu0 0.0
    %1283 = vmatmul.mubr.f32.gmra.mxu0 %v1201
    %v1284 = vpop.f32.mrf.mxu0
    %v1285 = vadd.f32 %v1190, %v1284
    %v1286 = vpop.f32.mrf.mxu0
    %1287 = vdwg.mxu0
    %v1289 = vsel %vm128, %v1174, 0
    %v1292 = vsel %vm128, %v1179, 0
    %v1295 = vsel %vm128, %v1270, 0
    %v1298 = vsel %vm128, %v1275, 0
    %v1301 = vsel %vm128, %v1280, 0
    %v1304 = vsel %vm128, %v1285, 0
    %1306 = vmatprep.subr.mxu0 0.0
    %1307 = vmatpush1.xpose.msra.mxu0 0.0
    %1308 = vmatprep.subr.mxu0 0.0
    %1309 = vmatpush1.xpose.msra.mxu0 0.0
    %1310 = vmatprep.subr.mxu0 0.0
    %1311 = vmatpush1.xpose.msra.mxu0 0.0
    %1312 = vmatprep.subr.mxu0 0.0
    %1313 = vmatpush1.xpose.msra.mxu0 0.0
    %1314 = vmatprep.subr.mxu0 0.0
    %1315 = vmatpush1.xpose.msra.mxu0 0.0
    %1316 = vmatprep.subr.mxu0 0.0
    %1317 = vmatpush1.xpose.msra.mxu0 0.0
    %1318 = vmatprep.subr.mxu0 0.0
    %1319 = vmatpush1.xpose.msra.mxu0 0.0
    %1320 = vmatprep.subr.mxu0 0.0
    %1321 = vmatpush1.xpose.msra.mxu0 0.0
    %1322 = vmatprep.subr.mxu0 0.0
    %1323 = vmatpush1.xpose.msra.mxu0 0.0
    %1324 = vmatprep.subr.mxu0 0.0
    %1325 = vmatpush1.xpose.msra.mxu0 0.0
    %1326 = vmatprep.subr.mxu0 0.0
    %1327 = vmatpush1.xpose.msra.mxu0 0.0
    %1328 = vmatprep.subr.mxu0 0.0
    %1329 = vmatpush1.xpose.msra.mxu0 0.0
    %1330 = vmatprep.subr.mxu0 0.0
    %1331 = vmatpush1.xpose.msra.mxu0 %v1304
    %1332 = vmatprep.subr.mxu0 0.0
    %1333 = vmatpush1.xpose.msra.mxu0 %v1301
    %1334 = vmatprep.subr.mxu0 0.0
    %1335 = vmatpush1.xpose.msra.mxu0 %v1298
    %1336 = vmatprep.subr.mxu0 0.0
    %1337 = vmatpush1.xpose.msra.mxu0 %v1295
    %1338 = vmatprep.subr.mxu0 0.0
    %1339 = vmatpush2.xpose.msra.mxu0 0.0
    %1340 = vmatprep.subr.mxu0 0.0
    %1341 = vmatpush2.xpose.msra.mxu0 0.0
    %1342 = vmatprep.subr.mxu0 0.0
    %1343 = vmatpush2.xpose.msra.mxu0 0.0
    %1344 = vmatprep.subr.mxu0 0.0
    %1345 = vmatpush2.xpose.msra.mxu0 0.0
    %1346 = vmatprep.subr.mxu0 0.0
    %1347 = vmatpush2.xpose.msra.mxu0 0.0
    %1348 = vmatprep.subr.mxu0 0.0
    %1349 = vmatpush2.xpose.msra.mxu0 0.0
    %1350 = vmatprep.subr.mxu0 0.0
    %1351 = vmatpush2.xpose.msra.mxu0 0.0
    %1352 = vmatprep.subr.mxu0 0.0
    %1353 = vmatpush2.xpose.msra.mxu0 0.0
    %1354 = vmatprep.subr.mxu0 0.0
    %1355 = vmatpush2.xpose.msra.mxu0 0.0
    %1356 = vmatprep.subr.mxu0 0.0
    %1357 = vmatpush2.xpose.msra.mxu0 0.0
    %1358 = vmatprep.subr.mxu0 0.0
    %1359 = vmatpush2.xpose.msra.mxu0 0.0
    %1360 = vmatprep.subr.mxu0 0.0
    %1361 = vmatpush2.xpose.msra.mxu0 0.0
    %1362 = vmatprep.subr.mxu0 0.0
    %1363 = vmatpush2.xpose.msra.mxu0 0.0
    %1364 = vmatprep.subr.mxu0 0.0
    %1365 = vmatpush2.xpose.msra.mxu0 0.0
    %1366 = vmatprep.subr.mxu0 0.0
    %1367 = vmatpush2.xpose.msra.mxu0 0.0
    %1368 = vmatprep.subr.mxu0 0.0
    %1369 = vmatpush2.xpose.msra.mxu0 0.0
    %1370 = vmatprep.mubr.f32.mxu0 0.0
    %1371 = vmatmul.mubr.f32.gmra.mxu0 %v1289
    %v1372 = vpop.f32.mrf.mxu0
    %v1373 = vadd.f32 %v1090, %v1372
    %v1374 = vpop.f32.mrf.mxu0
    %1375 = vmatprep.mubr.f32.mxu0 0.0
    %1376 = vmatmul.mubr.f32.gmra.mxu0 %v1292
    %v1377 = vpop.f32.mrf.mxu0
    %v1378 = vadd.f32 %v1091, %v1377
    %v1379 = vpop.f32.mrf.mxu0
    %1380 = vdwg.mxu0
    %v1381 = vsel %vm38, %v1373, -inf
    %1382 = vmax.xlane.f32.xlu0 %v1381
    %v1383 = vpop.xlane.xlu0 %1382
    %v1384 = vsel %vm38, %v1378, -inf
    %1385 = vmax.xlane.f32.xlu0 %v1384
    %v1386 = vpop.xlane.xlu0 %1385
    %v1387 = vsub.f32 %v1373, %v1383
    %v1388 = vsub.f32 %v1378, %v1386
    %v1389 = vmul.f32 %v1387, 1.442695
    %v1390 = vpow.pop %v1389
    %v1391 = vmul.f32 %v1388, 1.442695
    %v1392 = vpow.pop %v1391
    %v1393 = vsel %vm38, %v1390, 0.0
    %1394 = vadd.xlane.f32.xlu0 %v1393
    %v1395 = vpop.xlane.xlu0 %1394
    %v1396 = vsel %vm38, %v1392, 0.0
    %1397 = vadd.xlane.f32.xlu0 %v1396
    %v1398 = vpop.xlane.xlu0 %1397
    %v1399 = vrcp.pop %v1395
    %v1400 = vmul.f32 %v1390, %v1399
    %v1401 = vrcp.pop %v1398
    %v1402 = vmul.f32 %v1392, %v1401
    %1403 = vrot.lane.b32.xlu0 %v1270, 96
    %v1404 = vpop.permute.xlu0 %1403
    %1405 = vrot.lane.b32.xlu0 %v1275, 96
    %v1406 = vpop.permute.xlu0 %1405
    %1407 = vrot.lane.b32.xlu0 %v1280, 96
    %v1408 = vpop.permute.xlu0 %1407
    %1409 = vrot.lane.b32.xlu0 %v1285, 96
    %v1410 = vpop.permute.xlu0 %1409
    %v1416 = vsel %vm38, %v1400, 0
    %v1419 = vsel %vm38, %v1402, 0
    %1421 = vmatprep.subr.mxu0 0.0
    %1422 = vmatpush1.msra.mxu0 0.0
    %1423 = vmatprep.subr.mxu0 0.0
    %1424 = vmatpush1.msra.mxu0 0.0
    %1425 = vmatprep.subr.mxu0 0.0
    %1426 = vmatpush1.msra.mxu0 0.0
    %1427 = vmatprep.subr.mxu0 0.0
    %1428 = vmatpush1.msra.mxu0 0.0
    %1429 = vmatprep.subr.mxu0 0.0
    %1430 = vmatpush1.msra.mxu0 0.0
    %1431 = vmatprep.subr.mxu0 0.0
    %1432 = vmatpush1.msra.mxu0 0.0
    %1433 = vmatprep.subr.mxu0 0.0
    %1434 = vmatpush1.msra.mxu0 0.0
    %1435 = vmatprep.subr.mxu0 0.0
    %1436 = vmatpush1.msra.mxu0 0.0
    %1437 = vmatprep.subr.mxu0 0.0
    %1438 = vmatpush1.msra.mxu0 0.0
    %1439 = vmatprep.subr.mxu0 0.0
    %1440 = vmatpush1.msra.mxu0 0.0
    %1441 = vmatprep.subr.mxu0 0.0
    %1442 = vmatpush1.msra.mxu0 0.0
    %1443 = vmatprep.subr.mxu0 0.0
    %1444 = vmatpush1.msra.mxu0 0.0
    %1445 = vmatprep.subr.mxu0 0.0
    %1446 = vmatpush1.msra.mxu0 %v1410
    %1447 = vmatprep.subr.mxu0 0.0
    %1448 = vmatpush1.msra.mxu0 %v1408
    %1449 = vmatprep.subr.mxu0 0.0
    %1450 = vmatpush1.msra.mxu0 %v1406
    %1451 = vmatprep.subr.mxu0 0.0
    %1452 = vmatpush1.msra.mxu0 %v1404
    %1453 = vmatprep.subr.mxu0 0.0
    %1454 = vmatpush2.msra.mxu0 0.0
    %1455 = vmatprep.subr.mxu0 0.0
    %1456 = vmatpush2.msra.mxu0 0.0
    %1457 = vmatprep.subr.mxu0 0.0
    %1458 = vmatpush2.msra.mxu0 0.0
    %1459 = vmatprep.subr.mxu0 0.0
    %1460 = vmatpush2.msra.mxu0 0.0
    %1461 = vmatprep.subr.mxu0 0.0
    %1462 = vmatpush2.msra.mxu0 0.0
    %1463 = vmatprep.subr.mxu0 0.0
    %1464 = vmatpush2.msra.mxu0 0.0
    %1465 = vmatprep.subr.mxu0 0.0
    %1466 = vmatpush2.msra.mxu0 0.0
    %1467 = vmatprep.subr.mxu0 0.0
    %1468 = vmatpush2.msra.mxu0 0.0
    %1469 = vmatprep.subr.mxu0 0.0
    %1470 = vmatpush2.msra.mxu0 0.0
    %1471 = vmatprep.subr.mxu0 0.0
    %1472 = vmatpush2.msra.mxu0 0.0
    %1473 = vmatprep.subr.mxu0 0.0
    %1474 = vmatpush2.msra.mxu0 0.0
    %1475 = vmatprep.subr.mxu0 0.0
    %1476 = vmatpush2.msra.mxu0 0.0
    %1477 = vmatprep.subr.mxu0 0.0
    %1478 = vmatpush2.msra.mxu0 0.0
    %1479 = vmatprep.subr.mxu0 0.0
    %1480 = vmatpush2.msra.mxu0 0.0
    %1481 = vmatprep.subr.mxu0 0.0
    %1482 = vmatpush2.msra.mxu0 0.0
    %1483 = vmatprep.subr.mxu0 0.0
    %1484 = vmatpush2.msra.mxu0 0.0
    %1485 = vmatprep.mubr.f32.mxu0 0.0
    %1486 = vmatmul.mubr.f32.gmra.mxu0 %v1416
    %v1487 = vpop.f32.mrf.mxu0
    %v1488 = vadd.f32 0.0, %v1487
    %v1489 = vpop.f32.mrf.mxu0
    %1490 = vmatprep.mubr.f32.mxu0 0.0
    %1491 = vmatmul.mubr.f32.gmra.mxu0 %v1419
    %v1492 = vpop.f32.mrf.mxu0
    %v1493 = vadd.f32 0.0, %v1492
    %v1494 = vpop.f32.mrf.mxu0
    %1495 = vdwg.mxu0
    %1496 = vrot.lane.b32.xlu0 %v1174, 120
    %v1497 = vpop.permute.xlu0 %1496
    %1498 = vrot.lane.b32.xlu0 %v1179, 120
    %v1499 = vpop.permute.xlu0 %1498
    %1500 = vrot.lane.b32.xlu0 %v1270, 120
    %v1501 = vpop.permute.xlu0 %1500
    %1502 = vrot.lane.b32.xlu0 %v1275, 120
    %v1503 = vpop.permute.xlu0 %1502
    %1504 = vrot.lane.b32.xlu0 %v1280, 120
    %v1505 = vpop.permute.xlu0 %1504
    %1506 = vrot.lane.b32.xlu0 %v1285, 120
    %v1507 = vpop.permute.xlu0 %1506
    %v1508 = vsel %vm128, %v1497, 0
    %v1510 = vsel %vm128, %v1499, 0
    %v1512 = vsel %vm128, %v1501, 0
    %v1514 = vsel %vm128, %v1503, 0
    %v1516 = vsel %vm128, %v1505, 0
    %v1518 = vsel %vm128, %v1507, 0
    %1520 = vmatprep.subr.mxu0 0.0
    %1521 = vmatpush1.xpose.msra.mxu0 0.0
    %1522 = vmatprep.subr.mxu0 0.0
    %1523 = vmatpush1.xpose.msra.mxu0 0.0
    %1524 = vmatprep.subr.mxu0 0.0
    %1525 = vmatpush1.xpose.msra.mxu0 0.0
    %1526 = vmatprep.subr.mxu0 0.0
    %1527 = vmatpush1.xpose.msra.mxu0 0.0
    %1528 = vmatprep.subr.mxu0 0.0
    %1529 = vmatpush1.xpose.msra.mxu0 0.0
    %1530 = vmatprep.subr.mxu0 0.0
    %1531 = vmatpush1.xpose.msra.mxu0 0.0
    %1532 = vmatprep.subr.mxu0 0.0
    %1533 = vmatpush1.xpose.msra.mxu0 0.0
    %1534 = vmatprep.subr.mxu0 0.0
    %1535 = vmatpush1.xpose.msra.mxu0 0.0
    %1536 = vmatprep.subr.mxu0 0.0
    %1537 = vmatpush1.xpose.msra.mxu0 0.0
    %1538 = vmatprep.subr.mxu0 0.0
    %1539 = vmatpush1.xpose.msra.mxu0 0.0
    %1540 = vmatprep.subr.mxu0 0.0
    %1541 = vmatpush1.xpose.msra.mxu0 0.0
    %1542 = vmatprep.subr.mxu0 0.0
    %1543 = vmatpush1.xpose.msra.mxu0 0.0
    %1544 = vmatprep.subr.mxu0 0.0
    %1545 = vmatpush1.xpose.msra.mxu0 %v1518
    %1546 = vmatprep.subr.mxu0 0.0
    %1547 = vmatpush1.xpose.msra.mxu0 %v1516
    %1548 = vmatprep.subr.mxu0 0.0
    %1549 = vmatpush1.xpose.msra.mxu0 %v1514
    %1550 = vmatprep.subr.mxu0 0.0
    %1551 = vmatpush1.xpose.msra.mxu0 %v1512
    %1552 = vmatprep.subr.mxu0 0.0
    %1553 = vmatpush2.xpose.msra.mxu0 0.0
    %1554 = vmatprep.subr.mxu0 0.0
    %1555 = vmatpush2.xpose.msra.mxu0 0.0
    %1556 = vmatprep.subr.mxu0 0.0
    %1557 = vmatpush2.xpose.msra.mxu0 0.0
    %1558 = vmatprep.subr.mxu0 0.0
    %1559 = vmatpush2.xpose.msra.mxu0 0.0
    %1560 = vmatprep.subr.mxu0 0.0
    %1561 = vmatpush2.xpose.msra.mxu0 0.0
    %1562 = vmatprep.subr.mxu0 0.0
    %1563 = vmatpush2.xpose.msra.mxu0 0.0
    %1564 = vmatprep.subr.mxu0 0.0
    %1565 = vmatpush2.xpose.msra.mxu0 0.0
    %1566 = vmatprep.subr.mxu0 0.0
    %1567 = vmatpush2.xpose.msra.mxu0 0.0
    %1568 = vmatprep.subr.mxu0 0.0
    %1569 = vmatpush2.xpose.msra.mxu0 0.0
    %1570 = vmatprep.subr.mxu0 0.0
    %1571 = vmatpush2.xpose.msra.mxu0 0.0
    %1572 = vmatprep.subr.mxu0 0.0
    %1573 = vmatpush2.xpose.msra.mxu0 0.0
    %1574 = vmatprep.subr.mxu0 0.0
    %1575 = vmatpush2.xpose.msra.mxu0 0.0
    %1576 = vmatprep.subr.mxu0 0.0
    %1577 = vmatpush2.xpose.msra.mxu0 0.0
    %1578 = vmatprep.subr.mxu0 0.0
    %1579 = vmatpush2.xpose.msra.mxu0 0.0
    %1580 = vmatprep.subr.mxu0 0.0
    %1581 = vmatpush2.xpose.msra.mxu0 0.0
    %1582 = vmatprep.subr.mxu0 0.0
    %1583 = vmatpush2.xpose.msra.mxu0 0.0
    %1584 = vmatprep.mubr.f32.mxu0 0.0
    %1585 = vmatmul.mubr.f32.gmra.mxu0 %v1508
    %v1586 = vpop.f32.mrf.mxu0
    %v1587 = vadd.f32 %v1090, %v1586
    %v1588 = vpop.f32.mrf.mxu0
    %1589 = vmatprep.mubr.f32.mxu0 0.0
    %1590 = vmatmul.mubr.f32.gmra.mxu0 %v1510
    %v1591 = vpop.f32.mrf.mxu0
    %v1592 = vadd.f32 %v1091, %v1591
    %v1593 = vpop.f32.mrf.mxu0
    %1594 = vdwg.mxu0
    %v1595 = vsel %vm38, %v1587, -inf
    %1596 = vmax.xlane.f32.xlu0 %v1595
    %v1597 = vpop.xlane.xlu0 %1596
    %v1598 = vsel %vm38, %v1592, -inf
    %1599 = vmax.xlane.f32.xlu0 %v1598
    %v1600 = vpop.xlane.xlu0 %1599
    %v1601 = vsub.f32 %v1587, %v1597
    %v1602 = vsub.f32 %v1592, %v1600
    %v1603 = vmul.f32 %v1601, 1.442695
    %v1604 = vpow.pop %v1603
    %v1605 = vmul.f32 %v1602, 1.442695
    %v1606 = vpow.pop %v1605
    %v1607 = vsel %vm38, %v1604, 0.0
    %1608 = vadd.xlane.f32.xlu0 %v1607
    %v1609 = vpop.xlane.xlu0 %1608
    %v1610 = vsel %vm38, %v1606, 0.0
    %1611 = vadd.xlane.f32.xlu0 %v1610
    %v1612 = vpop.xlane.xlu0 %1611
    %v1613 = vrcp.pop %v1609
    %v1614 = vmul.f32 %v1604, %v1613
    %v1615 = vrcp.pop %v1612
    %v1616 = vmul.f32 %v1606, %v1615
    %1617 = vrot.lane.b32.xlu0 %v1270, 88
    %v1618 = vpop.permute.xlu0 %1617
    %1619 = vrot.lane.b32.xlu0 %v1275, 88
    %v1620 = vpop.permute.xlu0 %1619
    %1621 = vrot.lane.b32.xlu0 %v1280, 88
    %v1622 = vpop.permute.xlu0 %1621
    %1623 = vrot.lane.b32.xlu0 %v1285, 88
    %v1624 = vpop.permute.xlu0 %1623
    %v1630 = vsel %vm38, %v1614, 0
    %v1633 = vsel %vm38, %v1616, 0
    %1635 = vmatprep.subr.mxu0 0.0
    %1636 = vmatpush1.msra.mxu0 0.0
    %1637 = vmatprep.subr.mxu0 0.0
    %1638 = vmatpush1.msra.mxu0 0.0
    %1639 = vmatprep.subr.mxu0 0.0
    %1640 = vmatpush1.msra.mxu0 0.0
    %1641 = vmatprep.subr.mxu0 0.0
    %1642 = vmatpush1.msra.mxu0 0.0
    %1643 = vmatprep.subr.mxu0 0.0
    %1644 = vmatpush1.msra.mxu0 0.0
    %1645 = vmatprep.subr.mxu0 0.0
    %1646 = vmatpush1.msra.mxu0 0.0
    %1647 = vmatprep.subr.mxu0 0.0
    %1648 = vmatpush1.msra.mxu0 0.0
    %1649 = vmatprep.subr.mxu0 0.0
    %1650 = vmatpush1.msra.mxu0 0.0
    %1651 = vmatprep.subr.mxu0 0.0
    %1652 = vmatpush1.msra.mxu0 0.0
    %1653 = vmatprep.subr.mxu0 0.0
    %1654 = vmatpush1.msra.mxu0 0.0
    %1655 = vmatprep.subr.mxu0 0.0
    %1656 = vmatpush1.msra.mxu0 0.0
    %1657 = vmatprep.subr.mxu0 0.0
    %1658 = vmatpush1.msra.mxu0 0.0
    %1659 = vmatprep.subr.mxu0 0.0
    %1660 = vmatpush1.msra.mxu0 %v1624
    %1661 = vmatprep.subr.mxu0 0.0
    %1662 = vmatpush1.msra.mxu0 %v1622
    %1663 = vmatprep.subr.mxu0 0.0
    %1664 = vmatpush1.msra.mxu0 %v1620
    %1665 = vmatprep.subr.mxu0 0.0
    %1666 = vmatpush1.msra.mxu0 %v1618
    %1667 = vmatprep.subr.mxu0 0.0
    %1668 = vmatpush2.msra.mxu0 0.0
    %1669 = vmatprep.subr.mxu0 0.0
    %1670 = vmatpush2.msra.mxu0 0.0
    %1671 = vmatprep.subr.mxu0 0.0
    %1672 = vmatpush2.msra.mxu0 0.0
    %1673 = vmatprep.subr.mxu0 0.0
    %1674 = vmatpush2.msra.mxu0 0.0
    %1675 = vmatprep.subr.mxu0 0.0
    %1676 = vmatpush2.msra.mxu0 0.0
    %1677 = vmatprep.subr.mxu0 0.0
    %1678 = vmatpush2.msra.mxu0 0.0
    %1679 = vmatprep.subr.mxu0 0.0
    %1680 = vmatpush2.msra.mxu0 0.0
    %1681 = vmatprep.subr.mxu0 0.0
    %1682 = vmatpush2.msra.mxu0 0.0
    %1683 = vmatprep.subr.mxu0 0.0
    %1684 = vmatpush2.msra.mxu0 0.0
    %1685 = vmatprep.subr.mxu0 0.0
    %1686 = vmatpush2.msra.mxu0 0.0
    %1687 = vmatprep.subr.mxu0 0.0
    %1688 = vmatpush2.msra.mxu0 0.0
    %1689 = vmatprep.subr.mxu0 0.0
    %1690 = vmatpush2.msra.mxu0 0.0
    %1691 = vmatprep.subr.mxu0 0.0
    %1692 = vmatpush2.msra.mxu0 0.0
    %1693 = vmatprep.subr.mxu0 0.0
    %1694 = vmatpush2.msra.mxu0 0.0
    %1695 = vmatprep.subr.mxu0 0.0
    %1696 = vmatpush2.msra.mxu0 0.0
    %1697 = vmatprep.subr.mxu0 0.0
    %1698 = vmatpush2.msra.mxu0 0.0
    %1699 = vmatprep.mubr.f32.mxu0 0.0
    %1700 = vmatmul.mubr.f32.gmra.mxu0 %v1630
    %v1701 = vpop.f32.mrf.mxu0
    %v1702 = vadd.f32 0.0, %v1701
    %v1703 = vpop.f32.mrf.mxu0
    %1704 = vmatprep.mubr.f32.mxu0 0.0
    %1705 = vmatmul.mubr.f32.gmra.mxu0 %v1633
    %v1706 = vpop.f32.mrf.mxu0
    %v1707 = vadd.f32 0.0, %v1706
    %v1708 = vpop.f32.mrf.mxu0
    %1709 = vdwg.mxu0
    %1710 = vrot.lane.b32.xlu0 %v1174, 112
    %v1711 = vpop.permute.xlu0 %1710
    %1712 = vrot.lane.b32.xlu0 %v1179, 112
    %v1713 = vpop.permute.xlu0 %1712
    %1714 = vrot.lane.b32.xlu0 %v1270, 112
    %v1715 = vpop.permute.xlu0 %1714
    %1716 = vrot.lane.b32.xlu0 %v1275, 112
    %v1717 = vpop.permute.xlu0 %1716
    %1718 = vrot.lane.b32.xlu0 %v1280, 112
    %v1719 = vpop.permute.xlu0 %1718
    %1720 = vrot.lane.b32.xlu0 %v1285, 112
    %v1721 = vpop.permute.xlu0 %1720
    %v1722 = vsel %vm128, %v1711, 0
    %v1724 = vsel %vm128, %v1713, 0
    %v1726 = vsel %vm128, %v1715, 0
    %v1728 = vsel %vm128, %v1717, 0
    %v1730 = vsel %vm128, %v1719, 0
    %v1732 = vsel %vm128, %v1721, 0
    %1734 = vmatprep.subr.mxu0 0.0
    %1735 = vmatpush1.xpose.msra.mxu0 0.0
    %1736 = vmatprep.subr.mxu0 0.0
    %1737 = vmatpush1.xpose.msra.mxu0 0.0
    %1738 = vmatprep.subr.mxu0 0.0
    %1739 = vmatpush1.xpose.msra.mxu0 0.0
    %1740 = vmatprep.subr.mxu0 0.0
    %1741 = vmatpush1.xpose.msra.mxu0 0.0
    %1742 = vmatprep.subr.mxu0 0.0
    %1743 = vmatpush1.xpose.msra.mxu0 0.0
    %1744 = vmatprep.subr.mxu0 0.0
    %1745 = vmatpush1.xpose.msra.mxu0 0.0
    %1746 = vmatprep.subr.mxu0 0.0
    %1747 = vmatpush1.xpose.msra.mxu0 0.0
    %1748 = vmatprep.subr.mxu0 0.0
    %1749 = vmatpush1.xpose.msra.mxu0 0.0
    %1750 = vmatprep.subr.mxu0 0.0
    %1751 = vmatpush1.xpose.msra.mxu0 0.0
    %1752 = vmatprep.subr.mxu0 0.0
    %1753 = vmatpush1.xpose.msra.mxu0 0.0
    %1754 = vmatprep.subr.mxu0 0.0
    %1755 = vmatpush1.xpose.msra.mxu0 0.0
    %1756 = vmatprep.subr.mxu0 0.0
    %1757 = vmatpush1.xpose.msra.mxu0 0.0
    %1758 = vmatprep.subr.mxu0 0.0
    %1759 = vmatpush1.xpose.msra.mxu0 %v1732
    %1760 = vmatprep.subr.mxu0 0.0
    %1761 = vmatpush1.xpose.msra.mxu0 %v1730
    %1762 = vmatprep.subr.mxu0 0.0
    %1763 = vmatpush1.xpose.msra.mxu0 %v1728
    %1764 = vmatprep.subr.mxu0 0.0
    %1765 = vmatpush1.xpose.msra.mxu0 %v1726
    %1766 = vmatprep.subr.mxu0 0.0
    %1767 = vmatpush2.xpose.msra.mxu0 0.0
    %1768 = vmatprep.subr.mxu0 0.0
    %1769 = vmatpush2.xpose.msra.mxu0 0.0
    %1770 = vmatprep.subr.mxu0 0.0
    %1771 = vmatpush2.xpose.msra.mxu0 0.0
    %1772 = vmatprep.subr.mxu0 0.0
    %1773 = vmatpush2.xpose.msra.mxu0 0.0
    %1774 = vmatprep.subr.mxu0 0.0
    %1775 = vmatpush2.xpose.msra.mxu0 0.0
    %1776 = vmatprep.subr.mxu0 0.0
    %1777 = vmatpush2.xpose.msra.mxu0 0.0
    %1778 = vmatprep.subr.mxu0 0.0
    %1779 = vmatpush2.xpose.msra.mxu0 0.0
    %1780 = vmatprep.subr.mxu0 0.0
    %1781 = vmatpush2.xpose.msra.mxu0 0.0
    %1782 = vmatprep.subr.mxu0 0.0
    %1783 = vmatpush2.xpose.msra.mxu0 0.0
    %1784 = vmatprep.subr.mxu0 0.0
    %1785 = vmatpush2.xpose.msra.mxu0 0.0
    %1786 = vmatprep.subr.mxu0 0.0
    %1787 = vmatpush2.xpose.msra.mxu0 0.0
    %1788 = vmatprep.subr.mxu0 0.0
    %1789 = vmatpush2.xpose.msra.mxu0 0.0
    %1790 = vmatprep.subr.mxu0 0.0
    %1791 = vmatpush2.xpose.msra.mxu0 0.0
    %1792 = vmatprep.subr.mxu0 0.0
    %1793 = vmatpush2.xpose.msra.mxu0 0.0
    %1794 = vmatprep.subr.mxu0 0.0
    %1795 = vmatpush2.xpose.msra.mxu0 0.0
    %1796 = vmatprep.subr.mxu0 0.0
    %1797 = vmatpush2.xpose.msra.mxu0 0.0
    %1798 = vmatprep.mubr.f32.mxu0 0.0
    %1799 = vmatmul.mubr.f32.gmra.mxu0 %v1722
    %v1800 = vpop.f32.mrf.mxu0
    %v1801 = vadd.f32 %v1090, %v1800
    %v1802 = vpop.f32.mrf.mxu0
    %1803 = vmatprep.mubr.f32.mxu0 0.0
    %1804 = vmatmul.mubr.f32.gmra.mxu0 %v1724
    %v1805 = vpop.f32.mrf.mxu0
    %v1806 = vadd.f32 %v1091, %v1805
    %v1807 = vpop.f32.mrf.mxu0
    %1808 = vdwg.mxu0
    %v1809 = vsel %vm38, %v1801, -inf
    %1810 = vmax.xlane.f32.xlu0 %v1809
    %v1811 = vpop.xlane.xlu0 %1810
    %v1812 = vsel %vm38, %v1806, -inf
    %1813 = vmax.xlane.f32.xlu0 %v1812
    %v1814 = vpop.xlane.xlu0 %1813
    %v1815 = vsub.f32 %v1801, %v1811
    %v1816 = vsub.f32 %v1806, %v1814
    %v1817 = vmul.f32 %v1815, 1.442695
    %v1818 = vpow.pop %v1817
    %v1819 = vmul.f32 %v1816, 1.442695
    %v1820 = vpow.pop %v1819
    %v1821 = vsel %vm38, %v1818, 0.0
    %1822 = vadd.xlane.f32.xlu0 %v1821
    %v1823 = vpop.xlane.xlu0 %1822
    %v1824 = vsel %vm38, %v1820, 0.0
    %1825 = vadd.xlane.f32.xlu0 %v1824
    %v1826 = vpop.xlane.xlu0 %1825
    %v1827 = vrcp.pop %v1823
    %v1828 = vmul.f32 %v1818, %v1827
    %v1829 = vrcp.pop %v1826
    %v1830 = vmul.f32 %v1820, %v1829
    %1831 = vrot.lane.b32.xlu0 %v1270, 80
    %v1832 = vpop.permute.xlu0 %1831
    %1833 = vrot.lane.b32.xlu0 %v1275, 80
    %v1834 = vpop.permute.xlu0 %1833
    %1835 = vrot.lane.b32.xlu0 %v1280, 80
    %v1836 = vpop.permute.xlu0 %1835
    %1837 = vrot.lane.b32.xlu0 %v1285, 80
    %v1838 = vpop.permute.xlu0 %1837
    %v1844 = vsel %vm38, %v1828, 0
    %v1847 = vsel %vm38, %v1830, 0
    %1849 = vmatprep.subr.mxu0 0.0
    %1850 = vmatpush1.msra.mxu0 0.0
    %1851 = vmatprep.subr.mxu0 0.0
    %1852 = vmatpush1.msra.mxu0 0.0
    %1853 = vmatprep.subr.mxu0 0.0
    %1854 = vmatpush1.msra.mxu0 0.0
    %1855 = vmatprep.subr.mxu0 0.0
    %1856 = vmatpush1.msra.mxu0 0.0
    %1857 = vmatprep.subr.mxu0 0.0
    %1858 = vmatpush1.msra.mxu0 0.0
    %1859 = vmatprep.subr.mxu0 0.0
    %1860 = vmatpush1.msra.mxu0 0.0
    %1861 = vmatprep.subr.mxu0 0.0
    %1862 = vmatpush1.msra.mxu0 0.0
    %1863 = vmatprep.subr.mxu0 0.0
    %1864 = vmatpush1.msra.mxu0 0.0
    %1865 = vmatprep.subr.mxu0 0.0
    %1866 = vmatpush1.msra.mxu0 0.0
    %1867 = vmatprep.subr.mxu0 0.0
    %1868 = vmatpush1.msra.mxu0 0.0
    %1869 = vmatprep.subr.mxu0 0.0
    %1870 = vmatpush1.msra.mxu0 0.0
    %1871 = vmatprep.subr.mxu0 0.0
    %1872 = vmatpush1.msra.mxu0 0.0
    %1873 = vmatprep.subr.mxu0 0.0
    %1874 = vmatpush1.msra.mxu0 %v1838
    %1875 = vmatprep.subr.mxu0 0.0
    %1876 = vmatpush1.msra.mxu0 %v1836
    %1877 = vmatprep.subr.mxu0 0.0
    %1878 = vmatpush1.msra.mxu0 %v1834
    %1879 = vmatprep.subr.mxu0 0.0
    %1880 = vmatpush1.msra.mxu0 %v1832
    %1881 = vmatprep.subr.mxu0 0.0
    %1882 = vmatpush2.msra.mxu0 0.0
    %1883 = vmatprep.subr.mxu0 0.0
    %1884 = vmatpush2.msra.mxu0 0.0
    %1885 = vmatprep.subr.mxu0 0.0
    %1886 = vmatpush2.msra.mxu0 0.0
    %1887 = vmatprep.subr.mxu0 0.0
    %1888 = vmatpush2.msra.mxu0 0.0
    %1889 = vmatprep.subr.mxu0 0.0
    %1890 = vmatpush2.msra.mxu0 0.0
    %1891 = vmatprep.subr.mxu0 0.0
    %1892 = vmatpush2.msra.mxu0 0.0
    %1893 = vmatprep.subr.mxu0 0.0
    %1894 = vmatpush2.msra.mxu0 0.0
    %1895 = vmatprep.subr.mxu0 0.0
    %1896 = vmatpush2.msra.mxu0 0.0
    %1897 = vmatprep.subr.mxu0 0.0
    %1898 = vmatpush2.msra.mxu0 0.0
    %1899 = vmatprep.subr.mxu0 0.0
    %1900 = vmatpush2.msra.mxu0 0.0
    %1901 = vmatprep.subr.mxu0 0.0
    %1902 = vmatpush2.msra.mxu0 0.0
    %1903 = vmatprep.subr.mxu0 0.0
    %1904 = vmatpush2.msra.mxu0 0.0
    %1905 = vmatprep.subr.mxu0 0.0
    %1906 = vmatpush2.msra.mxu0 0.0
    %1907 = vmatprep.subr.mxu0 0.0
    %1908 = vmatpush2.msra.mxu0 0.0
    %1909 = vmatprep.subr.mxu0 0.0
    %1910 = vmatpush2.msra.mxu0 0.0
    %1911 = vmatprep.subr.mxu0 0.0
    %1912 = vmatpush2.msra.mxu0 0.0
    %1913 = vmatprep.mubr.f32.mxu0 0.0
    %1914 = vmatmul.mubr.f32.gmra.mxu0 %v1844
    %v1915 = vpop.f32.mrf.mxu0
    %v1916 = vadd.f32 0.0, %v1915
    %v1917 = vpop.f32.mrf.mxu0
    %1918 = vmatprep.mubr.f32.mxu0 0.0
    %1919 = vmatmul.mubr.f32.gmra.mxu0 %v1847
    %v1920 = vpop.f32.mrf.mxu0
    %v1921 = vadd.f32 0.0, %v1920
    %v1922 = vpop.f32.mrf.mxu0
    %1923 = vdwg.mxu0
    %1924 = vrot.lane.b32.xlu0 %v1174, 104
    %v1925 = vpop.permute.xlu0 %1924
    %1926 = vrot.lane.b32.xlu0 %v1179, 104
    %v1927 = vpop.permute.xlu0 %1926
    %1928 = vrot.lane.b32.xlu0 %v1270, 104
    %v1929 = vpop.permute.xlu0 %1928
    %1930 = vrot.lane.b32.xlu0 %v1275, 104
    %v1931 = vpop.permute.xlu0 %1930
    %1932 = vrot.lane.b32.xlu0 %v1280, 104
    %v1933 = vpop.permute.xlu0 %1932
    %1934 = vrot.lane.b32.xlu0 %v1285, 104
    %v1935 = vpop.permute.xlu0 %1934
    %v1936 = vsel %vm128, %v1925, 0
    %v1938 = vsel %vm128, %v1927, 0
    %v1940 = vsel %vm128, %v1929, 0
    %v1942 = vsel %vm128, %v1931, 0
    %v1944 = vsel %vm128, %v1933, 0
    %v1946 = vsel %vm128, %v1935, 0
    %1948 = vmatprep.subr.mxu0 0.0
    %1949 = vmatpush1.xpose.msra.mxu0 0.0
    %1950 = vmatprep.subr.mxu0 0.0
    %1951 = vmatpush1.xpose.msra.mxu0 0.0
    %1952 = vmatprep.subr.mxu0 0.0
    %1953 = vmatpush1.xpose.msra.mxu0 0.0
    %1954 = vmatprep.subr.mxu0 0.0
    %1955 = vmatpush1.xpose.msra.mxu0 0.0
    %1956 = vmatprep.subr.mxu0 0.0
    %1957 = vmatpush1.xpose.msra.mxu0 0.0
    %1958 = vmatprep.subr.mxu0 0.0
    %1959 = vmatpush1.xpose.msra.mxu0 0.0
    %1960 = vmatprep.subr.mxu0 0.0
    %1961 = vmatpush1.xpose.msra.mxu0 0.0
    %1962 = vmatprep.subr.mxu0 0.0
    %1963 = vmatpush1.xpose.msra.mxu0 0.0
    %1964 = vmatprep.subr.mxu0 0.0
    %1965 = vmatpush1.xpose.msra.mxu0 0.0
    %1966 = vmatprep.subr.mxu0 0.0
    %1967 = vmatpush1.xpose.msra.mxu0 0.0
    %1968 = vmatprep.subr.mxu0 0.0
    %1969 = vmatpush1.xpose.msra.mxu0 0.0
    %1970 = vmatprep.subr.mxu0 0.0
    %1971 = vmatpush1.xpose.msra.mxu0 0.0
    %1972 = vmatprep.subr.mxu0 0.0
    %1973 = vmatpush1.xpose.msra.mxu0 %v1946
    %1974 = vmatprep.subr.mxu0 0.0
    %1975 = vmatpush1.xpose.msra.mxu0 %v1944
    %1976 = vmatprep.subr.mxu0 0.0
    %1977 = vmatpush1.xpose.msra.mxu0 %v1942
    %1978 = vmatprep.subr.mxu0 0.0
    %1979 = vmatpush1.xpose.msra.mxu0 %v1940
    %1980 = vmatprep.subr.mxu0 0.0
    %1981 = vmatpush2.xpose.msra.mxu0 0.0
    %1982 = vmatprep.subr.mxu0 0.0
    %1983 = vmatpush2.xpose.msra.mxu0 0.0
    %1984 = vmatprep.subr.mxu0 0.0
    %1985 = vmatpush2.xpose.msra.mxu0 0.0
    %1986 = vmatprep.subr.mxu0 0.0
    %1987 = vmatpush2.xpose.msra.mxu0 0.0
    %1988 = vmatprep.subr.mxu0 0.0
    %1989 = vmatpush2.xpose.msra.mxu0 0.0
    %1990 = vmatprep.subr.mxu0 0.0
    %1991 = vmatpush2.xpose.msra.mxu0 0.0
    %1992 = vmatprep.subr.mxu0 0.0
    %1993 = vmatpush2.xpose.msra.mxu0 0.0
    %1994 = vmatprep.subr.mxu0 0.0
    %1995 = vmatpush2.xpose.msra.mxu0 0.0
    %1996 = vmatprep.subr.mxu0 0.0
    %1997 = vmatpush2.xpose.msra.mxu0 0.0
    %1998 = vmatprep.subr.mxu0 0.0
    %1999 = vmatpush2.xpose.msra.mxu0 0.0
    %2000 = vmatprep.subr.mxu0 0.0
    %2001 = vmatpush2.xpose.msra.mxu0 0.0
    %2002 = vmatprep.subr.mxu0 0.0
    %2003 = vmatpush2.xpose.msra.mxu0 0.0
    %2004 = vmatprep.subr.mxu0 0.0
    %2005 = vmatpush2.xpose.msra.mxu0 0.0
    %2006 = vmatprep.subr.mxu0 0.0
    %2007 = vmatpush2.xpose.msra.mxu0 0.0
    %2008 = vmatprep.subr.mxu0 0.0
    %2009 = vmatpush2.xpose.msra.mxu0 0.0
    %2010 = vmatprep.subr.mxu0 0.0
    %2011 = vmatpush2.xpose.msra.mxu0 0.0
    %2012 = vmatprep.mubr.f32.mxu0 0.0
    %2013 = vmatmul.mubr.f32.gmra.mxu0 %v1936
    %v2014 = vpop.f32.mrf.mxu0
    %v2015 = vadd.f32 %v1090, %v2014
    %v2016 = vpop.f32.mrf.mxu0
    %2017 = vmatprep.mubr.f32.mxu0 0.0
    %2018 = vmatmul.mubr.f32.gmra.mxu0 %v1938
    %v2019 = vpop.f32.mrf.mxu0
    %v2020 = vadd.f32 %v1091, %v2019
    %v2021 = vpop.f32.mrf.mxu0
    %2022 = vdwg.mxu0
    %v2023 = vsel %vm38, %v2015, -inf
    %2024 = vmax.xlane.f32.xlu0 %v2023
    %v2025 = vpop.xlane.xlu0 %2024
    %v2026 = vsel %vm38, %v2020, -inf
    %2027 = vmax.xlane.f32.xlu0 %v2026
    %v2028 = vpop.xlane.xlu0 %2027
    %v2029 = vsub.f32 %v2015, %v2025
    %v2030 = vsub.f32 %v2020, %v2028
    %v2031 = vmul.f32 %v2029, 1.442695
    %v2032 = vpow.pop %v2031
    %v2033 = vmul.f32 %v2030, 1.442695
    %v2034 = vpow.pop %v2033
    %v2035 = vsel %vm38, %v2032, 0.0
    %2036 = vadd.xlane.f32.xlu0 %v2035
    %v2037 = vpop.xlane.xlu0 %2036
    %v2038 = vsel %vm38, %v2034, 0.0
    %2039 = vadd.xlane.f32.xlu0 %v2038
    %v2040 = vpop.xlane.xlu0 %2039
    %v2041 = vrcp.pop %v2037
    %v2042 = vmul.f32 %v2032, %v2041
    %v2043 = vrcp.pop %v2040
    %v2044 = vmul.f32 %v2034, %v2043
    %2045 = vrot.lane.b32.xlu0 %v1270, 72
    %v2046 = vpop.permute.xlu0 %2045
    %2047 = vrot.lane.b32.xlu0 %v1275, 72
    %v2048 = vpop.permute.xlu0 %2047
    %2049 = vrot.lane.b32.xlu0 %v1280, 72
    %v2050 = vpop.permute.xlu0 %2049
    %2051 = vrot.lane.b32.xlu0 %v1285, 72
    %v2052 = vpop.permute.xlu0 %2051
    %v2058 = vsel %vm38, %v2042, 0
    %v2061 = vsel %vm38, %v2044, 0
    %2063 = vmatprep.subr.mxu0 0.0
    %2064 = vmatpush1.msra.mxu0 0.0
    %2065 = vmatprep.subr.mxu0 0.0
    %2066 = vmatpush1.msra.mxu0 0.0
    %2067 = vmatprep.subr.mxu0 0.0
    %2068 = vmatpush1.msra.mxu0 0.0
    %2069 = vmatprep.subr.mxu0 0.0
    %2070 = vmatpush1.msra.mxu0 0.0
    %2071 = vmatprep.subr.mxu0 0.0
    %2072 = vmatpush1.msra.mxu0 0.0
    %2073 = vmatprep.subr.mxu0 0.0
    %2074 = vmatpush1.msra.mxu0 0.0
    %2075 = vmatprep.subr.mxu0 0.0
    %2076 = vmatpush1.msra.mxu0 0.0
    %2077 = vmatprep.subr.mxu0 0.0
    %2078 = vmatpush1.msra.mxu0 0.0
    %2079 = vmatprep.subr.mxu0 0.0
    %2080 = vmatpush1.msra.mxu0 0.0
    %2081 = vmatprep.subr.mxu0 0.0
    %2082 = vmatpush1.msra.mxu0 0.0
    %2083 = vmatprep.subr.mxu0 0.0
    %2084 = vmatpush1.msra.mxu0 0.0
    %2085 = vmatprep.subr.mxu0 0.0
    %2086 = vmatpush1.msra.mxu0 0.0
    %2087 = vmatprep.subr.mxu0 0.0
    %2088 = vmatpush1.msra.mxu0 %v2052
    %2089 = vmatprep.subr.mxu0 0.0
    %2090 = vmatpush1.msra.mxu0 %v2050
    %2091 = vmatprep.subr.mxu0 0.0
    %2092 = vmatpush1.msra.mxu0 %v2048
    %2093 = vmatprep.subr.mxu0 0.0
    %2094 = vmatpush1.msra.mxu0 %v2046
    %2095 = vmatprep.subr.mxu0 0.0
    %2096 = vmatpush2.msra.mxu0 0.0
    %2097 = vmatprep.subr.mxu0 0.0
    %2098 = vmatpush2.msra.mxu0 0.0
    %2099 = vmatprep.subr.mxu0 0.0
    %2100 = vmatpush2.msra.mxu0 0.0
    %2101 = vmatprep.subr.mxu0 0.0
    %2102 = vmatpush2.msra.mxu0 0.0
    %2103 = vmatprep.subr.mxu0 0.0
    %2104 = vmatpush2.msra.mxu0 0.0
    %2105 = vmatprep.subr.mxu0 0.0
    %2106 = vmatpush2.msra.mxu0 0.0
    %2107 = vmatprep.subr.mxu0 0.0
    %2108 = vmatpush2.msra.mxu0 0.0
    %2109 = vmatprep.subr.mxu0 0.0
    %2110 = vmatpush2.msra.mxu0 0.0
    %2111 = vmatprep.subr.mxu0 0.0
    %2112 = vmatpush2.msra.mxu0 0.0
    %2113 = vmatprep.subr.mxu0 0.0
    %2114 = vmatpush2.msra.mxu0 0.0
    %2115 = vmatprep.subr.mxu0 0.0
    %2116 = vmatpush2.msra.mxu0 0.0
    %2117 = vmatprep.subr.mxu0 0.0
    %2118 = vmatpush2.msra.mxu0 0.0
    %2119 = vmatprep.subr.mxu0 0.0
    %2120 = vmatpush2.msra.mxu0 0.0
    %2121 = vmatprep.subr.mxu0 0.0
    %2122 = vmatpush2.msra.mxu0 0.0
    %2123 = vmatprep.subr.mxu0 0.0
    %2124 = vmatpush2.msra.mxu0 0.0
    %2125 = vmatprep.subr.mxu0 0.0
    %2126 = vmatpush2.msra.mxu0 0.0
    %2127 = vmatprep.mubr.f32.mxu0 0.0
    %2128 = vmatmul.mubr.f32.gmra.mxu0 %v2058
    %v2129 = vpop.f32.mrf.mxu0
    %v2130 = vadd.f32 0.0, %v2129
    %v2131 = vpop.f32.mrf.mxu0
    %2132 = vmatprep.mubr.f32.mxu0 0.0
    %2133 = vmatmul.mubr.f32.gmra.mxu0 %v2061
    %v2134 = vpop.f32.mrf.mxu0
    %v2135 = vadd.f32 0.0, %v2134
    %v2136 = vpop.f32.mrf.mxu0
    %2137 = vdwg.mxu0
    %2140 = vrot.lane.b32.xlu0 %v1702, 8
    %v2141 = vpop.permute.xlu0 %2140
    %2142 = vrot.lane.b32.xlu0 %v1707, 8
    %v2143 = vpop.permute.xlu0 %2142
    %2148 = vrot.lane.b32.xlu0 %v1916, 16
    %v2149 = vpop.permute.xlu0 %2148
    %2150 = vrot.lane.b32.xlu0 %v1921, 16
    %v2151 = vpop.permute.xlu0 %2150
    %2156 = vrot.lane.b32.xlu0 %v2130, 24
    %v2157 = vpop.permute.xlu0 %2156
    %2158 = vrot.lane.b32.xlu0 %v2135, 24
    %v2159 = vpop.permute.xlu0 %2158
    %v2162 = vsel %vm128, %v1488, %v2141
    %v2163 = vsel %vm128, %v1493, %v2143
    %v2164 = vsel %vm212, %v2162, %v2149
    %v2165 = vsel %vm212, %v2163, %v2151
    %v2166 = vsel %vm950, %v2164, %v2157
    %v2167 = vsel %vm950, %v2165, %v2159
    %v2168 = vld [vmem:[%s6 + $0x80] sm:$0xff]
    %v2169 = vld [vmem:[%s6 + $0x88] sm:$0xff]
    %v2170 = vld [vmem:[%s6 + $0x90] sm:$0xff]
    %v2171 = vld [vmem:[%s6 + $0x98] sm:$0xff]
    %v2172 = vld [vmem:[%s6 + $0x164] sm:$0x1]
    %v2173 = vlaneseq
    %v2174 = vshrl.u32 %v2173, 7
    %v2175 = vsub.s32 0, %v2174
    %v2176 = vrot.slane %v2172, %v2175
    %v2178 = vsel %vm38, %v2166, 0
    %v2181 = vsel %vm38, %v2167, 0
    %2183 = vmatprep.subr.mxu0 0.0
    %2184 = vmatpush1.msra.mxu0 0.0
    %2185 = vmatprep.subr.mxu0 0.0
    %2186 = vmatpush1.msra.mxu0 0.0
    %2187 = vmatprep.subr.mxu0 0.0
    %2188 = vmatpush1.msra.mxu0 0.0
    %2189 = vmatprep.subr.mxu0 0.0
    %2190 = vmatpush1.msra.mxu0 0.0
    %2191 = vmatprep.subr.mxu0 0.0
    %2192 = vmatpush1.msra.mxu0 0.0
    %2193 = vmatprep.subr.mxu0 0.0
    %2194 = vmatpush1.msra.mxu0 0.0
    %2195 = vmatprep.subr.mxu0 0.0
    %2196 = vmatpush1.msra.mxu0 0.0
    %2197 = vmatprep.subr.mxu0 0.0
    %2198 = vmatpush1.msra.mxu0 0.0
    %2199 = vmatprep.subr.mxu0 0.0
    %2200 = vmatpush1.msra.mxu0 0.0
    %2201 = vmatprep.subr.mxu0 0.0
    %2202 = vmatpush1.msra.mxu0 0.0
    %2203 = vmatprep.subr.mxu0 0.0
    %2204 = vmatpush1.msra.mxu0 0.0
    %2205 = vmatprep.subr.mxu0 0.0
    %2206 = vmatpush1.msra.mxu0 0.0
    %2207 = vmatprep.subr.mxu0 0.0
    %2208 = vmatpush1.msra.mxu0 %v2171
    %2209 = vmatprep.subr.mxu0 0.0
    %2210 = vmatpush1.msra.mxu0 %v2170
    %2211 = vmatprep.subr.mxu0 0.0
    %2212 = vmatpush1.msra.mxu0 %v2169
    %2213 = vmatprep.subr.mxu0 0.0
    %2214 = vmatpush1.msra.mxu0 %v2168
    %2215 = vmatprep.subr.mxu0 0.0
    %2216 = vmatpush2.msra.mxu0 0.0
    %2217 = vmatprep.subr.mxu0 0.0
    %2218 = vmatpush2.msra.mxu0 0.0
    %2219 = vmatprep.subr.mxu0 0.0
    %2220 = vmatpush2.msra.mxu0 0.0
    %2221 = vmatprep.subr.mxu0 0.0
    %2222 = vmatpush2.msra.mxu0 0.0
    %2223 = vmatprep.subr.mxu0 0.0
    %2224 = vmatpush2.msra.mxu0 0.0
    %2225 = vmatprep.subr.mxu0 0.0
    %2226 = vmatpush2.msra.mxu0 0.0
    %2227 = vmatprep.subr.mxu0 0.0
    %2228 = vmatpush2.msra.mxu0 0.0
    %2229 = vmatprep.subr.mxu0 0.0
    %2230 = vmatpush2.msra.mxu0 0.0
    %2231 = vmatprep.subr.mxu0 0.0
    %2232 = vmatpush2.msra.mxu0 0.0
    %2233 = vmatprep.subr.mxu0 0.0
    %2234 = vmatpush2.msra.mxu0 0.0
    %2235 = vmatprep.subr.mxu0 0.0
    %2236 = vmatpush2.msra.mxu0 0.0
    %2237 = vmatprep.subr.mxu0 0.0
    %2238 = vmatpush2.msra.mxu0 0.0
    %2239 = vmatprep.subr.mxu0 0.0
    %2240 = vmatpush2.msra.mxu0 0.0
    %2241 = vmatprep.subr.mxu0 0.0
    %2242 = vmatpush2.msra.mxu0 0.0
    %2243 = vmatprep.subr.mxu0 0.0
    %2244 = vmatpush2.msra.mxu0 0.0
    %2245 = vmatprep.subr.mxu0 0.0
    %2246 = vmatpush2.msra.mxu0 0.0
    %2247 = vmatprep.mubr.f32.mxu0 0.0
    %2248 = vmatmul.mubr.f32.gmra.mxu0 %v2178
    %v2249 = vpop.f32.mrf.mxu0
    %v2250 = vadd.f32 %v2176, %v2249
    %v2251 = vpop.f32.mrf.mxu0
    %2252 = vmatprep.mubr.f32.mxu0 0.0
    %2253 = vmatmul.mubr.f32.gmra.mxu0 %v2181
    %v2254 = vpop.f32.mrf.mxu0
    %v2255 = vadd.f32 %v2176, %v2254
    %v2256 = vpop.f32.mrf.mxu0
    %2257 = vdwg.mxu0
    %v2258 = vld [vmem:[%s4] sm:$0xff]
    %v2259 = vld [vmem:[%s4 + $0x8] sm:$0xff]
    %v2260 = vld [vmem:[%s4 + $0x10] sm:$0xff]
    %v2261 = vld [vmem:[%s4 + $0x18] sm:$0xff]
    %v2262 = vld [vmem:[%s5] sm:$0xff]
    %v2263 = vld [vmem:[%s5 + $0x8] sm:$0xff]
    %v2264 = vld [vmem:[%s6 + $0xa0] sm:$0xff]
    %v2265 = vld [vmem:[%s6 + $0xa8] sm:$0xff]
    %v2266 = vld [vmem:[%s6 + $0xb0] sm:$0xff]
    %v2267 = vld [vmem:[%s6 + $0xb8] sm:$0xff]
    %v2268 = vld [vmem:[%s6 + $0x165] sm:$0x1]
    %v2269 = vlaneseq
    %v2270 = vshrl.u32 %v2269, 7
    %v2271 = vsub.s32 0, %v2270
    %v2272 = vrot.slane %v2268, %v2271
    %2273 = vmatprep.subr.mxu0 0.0
    %2274 = vmatpush1.msra.mxu0 0.0
    %2275 = vmatprep.subr.mxu0 0.0
    %2276 = vmatpush1.msra.mxu0 0.0
    %2277 = vmatprep.subr.mxu0 0.0
    %2278 = vmatpush1.msra.mxu0 0.0
    %2279 = vmatprep.subr.mxu0 0.0
    %2280 = vmatpush1.msra.mxu0 0.0
    %2281 = vmatprep.subr.mxu0 0.0
    %2282 = vmatpush1.msra.mxu0 0.0
    %2283 = vmatprep.subr.mxu0 0.0
    %2284 = vmatpush1.msra.mxu0 0.0
    %2285 = vmatprep.subr.mxu0 0.0
    %2286 = vmatpush1.msra.mxu0 0.0
    %2287 = vmatprep.subr.mxu0 0.0
    %2288 = vmatpush1.msra.mxu0 0.0
    %2289 = vmatprep.subr.mxu0 0.0
    %2290 = vmatpush1.msra.mxu0 0.0
    %2291 = vmatprep.subr.mxu0 0.0
    %2292 = vmatpush1.msra.mxu0 0.0
    %2293 = vmatprep.subr.mxu0 0.0
    %2294 = vmatpush1.msra.mxu0 0.0
    %2295 = vmatprep.subr.mxu0 0.0
    %2296 = vmatpush1.msra.mxu0 0.0
    %2297 = vmatprep.subr.mxu0 0.0
    %2298 = vmatpush1.msra.mxu0 %v2267
    %2299 = vmatprep.subr.mxu0 0.0
    %2300 = vmatpush1.msra.mxu0 %v2266
    %2301 = vmatprep.subr.mxu0 0.0
    %2302 = vmatpush1.msra.mxu0 %v2265
    %2303 = vmatprep.subr.mxu0 0.0
    %2304 = vmatpush1.msra.mxu0 %v2264
    %2305 = vmatprep.subr.mxu0 0.0
    %2306 = vmatpush2.msra.mxu0 0.0
    %2307 = vmatprep.subr.mxu0 0.0
    %2308 = vmatpush2.msra.mxu0 0.0
    %2309 = vmatprep.subr.mxu0 0.0
    %2310 = vmatpush2.msra.mxu0 0.0
    %2311 = vmatprep.subr.mxu0 0.0
    %2312 = vmatpush2.msra.mxu0 0.0
    %2313 = vmatprep.subr.mxu0 0.0
    %2314 = vmatpush2.msra.mxu0 0.0
    %2315 = vmatprep.subr.mxu0 0.0
    %2316 = vmatpush2.msra.mxu0 0.0
    %2317 = vmatprep.subr.mxu0 0.0
    %2318 = vmatpush2.msra.mxu0 0.0
    %2319 = vmatprep.subr.mxu0 0.0
    %2320 = vmatpush2.msra.mxu0 0.0
    %2321 = vmatprep.subr.mxu0 0.0
    %2322 = vmatpush2.msra.mxu0 0.0
    %2323 = vmatprep.subr.mxu0 0.0
    %2324 = vmatpush2.msra.mxu0 0.0
    %2325 = vmatprep.subr.mxu0 0.0
    %2326 = vmatpush2.msra.mxu0 0.0
    %2327 = vmatprep.subr.mxu0 0.0
    %2328 = vmatpush2.msra.mxu0 0.0
    %2329 = vmatprep.subr.mxu0 0.0
    %2330 = vmatpush2.msra.mxu0 0.0
    %2331 = vmatprep.subr.mxu0 0.0
    %2332 = vmatpush2.msra.mxu0 0.0
    %2333 = vmatprep.subr.mxu0 0.0
    %2334 = vmatpush2.msra.mxu0 0.0
    %2335 = vmatprep.subr.mxu0 0.0
    %2336 = vmatpush2.msra.mxu0 0.0
    %2337 = vmatprep.mubr.f32.mxu0 0.0
    %2338 = vmatmul.mubr.f32.gmra.mxu0 %v1102
    %v2339 = vpop.f32.mrf.mxu0
    %v2340 = vadd.f32 %v2272, %v2339
    %v2341 = vpop.f32.mrf.mxu0
    %2342 = vmatprep.mubr.f32.mxu0 0.0
    %2343 = vmatmul.mubr.f32.gmra.mxu0 %v1105
    %v2344 = vpop.f32.mrf.mxu0
    %v2345 = vadd.f32 %v2272, %v2344
    %v2346 = vpop.f32.mrf.mxu0
    %2347 = vdwg.mxu0
    %v2348 = vld [vmem:[%s6 + $0xc0] sm:$0xff]
    %v2349 = vld [vmem:[%s6 + $0xc8] sm:$0xff]
    %v2350 = vld [vmem:[%s6 + $0xd0] sm:$0xff]
    %v2351 = vld [vmem:[%s6 + $0xd8] sm:$0xff]
    %v2352 = vld [vmem:[%s6 + $0x166] sm:$0x1]
    %v2353 = vlaneseq
    %v2354 = vshrl.u32 %v2353, 7
    %v2355 = vsub.s32 0, %v2354
    %v2356 = vrot.slane %v2352, %v2355
    %v2358 = vsel %vm38, %v2258, 0
    %v2361 = vsel %vm38, %v2259, 0
    %v2364 = vsel %vm38, %v2260, 0
    %v2367 = vsel %vm38, %v2261, 0
    %2369 = vmatprep.subr.mxu0 0.0
    %2370 = vmatpush1.msra.mxu0 0.0
    %2371 = vmatprep.subr.mxu0 0.0
    %2372 = vmatpush1.msra.mxu0 0.0
    %2373 = vmatprep.subr.mxu0 0.0
    %2374 = vmatpush1.msra.mxu0 0.0
    %2375 = vmatprep.subr.mxu0 0.0
    %2376 = vmatpush1.msra.mxu0 0.0
    %2377 = vmatprep.subr.mxu0 0.0
    %2378 = vmatpush1.msra.mxu0 0.0
    %2379 = vmatprep.subr.mxu0 0.0
    %2380 = vmatpush1.msra.mxu0 0.0
    %2381 = vmatprep.subr.mxu0 0.0
    %2382 = vmatpush1.msra.mxu0 0.0
    %2383 = vmatprep.subr.mxu0 0.0
    %2384 = vmatpush1.msra.mxu0 0.0
    %2385 = vmatprep.subr.mxu0 0.0
    %2386 = vmatpush1.msra.mxu0 0.0
    %2387 = vmatprep.subr.mxu0 0.0
    %2388 = vmatpush1.msra.mxu0 0.0
    %2389 = vmatprep.subr.mxu0 0.0
    %2390 = vmatpush1.msra.mxu0 0.0
    %2391 = vmatprep.subr.mxu0 0.0
    %2392 = vmatpush1.msra.mxu0 0.0
    %2393 = vmatprep.subr.mxu0 0.0
    %2394 = vmatpush1.msra.mxu0 %v2351
    %2395 = vmatprep.subr.mxu0 0.0
    %2396 = vmatpush1.msra.mxu0 %v2350
    %2397 = vmatprep.subr.mxu0 0.0
    %2398 = vmatpush1.msra.mxu0 %v2349
    %2399 = vmatprep.subr.mxu0 0.0
    %2400 = vmatpush1.msra.mxu0 %v2348
    %2401 = vmatprep.subr.mxu0 0.0
    %2402 = vmatpush2.msra.mxu0 0.0
    %2403 = vmatprep.subr.mxu0 0.0
    %2404 = vmatpush2.msra.mxu0 0.0
    %2405 = vmatprep.subr.mxu0 0.0
    %2406 = vmatpush2.msra.mxu0 0.0
    %2407 = vmatprep.subr.mxu0 0.0
    %2408 = vmatpush2.msra.mxu0 0.0
    %2409 = vmatprep.subr.mxu0 0.0
    %2410 = vmatpush2.msra.mxu0 0.0
    %2411 = vmatprep.subr.mxu0 0.0
    %2412 = vmatpush2.msra.mxu0 0.0
    %2413 = vmatprep.subr.mxu0 0.0
    %2414 = vmatpush2.msra.mxu0 0.0
    %2415 = vmatprep.subr.mxu0 0.0
    %2416 = vmatpush2.msra.mxu0 0.0
    %2417 = vmatprep.subr.mxu0 0.0
    %2418 = vmatpush2.msra.mxu0 0.0
    %2419 = vmatprep.subr.mxu0 0.0
    %2420 = vmatpush2.msra.mxu0 0.0
    %2421 = vmatprep.subr.mxu0 0.0
    %2422 = vmatpush2.msra.mxu0 0.0
    %2423 = vmatprep.subr.mxu0 0.0
    %2424 = vmatpush2.msra.mxu0 0.0
    %2425 = vmatprep.subr.mxu0 0.0
    %2426 = vmatpush2.msra.mxu0 0.0
    %2427 = vmatprep.subr.mxu0 0.0
    %2428 = vmatpush2.msra.mxu0 0.0
    %2429 = vmatprep.subr.mxu0 0.0
    %2430 = vmatpush2.msra.mxu0 0.0
    %2431 = vmatprep.subr.mxu0 0.0
    %2432 = vmatpush2.msra.mxu0 0.0
    %2433 = vmatprep.mubr.f32.mxu0 0.0
    %2434 = vmatmul.mubr.f32.gmra.mxu0 %v2358
    %v2435 = vpop.f32.mrf.mxu0
    %v2436 = vadd.f32 %v2356, %v2435
    %v2437 = vpop.f32.mrf.mxu0
    %2438 = vmatprep.mubr.f32.mxu0 0.0
    %2439 = vmatmul.mubr.f32.gmra.mxu0 %v2361
    %v2440 = vpop.f32.mrf.mxu0
    %v2441 = vadd.f32 %v2356, %v2440
    %v2442 = vpop.f32.mrf.mxu0
    %2443 = vmatprep.mubr.f32.mxu0 0.0
    %2444 = vmatmul.mubr.f32.gmra.mxu0 %v2364
    %v2445 = vpop.f32.mrf.mxu0
    %v2446 = vadd.f32 %v2356, %v2445
    %v2447 = vpop.f32.mrf.mxu0
    %2448 = vmatprep.mubr.f32.mxu0 0.0
    %2449 = vmatmul.mubr.f32.gmra.mxu0 %v2367
    %v2450 = vpop.f32.mrf.mxu0
    %v2451 = vadd.f32 %v2356, %v2450
    %v2452 = vpop.f32.mrf.mxu0
    %2453 = vdwg.mxu0
    %v2455 = vsel %vm128, %v2340, 0
    %v2458 = vsel %vm128, %v2345, 0
    %v2461 = vsel %vm128, %v2436, 0
    %v2464 = vsel %vm128, %v2441, 0
    %v2467 = vsel %vm128, %v2446, 0
    %v2470 = vsel %vm128, %v2451, 0
    %2472 = vmatprep.subr.mxu0 0.0
    %2473 = vmatpush1.xpose.msra.mxu0 0.0
    %2474 = vmatprep.subr.mxu0 0.0
    %2475 = vmatpush1.xpose.msra.mxu0 0.0
    %2476 = vmatprep.subr.mxu0 0.0
    %2477 = vmatpush1.xpose.msra.mxu0 0.0
    %2478 = vmatprep.subr.mxu0 0.0
    %2479 = vmatpush1.xpose.msra.mxu0 0.0
    %2480 = vmatprep.subr.mxu0 0.0
    %2481 = vmatpush1.xpose.msra.mxu0 0.0
    %2482 = vmatprep.subr.mxu0 0.0
    %2483 = vmatpush1.xpose.msra.mxu0 0.0
    %2484 = vmatprep.subr.mxu0 0.0
    %2485 = vmatpush1.xpose.msra.mxu0 0.0
    %2486 = vmatprep.subr.mxu0 0.0
    %2487 = vmatpush1.xpose.msra.mxu0 0.0
    %2488 = vmatprep.subr.mxu0 0.0
    %2489 = vmatpush1.xpose.msra.mxu0 0.0
    %2490 = vmatprep.subr.mxu0 0.0
    %2491 = vmatpush1.xpose.msra.mxu0 0.0
    %2492 = vmatprep.subr.mxu0 0.0
    %2493 = vmatpush1.xpose.msra.mxu0 0.0
    %2494 = vmatprep.subr.mxu0 0.0
    %2495 = vmatpush1.xpose.msra.mxu0 0.0
    %2496 = vmatprep.subr.mxu0 0.0
    %2497 = vmatpush1.xpose.msra.mxu0 %v2470
    %2498 = vmatprep.subr.mxu0 0.0
    %2499 = vmatpush1.xpose.msra.mxu0 %v2467
    %2500 = vmatprep.subr.mxu0 0.0
    %2501 = vmatpush1.xpose.msra.mxu0 %v2464
    %2502 = vmatprep.subr.mxu0 0.0
    %2503 = vmatpush1.xpose.msra.mxu0 %v2461
    %2504 = vmatprep.subr.mxu0 0.0
    %2505 = vmatpush2.xpose.msra.mxu0 0.0
    %2506 = vmatprep.subr.mxu0 0.0
    %2507 = vmatpush2.xpose.msra.mxu0 0.0
    %2508 = vmatprep.subr.mxu0 0.0
    %2509 = vmatpush2.xpose.msra.mxu0 0.0
    %2510 = vmatprep.subr.mxu0 0.0
    %2511 = vmatpush2.xpose.msra.mxu0 0.0
    %2512 = vmatprep.subr.mxu0 0.0
    %2513 = vmatpush2.xpose.msra.mxu0 0.0
    %2514 = vmatprep.subr.mxu0 0.0
    %2515 = vmatpush2.xpose.msra.mxu0 0.0
    %2516 = vmatprep.subr.mxu0 0.0
    %2517 = vmatpush2.xpose.msra.mxu0 0.0
    %2518 = vmatprep.subr.mxu0 0.0
    %2519 = vmatpush2.xpose.msra.mxu0 0.0
    %2520 = vmatprep.subr.mxu0 0.0
    %2521 = vmatpush2.xpose.msra.mxu0 0.0
    %2522 = vmatprep.subr.mxu0 0.0
    %2523 = vmatpush2.xpose.msra.mxu0 0.0
    %2524 = vmatprep.subr.mxu0 0.0
    %2525 = vmatpush2.xpose.msra.mxu0 0.0
    %2526 = vmatprep.subr.mxu0 0.0
    %2527 = vmatpush2.xpose.msra.mxu0 0.0
    %2528 = vmatprep.subr.mxu0 0.0
    %2529 = vmatpush2.xpose.msra.mxu0 0.0
    %2530 = vmatprep.subr.mxu0 0.0
    %2531 = vmatpush2.xpose.msra.mxu0 0.0
    %2532 = vmatprep.subr.mxu0 0.0
    %2533 = vmatpush2.xpose.msra.mxu0 0.0
    %2534 = vmatprep.subr.mxu0 0.0
    %2535 = vmatpush2.xpose.msra.mxu0 0.0
    %2536 = vmatprep.mubr.f32.mxu0 0.0
    %2537 = vmatmul.mubr.f32.gmra.mxu0 %v2455
    %v2538 = vpop.f32.mrf.mxu0
    %v2539 = vadd.f32 %v2262, %v2538
    %v2540 = vpop.f32.mrf.mxu0
    %2541 = vmatprep.mubr.f32.mxu0 0.0
    %2542 = vmatmul.mubr.f32.gmra.mxu0 %v2458
    %v2543 = vpop.f32.mrf.mxu0
    %v2544 = vadd.f32 %v2263, %v2543
    %v2545 = vpop.f32.mrf.mxu0
    %2546 = vdwg.mxu0
    %v2547 = vsel %vm38, %v2539, -inf
    %2548 = vmax.xlane.f32.xlu0 %v2547
    %v2549 = vpop.xlane.xlu0 %2548
    %v2550 = vsel %vm38, %v2544, -inf
    %2551 = vmax.xlane.f32.xlu0 %v2550
    %v2552 = vpop.xlane.xlu0 %2551
    %v2553 = vsub.f32 %v2539, %v2549
    %v2554 = vsub.f32 %v2544, %v2552
    %v2555 = vmul.f32 %v2553, 1.442695
    %v2556 = vpow.pop %v2555
    %v2557 = vmul.f32 %v2554, 1.442695
    %v2558 = vpow.pop %v2557
    %v2559 = vsel %vm38, %v2556, 0.0
    %2560 = vadd.xlane.f32.xlu0 %v2559
    %v2561 = vpop.xlane.xlu0 %2560
    %v2562 = vsel %vm38, %v2558, 0.0
    %2563 = vadd.xlane.f32.xlu0 %v2562
    %v2564 = vpop.xlane.xlu0 %2563
    %v2565 = vrcp.pop %v2561
    %v2566 = vmul.f32 %v2556, %v2565
    %v2567 = vrcp.pop %v2564
    %v2568 = vmul.f32 %v2558, %v2567
    %2569 = vrot.lane.b32.xlu0 %v2436, 96
    %v2570 = vpop.permute.xlu0 %2569
    %2571 = vrot.lane.b32.xlu0 %v2441, 96
    %v2572 = vpop.permute.xlu0 %2571
    %2573 = vrot.lane.b32.xlu0 %v2446, 96
    %v2574 = vpop.permute.xlu0 %2573
    %2575 = vrot.lane.b32.xlu0 %v2451, 96
    %v2576 = vpop.permute.xlu0 %2575
    %v2582 = vsel %vm38, %v2566, 0
    %v2585 = vsel %vm38, %v2568, 0
    %2587 = vmatprep.subr.mxu0 0.0
    %2588 = vmatpush1.msra.mxu0 0.0
    %2589 = vmatprep.subr.mxu0 0.0
    %2590 = vmatpush1.msra.mxu0 0.0
    %2591 = vmatprep.subr.mxu0 0.0
    %2592 = vmatpush1.msra.mxu0 0.0
    %2593 = vmatprep.subr.mxu0 0.0
    %2594 = vmatpush1.msra.mxu0 0.0
    %2595 = vmatprep.subr.mxu0 0.0
    %2596 = vmatpush1.msra.mxu0 0.0
    %2597 = vmatprep.subr.mxu0 0.0
    %2598 = vmatpush1.msra.mxu0 0.0
    %2599 = vmatprep.subr.mxu0 0.0
    %2600 = vmatpush1.msra.mxu0 0.0
    %2601 = vmatprep.subr.mxu0 0.0
    %2602 = vmatpush1.msra.mxu0 0.0
    %2603 = vmatprep.subr.mxu0 0.0
    %2604 = vmatpush1.msra.mxu0 0.0
    %2605 = vmatprep.subr.mxu0 0.0
    %2606 = vmatpush1.msra.mxu0 0.0
    %2607 = vmatprep.subr.mxu0 0.0
    %2608 = vmatpush1.msra.mxu0 0.0
    %2609 = vmatprep.subr.mxu0 0.0
    %2610 = vmatpush1.msra.mxu0 0.0
    %2611 = vmatprep.subr.mxu0 0.0
    %2612 = vmatpush1.msra.mxu0 %v2576
    %2613 = vmatprep.subr.mxu0 0.0
    %2614 = vmatpush1.msra.mxu0 %v2574
    %2615 = vmatprep.subr.mxu0 0.0
    %2616 = vmatpush1.msra.mxu0 %v2572
    %2617 = vmatprep.subr.mxu0 0.0
    %2618 = vmatpush1.msra.mxu0 %v2570
    %2619 = vmatprep.subr.mxu0 0.0
    %2620 = vmatpush2.msra.mxu0 0.0
    %2621 = vmatprep.subr.mxu0 0.0
    %2622 = vmatpush2.msra.mxu0 0.0
    %2623 = vmatprep.subr.mxu0 0.0
    %2624 = vmatpush2.msra.mxu0 0.0
    %2625 = vmatprep.subr.mxu0 0.0
    %2626 = vmatpush2.msra.mxu0 0.0
    %2627 = vmatprep.subr.mxu0 0.0
    %2628 = vmatpush2.msra.mxu0 0.0
    %2629 = vmatprep.subr.mxu0 0.0
    %2630 = vmatpush2.msra.mxu0 0.0
    %2631 = vmatprep.subr.mxu0 0.0
    %2632 = vmatpush2.msra.mxu0 0.0
    %2633 = vmatprep.subr.mxu0 0.0
    %2634 = vmatpush2.msra.mxu0 0.0
    %2635 = vmatprep.subr.mxu0 0.0
    %2636 = vmatpush2.msra.mxu0 0.0
    %2637 = vmatprep.subr.mxu0 0.0
    %2638 = vmatpush2.msra.mxu0 0.0
    %2639 = vmatprep.subr.mxu0 0.0
    %2640 = vmatpush2.msra.mxu0 0.0
    %2641 = vmatprep.subr.mxu0 0.0
    %2642 = vmatpush2.msra.mxu0 0.0
    %2643 = vmatprep.subr.mxu0 0.0
    %2644 = vmatpush2.msra.mxu0 0.0
    %2645 = vmatprep.subr.mxu0 0.0
    %2646 = vmatpush2.msra.mxu0 0.0
    %2647 = vmatprep.subr.mxu0 0.0
    %2648 = vmatpush2.msra.mxu0 0.0
    %2649 = vmatprep.subr.mxu0 0.0
    %2650 = vmatpush2.msra.mxu0 0.0
    %2651 = vmatprep.mubr.f32.mxu0 0.0
    %2652 = vmatmul.mubr.f32.gmra.mxu0 %v2582
    %v2653 = vpop.f32.mrf.mxu0
    %v2654 = vadd.f32 0.0, %v2653
    %v2655 = vpop.f32.mrf.mxu0
    %2656 = vmatprep.mubr.f32.mxu0 0.0
    %2657 = vmatmul.mubr.f32.gmra.mxu0 %v2585
    %v2658 = vpop.f32.mrf.mxu0
    %v2659 = vadd.f32 0.0, %v2658
    %v2660 = vpop.f32.mrf.mxu0
    %2661 = vdwg.mxu0
    %2662 = vrot.lane.b32.xlu0 %v2340, 120
    %v2663 = vpop.permute.xlu0 %2662
    %2664 = vrot.lane.b32.xlu0 %v2345, 120
    %v2665 = vpop.permute.xlu0 %2664
    %2666 = vrot.lane.b32.xlu0 %v2436, 120
    %v2667 = vpop.permute.xlu0 %2666
    %2668 = vrot.lane.b32.xlu0 %v2441, 120
    %v2669 = vpop.permute.xlu0 %2668
    %2670 = vrot.lane.b32.xlu0 %v2446, 120
    %v2671 = vpop.permute.xlu0 %2670
    %2672 = vrot.lane.b32.xlu0 %v2451, 120
    %v2673 = vpop.permute.xlu0 %2672
    %v2674 = vsel %vm128, %v2663, 0
    %v2676 = vsel %vm128, %v2665, 0
    %v2678 = vsel %vm128, %v2667, 0
    %v2680 = vsel %vm128, %v2669, 0
    %v2682 = vsel %vm128, %v2671, 0
    %v2684 = vsel %vm128, %v2673, 0
    %2686 = vmatprep.subr.mxu0 0.0
    %2687 = vmatpush1.xpose.msra.mxu0 0.0
    %2688 = vmatprep.subr.mxu0 0.0
    %2689 = vmatpush1.xpose.msra.mxu0 0.0
    %2690 = vmatprep.subr.mxu0 0.0
    %2691 = vmatpush1.xpose.msra.mxu0 0.0
    %2692 = vmatprep.subr.mxu0 0.0
    %2693 = vmatpush1.xpose.msra.mxu0 0.0
    %2694 = vmatprep.subr.mxu0 0.0
    %2695 = vmatpush1.xpose.msra.mxu0 0.0
    %2696 = vmatprep.subr.mxu0 0.0
    %2697 = vmatpush1.xpose.msra.mxu0 0.0
    %2698 = vmatprep.subr.mxu0 0.0
    %2699 = vmatpush1.xpose.msra.mxu0 0.0
    %2700 = vmatprep.subr.mxu0 0.0
    %2701 = vmatpush1.xpose.msra.mxu0 0.0
    %2702 = vmatprep.subr.mxu0 0.0
    %2703 = vmatpush1.xpose.msra.mxu0 0.0
    %2704 = vmatprep.subr.mxu0 0.0
    %2705 = vmatpush1.xpose.msra.mxu0 0.0
    %2706 = vmatprep.subr.mxu0 0.0
    %2707 = vmatpush1.xpose.msra.mxu0 0.0
    %2708 = vmatprep.subr.mxu0 0.0
    %2709 = vmatpush1.xpose.msra.mxu0 0.0
    %2710 = vmatprep.subr.mxu0 0.0
    %2711 = vmatpush1.xpose.msra.mxu0 %v2684
    %2712 = vmatprep.subr.mxu0 0.0
    %2713 = vmatpush1.xpose.msra.mxu0 %v2682
    %2714 = vmatprep.subr.mxu0 0.0
    %2715 = vmatpush1.xpose.msra.mxu0 %v2680
    %2716 = vmatprep.subr.mxu0 0.0
    %2717 = vmatpush1.xpose.msra.mxu0 %v2678
    %2718 = vmatprep.subr.mxu0 0.0
    %2719 = vmatpush2.xpose.msra.mxu0 0.0
    %2720 = vmatprep.subr.mxu0 0.0
    %2721 = vmatpush2.xpose.msra.mxu0 0.0
    %2722 = vmatprep.subr.mxu0 0.0
    %2723 = vmatpush2.xpose.msra.mxu0 0.0
    %2724 = vmatprep.subr.mxu0 0.0
    %2725 = vmatpush2.xpose.msra.mxu0 0.0
    %2726 = vmatprep.subr.mxu0 0.0
    %2727 = vmatpush2.xpose.msra.mxu0 0.0
    %2728 = vmatprep.subr.mxu0 0.0
    %2729 = vmatpush2.xpose.msra.mxu0 0.0
    %2730 = vmatprep.subr.mxu0 0.0
    %2731 = vmatpush2.xpose.msra.mxu0 0.0
    %2732 = vmatprep.subr.mxu0 0.0
    %2733 = vmatpush2.xpose.msra.mxu0 0.0
    %2734 = vmatprep.subr.mxu0 0.0
    %2735 = vmatpush2.xpose.msra.mxu0 0.0
    %2736 = vmatprep.subr.mxu0 0.0
    %2737 = vmatpush2.xpose.msra.mxu0 0.0
    %2738 = vmatprep.subr.mxu0 0.0
    %2739 = vmatpush2.xpose.msra.mxu0 0.0
    %2740 = vmatprep.subr.mxu0 0.0
    %2741 = vmatpush2.xpose.msra.mxu0 0.0
    %2742 = vmatprep.subr.mxu0 0.0
    %2743 = vmatpush2.xpose.msra.mxu0 0.0
    %2744 = vmatprep.subr.mxu0 0.0
    %2745 = vmatpush2.xpose.msra.mxu0 0.0
    %2746 = vmatprep.subr.mxu0 0.0
    %2747 = vmatpush2.xpose.msra.mxu0 0.0
    %2748 = vmatprep.subr.mxu0 0.0
    %2749 = vmatpush2.xpose.msra.mxu0 0.0
    %2750 = vmatprep.mubr.f32.mxu0 0.0
    %2751 = vmatmul.mubr.f32.gmra.mxu0 %v2674
    %v2752 = vpop.f32.mrf.mxu0
    %v2753 = vadd.f32 %v2262, %v2752
    %v2754 = vpop.f32.mrf.mxu0
    %2755 = vmatprep.mubr.f32.mxu0 0.0
    %2756 = vmatmul.mubr.f32.gmra.mxu0 %v2676
    %v2757 = vpop.f32.mrf.mxu0
    %v2758 = vadd.f32 %v2263, %v2757
    %v2759 = vpop.f32.mrf.mxu0
    %2760 = vdwg.mxu0
    %v2761 = vsel %vm38, %v2753, -inf
    %2762 = vmax.xlane.f32.xlu0 %v2761
    %v2763 = vpop.xlane.xlu0 %2762
    %v2764 = vsel %vm38, %v2758, -inf
    %2765 = vmax.xlane.f32.xlu0 %v2764
    %v2766 = vpop.xlane.xlu0 %2765
    %v2767 = vsub.f32 %v2753, %v2763
    %v2768 = vsub.f32 %v2758, %v2766
    %v2769 = vmul.f32 %v2767, 1.442695
    %v2770 = vpow.pop %v2769
    %v2771 = vmul.f32 %v2768, 1.442695
    %v2772 = vpow.pop %v2771
    %v2773 = vsel %vm38, %v2770, 0.0
    %2774 = vadd.xlane.f32.xlu0 %v2773
    %v2775 = vpop.xlane.xlu0 %2774
    %v2776 = vsel %vm38, %v2772, 0.0
    %2777 = vadd.xlane.f32.xlu0 %v2776
    %v2778 = vpop.xlane.xlu0 %2777
    %v2779 = vrcp.pop %v2775
    %v2780 = vmul.f32 %v2770, %v2779
    %v2781 = vrcp.pop %v2778
    %v2782 = vmul.f32 %v2772, %v2781
    %2783 = vrot.lane.b32.xlu0 %v2436, 88
    %v2784 = vpop.permute.xlu0 %2783
    %2785 = vrot.lane.b32.xlu0 %v2441, 88
    %v2786 = vpop.permute.xlu0 %2785
    %2787 = vrot.lane.b32.xlu0 %v2446, 88
    %v2788 = vpop.permute.xlu0 %2787
    %2789 = vrot.lane.b32.xlu0 %v2451, 88
    %v2790 = vpop.permute.xlu0 %2789
    %v2796 = vsel %vm38, %v2780, 0
    %v2799 = vsel %vm38, %v2782, 0
    %2801 = vmatprep.subr.mxu0 0.0
    %2802 = vmatpush1.msra.mxu0 0.0
    %2803 = vmatprep.subr.mxu0 0.0
    %2804 = vmatpush1.msra.mxu0 0.0
    %2805 = vmatprep.subr.mxu0 0.0
    %2806 = vmatpush1.msra.mxu0 0.0
    %2807 = vmatprep.subr.mxu0 0.0
    %2808 = vmatpush1.msra.mxu0 0.0
    %2809 = vmatprep.subr.mxu0 0.0
    %2810 = vmatpush1.msra.mxu0 0.0
    %2811 = vmatprep.subr.mxu0 0.0
    %2812 = vmatpush1.msra.mxu0 0.0
    %2813 = vmatprep.subr.mxu0 0.0
    %2814 = vmatpush1.msra.mxu0 0.0
    %2815 = vmatprep.subr.mxu0 0.0
    %2816 = vmatpush1.msra.mxu0 0.0
    %2817 = vmatprep.subr.mxu0 0.0
    %2818 = vmatpush1.msra.mxu0 0.0
    %2819 = vmatprep.subr.mxu0 0.0
    %2820 = vmatpush1.msra.mxu0 0.0
    %2821 = vmatprep.subr.mxu0 0.0
    %2822 = vmatpush1.msra.mxu0 0.0
    %2823 = vmatprep.subr.mxu0 0.0
    %2824 = vmatpush1.msra.mxu0 0.0
    %2825 = vmatprep.subr.mxu0 0.0
    %2826 = vmatpush1.msra.mxu0 %v2790
    %2827 = vmatprep.subr.mxu0 0.0
    %2828 = vmatpush1.msra.mxu0 %v2788
    %2829 = vmatprep.subr.mxu0 0.0
    %2830 = vmatpush1.msra.mxu0 %v2786
    %2831 = vmatprep.subr.mxu0 0.0
    %2832 = vmatpush1.msra.mxu0 %v2784
    %2833 = vmatprep.subr.mxu0 0.0
    %2834 = vmatpush2.msra.mxu0 0.0
    %2835 = vmatprep.subr.mxu0 0.0
    %2836 = vmatpush2.msra.mxu0 0.0
    %2837 = vmatprep.subr.mxu0 0.0
    %2838 = vmatpush2.msra.mxu0 0.0
    %2839 = vmatprep.subr.mxu0 0.0
    %2840 = vmatpush2.msra.mxu0 0.0
    %2841 = vmatprep.subr.mxu0 0.0
    %2842 = vmatpush2.msra.mxu0 0.0
    %2843 = vmatprep.subr.mxu0 0.0
    %2844 = vmatpush2.msra.mxu0 0.0
    %2845 = vmatprep.subr.mxu0 0.0
    %2846 = vmatpush2.msra.mxu0 0.0
    %2847 = vmatprep.subr.mxu0 0.0
    %2848 = vmatpush2.msra.mxu0 0.0
    %2849 = vmatprep.subr.mxu0 0.0
    %2850 = vmatpush2.msra.mxu0 0.0
    %2851 = vmatprep.subr.mxu0 0.0
    %2852 = vmatpush2.msra.mxu0 0.0
    %2853 = vmatprep.subr.mxu0 0.0
    %2854 = vmatpush2.msra.mxu0 0.0
    %2855 = vmatprep.subr.mxu0 0.0
    %2856 = vmatpush2.msra.mxu0 0.0
    %2857 = vmatprep.subr.mxu0 0.0
    %2858 = vmatpush2.msra.mxu0 0.0
    %2859 = vmatprep.subr.mxu0 0.0
    %2860 = vmatpush2.msra.mxu0 0.0
    %2861 = vmatprep.subr.mxu0 0.0
    %2862 = vmatpush2.msra.mxu0 0.0
    %2863 = vmatprep.subr.mxu0 0.0
    %2864 = vmatpush2.msra.mxu0 0.0
    %2865 = vmatprep.mubr.f32.mxu0 0.0
    %2866 = vmatmul.mubr.f32.gmra.mxu0 %v2796
    %v2867 = vpop.f32.mrf.mxu0
    %v2868 = vadd.f32 0.0, %v2867
    %v2869 = vpop.f32.mrf.mxu0
    %2870 = vmatprep.mubr.f32.mxu0 0.0
    %2871 = vmatmul.mubr.f32.gmra.mxu0 %v2799
    %v2872 = vpop.f32.mrf.mxu0
    %v2873 = vadd.f32 0.0, %v2872
    %v2874 = vpop.f32.mrf.mxu0
    %2875 = vdwg.mxu0
    %2876 = vrot.lane.b32.xlu0 %v2340, 112
    %v2877 = vpop.permute.xlu0 %2876
    %2878 = vrot.lane.b32.xlu0 %v2345, 112
    %v2879 = vpop.permute.xlu0 %2878
    %2880 = vrot.lane.b32.xlu0 %v2436, 112
    %v2881 = vpop.permute.xlu0 %2880
    %2882 = vrot.lane.b32.xlu0 %v2441, 112
    %v2883 = vpop.permute.xlu0 %2882
    %2884 = vrot.lane.b32.xlu0 %v2446, 112
    %v2885 = vpop.permute.xlu0 %2884
    %2886 = vrot.lane.b32.xlu0 %v2451, 112
    %v2887 = vpop.permute.xlu0 %2886
    %v2888 = vsel %vm128, %v2877, 0
    %v2890 = vsel %vm128, %v2879, 0
    %v2892 = vsel %vm128, %v2881, 0
    %v2894 = vsel %vm128, %v2883, 0
    %v2896 = vsel %vm128, %v2885, 0
    %v2898 = vsel %vm128, %v2887, 0
    %2900 = vmatprep.subr.mxu0 0.0
    %2901 = vmatpush1.xpose.msra.mxu0 0.0
    %2902 = vmatprep.subr.mxu0 0.0
    %2903 = vmatpush1.xpose.msra.mxu0 0.0
    %2904 = vmatprep.subr.mxu0 0.0
    %2905 = vmatpush1.xpose.msra.mxu0 0.0
    %2906 = vmatprep.subr.mxu0 0.0
    %2907 = vmatpush1.xpose.msra.mxu0 0.0
    %2908 = vmatprep.subr.mxu0 0.0
    %2909 = vmatpush1.xpose.msra.mxu0 0.0
    %2910 = vmatprep.subr.mxu0 0.0
    %2911 = vmatpush1.xpose.msra.mxu0 0.0
    %2912 = vmatprep.subr.mxu0 0.0
    %2913 = vmatpush1.xpose.msra.mxu0 0.0
    %2914 = vmatprep.subr.mxu0 0.0
    %2915 = vmatpush1.xpose.msra.mxu0 0.0
    %2916 = vmatprep.subr.mxu0 0.0
    %2917 = vmatpush1.xpose.msra.mxu0 0.0
    %2918 = vmatprep.subr.mxu0 0.0
    %2919 = vmatpush1.xpose.msra.mxu0 0.0
    %2920 = vmatprep.subr.mxu0 0.0
    %2921 = vmatpush1.xpose.msra.mxu0 0.0
    %2922 = vmatprep.subr.mxu0 0.0
    %2923 = vmatpush1.xpose.msra.mxu0 0.0
    %2924 = vmatprep.subr.mxu0 0.0
    %2925 = vmatpush1.xpose.msra.mxu0 %v2898
    %2926 = vmatprep.subr.mxu0 0.0
    %2927 = vmatpush1.xpose.msra.mxu0 %v2896
    %2928 = vmatprep.subr.mxu0 0.0
    %2929 = vmatpush1.xpose.msra.mxu0 %v2894
    %2930 = vmatprep.subr.mxu0 0.0
    %2931 = vmatpush1.xpose.msra.mxu0 %v2892
    %2932 = vmatprep.subr.mxu0 0.0
    %2933 = vmatpush2.xpose.msra.mxu0 0.0
    %2934 = vmatprep.subr.mxu0 0.0
    %2935 = vmatpush2.xpose.msra.mxu0 0.0
    %2936 = vmatprep.subr.mxu0 0.0
    %2937 = vmatpush2.xpose.msra.mxu0 0.0
    %2938 = vmatprep.subr.mxu0 0.0
    %2939 = vmatpush2.xpose.msra.mxu0 0.0
    %2940 = vmatprep.subr.mxu0 0.0
    %2941 = vmatpush2.xpose.msra.mxu0 0.0
    %2942 = vmatprep.subr.mxu0 0.0
    %2943 = vmatpush2.xpose.msra.mxu0 0.0
    %2944 = vmatprep.subr.mxu0 0.0
    %2945 = vmatpush2.xpose.msra.mxu0 0.0
    %2946 = vmatprep.subr.mxu0 0.0
    %2947 = vmatpush2.xpose.msra.mxu0 0.0
    %2948 = vmatprep.subr.mxu0 0.0
    %2949 = vmatpush2.xpose.msra.mxu0 0.0
    %2950 = vmatprep.subr.mxu0 0.0
    %2951 = vmatpush2.xpose.msra.mxu0 0.0
    %2952 = vmatprep.subr.mxu0 0.0
    %2953 = vmatpush2.xpose.msra.mxu0 0.0
    %2954 = vmatprep.subr.mxu0 0.0
    %2955 = vmatpush2.xpose.msra.mxu0 0.0
    %2956 = vmatprep.subr.mxu0 0.0
    %2957 = vmatpush2.xpose.msra.mxu0 0.0
    %2958 = vmatprep.subr.mxu0 0.0
    %2959 = vmatpush2.xpose.msra.mxu0 0.0
    %2960 = vmatprep.subr.mxu0 0.0
    %2961 = vmatpush2.xpose.msra.mxu0 0.0
    %2962 = vmatprep.subr.mxu0 0.0
    %2963 = vmatpush2.xpose.msra.mxu0 0.0
    %2964 = vmatprep.mubr.f32.mxu0 0.0
    %2965 = vmatmul.mubr.f32.gmra.mxu0 %v2888
    %v2966 = vpop.f32.mrf.mxu0
    %v2967 = vadd.f32 %v2262, %v2966
    %v2968 = vpop.f32.mrf.mxu0
    %2969 = vmatprep.mubr.f32.mxu0 0.0
    %2970 = vmatmul.mubr.f32.gmra.mxu0 %v2890
    %v2971 = vpop.f32.mrf.mxu0
    %v2972 = vadd.f32 %v2263, %v2971
    %v2973 = vpop.f32.mrf.mxu0
    %2974 = vdwg.mxu0
    %v2975 = vsel %vm38, %v2967, -inf
    %2976 = vmax.xlane.f32.xlu0 %v2975
    %v2977 = vpop.xlane.xlu0 %2976
    %v2978 = vsel %vm38, %v2972, -inf
    %2979 = vmax.xlane.f32.xlu0 %v2978
    %v2980 = vpop.xlane.xlu0 %2979
    %v2981 = vsub.f32 %v2967, %v2977
    %v2982 = vsub.f32 %v2972, %v2980
    %v2983 = vmul.f32 %v2981, 1.442695
    %v2984 = vpow.pop %v2983
    %v2985 = vmul.f32 %v2982, 1.442695
    %v2986 = vpow.pop %v2985
    %v2987 = vsel %vm38, %v2984, 0.0
    %2988 = vadd.xlane.f32.xlu0 %v2987
    %v2989 = vpop.xlane.xlu0 %2988
    %v2990 = vsel %vm38, %v2986, 0.0
    %2991 = vadd.xlane.f32.xlu0 %v2990
    %v2992 = vpop.xlane.xlu0 %2991
    %v2993 = vrcp.pop %v2989
    %v2994 = vmul.f32 %v2984, %v2993
    %v2995 = vrcp.pop %v2992
    %v2996 = vmul.f32 %v2986, %v2995
    %2997 = vrot.lane.b32.xlu0 %v2436, 80
    %v2998 = vpop.permute.xlu0 %2997
    %2999 = vrot.lane.b32.xlu0 %v2441, 80
    %v3000 = vpop.permute.xlu0 %2999
    %3001 = vrot.lane.b32.xlu0 %v2446, 80
    %v3002 = vpop.permute.xlu0 %3001
    %3003 = vrot.lane.b32.xlu0 %v2451, 80
    %v3004 = vpop.permute.xlu0 %3003
    %v3010 = vsel %vm38, %v2994, 0
    %v3013 = vsel %vm38, %v2996, 0
    %3015 = vmatprep.subr.mxu0 0.0
    %3016 = vmatpush1.msra.mxu0 0.0
    %3017 = vmatprep.subr.mxu0 0.0
    %3018 = vmatpush1.msra.mxu0 0.0
    %3019 = vmatprep.subr.mxu0 0.0
    %3020 = vmatpush1.msra.mxu0 0.0
    %3021 = vmatprep.subr.mxu0 0.0
    %3022 = vmatpush1.msra.mxu0 0.0
    %3023 = vmatprep.subr.mxu0 0.0
    %3024 = vmatpush1.msra.mxu0 0.0
    %3025 = vmatprep.subr.mxu0 0.0
    %3026 = vmatpush1.msra.mxu0 0.0
    %3027 = vmatprep.subr.mxu0 0.0
    %3028 = vmatpush1.msra.mxu0 0.0
    %3029 = vmatprep.subr.mxu0 0.0
    %3030 = vmatpush1.msra.mxu0 0.0
    %3031 = vmatprep.subr.mxu0 0.0
    %3032 = vmatpush1.msra.mxu0 0.0
    %3033 = vmatprep.subr.mxu0 0.0
    %3034 = vmatpush1.msra.mxu0 0.0
    %3035 = vmatprep.subr.mxu0 0.0
    %3036 = vmatpush1.msra.mxu0 0.0
    %3037 = vmatprep.subr.mxu0 0.0
    %3038 = vmatpush1.msra.mxu0 0.0
    %3039 = vmatprep.subr.mxu0 0.0
    %3040 = vmatpush1.msra.mxu0 %v3004
    %3041 = vmatprep.subr.mxu0 0.0
    %3042 = vmatpush1.msra.mxu0 %v3002
    %3043 = vmatprep.subr.mxu0 0.0
    %3044 = vmatpush1.msra.mxu0 %v3000
    %3045 = vmatprep.subr.mxu0 0.0
    %3046 = vmatpush1.msra.mxu0 %v2998
    %3047 = vmatprep.subr.mxu0 0.0
    %3048 = vmatpush2.msra.mxu0 0.0
    %3049 = vmatprep.subr.mxu0 0.0
    %3050 = vmatpush2.msra.mxu0 0.0
    %3051 = vmatprep.subr.mxu0 0.0
    %3052 = vmatpush2.msra.mxu0 0.0
    %3053 = vmatprep.subr.mxu0 0.0
    %3054 = vmatpush2.msra.mxu0 0.0
    %3055 = vmatprep.subr.mxu0 0.0
    %3056 = vmatpush2.msra.mxu0 0.0
    %3057 = vmatprep.subr.mxu0 0.0
    %3058 = vmatpush2.msra.mxu0 0.0
    %3059 = vmatprep.subr.mxu0 0.0
    %3060 = vmatpush2.msra.mxu0 0.0
    %3061 = vmatprep.subr.mxu0 0.0
    %3062 = vmatpush2.msra.mxu0 0.0
    %3063 = vmatprep.subr.mxu0 0.0
    %3064 = vmatpush2.msra.mxu0 0.0
    %3065 = vmatprep.subr.mxu0 0.0
    %3066 = vmatpush2.msra.mxu0 0.0
    %3067 = vmatprep.subr.mxu0 0.0
    %3068 = vmatpush2.msra.mxu0 0.0
    %3069 = vmatprep.subr.mxu0 0.0
    %3070 = vmatpush2.msra.mxu0 0.0
    %3071 = vmatprep.subr.mxu0 0.0
    %3072 = vmatpush2.msra.mxu0 0.0
    %3073 = vmatprep.subr.mxu0 0.0
    %3074 = vmatpush2.msra.mxu0 0.0
    %3075 = vmatprep.subr.mxu0 0.0
    %3076 = vmatpush2.msra.mxu0 0.0
    %3077 = vmatprep.subr.mxu0 0.0
    %3078 = vmatpush2.msra.mxu0 0.0
    %3079 = vmatprep.mubr.f32.mxu0 0.0
    %3080 = vmatmul.mubr.f32.gmra.mxu0 %v3010
    %v3081 = vpop.f32.mrf.mxu0
    %v3082 = vadd.f32 0.0, %v3081
    %v3083 = vpop.f32.mrf.mxu0
    %3084 = vmatprep.mubr.f32.mxu0 0.0
    %3085 = vmatmul.mubr.f32.gmra.mxu0 %v3013
    %v3086 = vpop.f32.mrf.mxu0
    %v3087 = vadd.f32 0.0, %v3086
    %v3088 = vpop.f32.mrf.mxu0
    %3089 = vdwg.mxu0
    %3090 = vrot.lane.b32.xlu0 %v2340, 104
    %v3091 = vpop.permute.xlu0 %3090
    %3092 = vrot.lane.b32.xlu0 %v2345, 104
    %v3093 = vpop.permute.xlu0 %3092
    %3094 = vrot.lane.b32.xlu0 %v2436, 104
    %v3095 = vpop.permute.xlu0 %3094
    %3096 = vrot.lane.b32.xlu0 %v2441, 104
    %v3097 = vpop.permute.xlu0 %3096
    %3098 = vrot.lane.b32.xlu0 %v2446, 104
    %v3099 = vpop.permute.xlu0 %3098
    %3100 = vrot.lane.b32.xlu0 %v2451, 104
    %v3101 = vpop.permute.xlu0 %3100
    %v3102 = vsel %vm128, %v3091, 0
    %v3104 = vsel %vm128, %v3093, 0
    %v3106 = vsel %vm128, %v3095, 0
    %v3108 = vsel %vm128, %v3097, 0
    %v3110 = vsel %vm128, %v3099, 0
    %v3112 = vsel %vm128, %v3101, 0
    %3114 = vmatprep.subr.mxu0 0.0
    %3115 = vmatpush1.xpose.msra.mxu0 0.0
    %3116 = vmatprep.subr.mxu0 0.0
    %3117 = vmatpush1.xpose.msra.mxu0 0.0
    %3118 = vmatprep.subr.mxu0 0.0
    %3119 = vmatpush1.xpose.msra.mxu0 0.0
    %3120 = vmatprep.subr.mxu0 0.0
    %3121 = vmatpush1.xpose.msra.mxu0 0.0
    %3122 = vmatprep.subr.mxu0 0.0
    %3123 = vmatpush1.xpose.msra.mxu0 0.0
    %3124 = vmatprep.subr.mxu0 0.0
    %3125 = vmatpush1.xpose.msra.mxu0 0.0
    %3126 = vmatprep.subr.mxu0 0.0
    %3127 = vmatpush1.xpose.msra.mxu0 0.0
    %3128 = vmatprep.subr.mxu0 0.0
    %3129 = vmatpush1.xpose.msra.mxu0 0.0
    %3130 = vmatprep.subr.mxu0 0.0
    %3131 = vmatpush1.xpose.msra.mxu0 0.0
    %3132 = vmatprep.subr.mxu0 0.0
    %3133 = vmatpush1.xpose.msra.mxu0 0.0
    %3134 = vmatprep.subr.mxu0 0.0
    %3135 = vmatpush1.xpose.msra.mxu0 0.0
    %3136 = vmatprep.subr.mxu0 0.0
    %3137 = vmatpush1.xpose.msra.mxu0 0.0
    %3138 = vmatprep.subr.mxu0 0.0
    %3139 = vmatpush1.xpose.msra.mxu0 %v3112
    %3140 = vmatprep.subr.mxu0 0.0
    %3141 = vmatpush1.xpose.msra.mxu0 %v3110
    %3142 = vmatprep.subr.mxu0 0.0
    %3143 = vmatpush1.xpose.msra.mxu0 %v3108
    %3144 = vmatprep.subr.mxu0 0.0
    %3145 = vmatpush1.xpose.msra.mxu0 %v3106
    %3146 = vmatprep.subr.mxu0 0.0
    %3147 = vmatpush2.xpose.msra.mxu0 0.0
    %3148 = vmatprep.subr.mxu0 0.0
    %3149 = vmatpush2.xpose.msra.mxu0 0.0
    %3150 = vmatprep.subr.mxu0 0.0
    %3151 = vmatpush2.xpose.msra.mxu0 0.0
    %3152 = vmatprep.subr.mxu0 0.0
    %3153 = vmatpush2.xpose.msra.mxu0 0.0
    %3154 = vmatprep.subr.mxu0 0.0
    %3155 = vmatpush2.xpose.msra.mxu0 0.0
    %3156 = vmatprep.subr.mxu0 0.0
    %3157 = vmatpush2.xpose.msra.mxu0 0.0
    %3158 = vmatprep.subr.mxu0 0.0
    %3159 = vmatpush2.xpose.msra.mxu0 0.0
    %3160 = vmatprep.subr.mxu0 0.0
    %3161 = vmatpush2.xpose.msra.mxu0 0.0
    %3162 = vmatprep.subr.mxu0 0.0
    %3163 = vmatpush2.xpose.msra.mxu0 0.0
    %3164 = vmatprep.subr.mxu0 0.0
    %3165 = vmatpush2.xpose.msra.mxu0 0.0
    %3166 = vmatprep.subr.mxu0 0.0
    %3167 = vmatpush2.xpose.msra.mxu0 0.0
    %3168 = vmatprep.subr.mxu0 0.0
    %3169 = vmatpush2.xpose.msra.mxu0 0.0
    %3170 = vmatprep.subr.mxu0 0.0
    %3171 = vmatpush2.xpose.msra.mxu0 0.0
    %3172 = vmatprep.subr.mxu0 0.0
    %3173 = vmatpush2.xpose.msra.mxu0 0.0
    %3174 = vmatprep.subr.mxu0 0.0
    %3175 = vmatpush2.xpose.msra.mxu0 0.0
    %3176 = vmatprep.subr.mxu0 0.0
    %3177 = vmatpush2.xpose.msra.mxu0 0.0
    %3178 = vmatprep.mubr.f32.mxu0 0.0
    %3179 = vmatmul.mubr.f32.gmra.mxu0 %v3102
    %v3180 = vpop.f32.mrf.mxu0
    %v3181 = vadd.f32 %v2262, %v3180
    %v3182 = vpop.f32.mrf.mxu0
    %3183 = vmatprep.mubr.f32.mxu0 0.0
    %3184 = vmatmul.mubr.f32.gmra.mxu0 %v3104
    %v3185 = vpop.f32.mrf.mxu0
    %v3186 = vadd.f32 %v2263, %v3185
    %v3187 = vpop.f32.mrf.mxu0
    %3188 = vdwg.mxu0
    %v3189 = vsel %vm38, %v3181, -inf
    %3190 = vmax.xlane.f32.xlu0 %v3189
    %v3191 = vpop.xlane.xlu0 %3190
    %v3192 = vsel %vm38, %v3186, -inf
    %3193 = vmax.xlane.f32.xlu0 %v3192
    %v3194 = vpop.xlane.xlu0 %3193
    %v3195 = vsub.f32 %v3181, %v3191
    %v3196 = vsub.f32 %v3186, %v3194
    %v3197 = vmul.f32 %v3195, 1.442695
    %v3198 = vpow.pop %v3197
    %v3199 = vmul.f32 %v3196, 1.442695
    %v3200 = vpow.pop %v3199
    %v3201 = vsel %vm38, %v3198, 0.0
    %3202 = vadd.xlane.f32.xlu0 %v3201
    %v3203 = vpop.xlane.xlu0 %3202
    %v3204 = vsel %vm38, %v3200, 0.0
    %3205 = vadd.xlane.f32.xlu0 %v3204
    %v3206 = vpop.xlane.xlu0 %3205
    %v3207 = vrcp.pop %v3203
    %v3208 = vmul.f32 %v3198, %v3207
    %v3209 = vrcp.pop %v3206
    %v3210 = vmul.f32 %v3200, %v3209
    %3211 = vrot.lane.b32.xlu0 %v2436, 72
    %v3212 = vpop.permute.xlu0 %3211
    %3213 = vrot.lane.b32.xlu0 %v2441, 72
    %v3214 = vpop.permute.xlu0 %3213
    %3215 = vrot.lane.b32.xlu0 %v2446, 72
    %v3216 = vpop.permute.xlu0 %3215
    %3217 = vrot.lane.b32.xlu0 %v2451, 72
    %v3218 = vpop.permute.xlu0 %3217
    %v3224 = vsel %vm38, %v3208, 0
    %v3227 = vsel %vm38, %v3210, 0
    %3229 = vmatprep.subr.mxu0 0.0
    %3230 = vmatpush1.msra.mxu0 0.0
    %3231 = vmatprep.subr.mxu0 0.0
    %3232 = vmatpush1.msra.mxu0 0.0
    %3233 = vmatprep.subr.mxu0 0.0
    %3234 = vmatpush1.msra.mxu0 0.0
    %3235 = vmatprep.subr.mxu0 0.0
    %3236 = vmatpush1.msra.mxu0 0.0
    %3237 = vmatprep.subr.mxu0 0.0
    %3238 = vmatpush1.msra.mxu0 0.0
    %3239 = vmatprep.subr.mxu0 0.0
    %3240 = vmatpush1.msra.mxu0 0.0
    %3241 = vmatprep.subr.mxu0 0.0
    %3242 = vmatpush1.msra.mxu0 0.0
    %3243 = vmatprep.subr.mxu0 0.0
    %3244 = vmatpush1.msra.mxu0 0.0
    %3245 = vmatprep.subr.mxu0 0.0
    %3246 = vmatpush1.msra.mxu0 0.0
    %3247 = vmatprep.subr.mxu0 0.0
    %3248 = vmatpush1.msra.mxu0 0.0
    %3249 = vmatprep.subr.mxu0 0.0
    %3250 = vmatpush1.msra.mxu0 0.0
    %3251 = vmatprep.subr.mxu0 0.0
    %3252 = vmatpush1.msra.mxu0 0.0
    %3253 = vmatprep.subr.mxu0 0.0
    %3254 = vmatpush1.msra.mxu0 %v3218
    %3255 = vmatprep.subr.mxu0 0.0
    %3256 = vmatpush1.msra.mxu0 %v3216
    %3257 = vmatprep.subr.mxu0 0.0
    %3258 = vmatpush1.msra.mxu0 %v3214
    %3259 = vmatprep.subr.mxu0 0.0
    %3260 = vmatpush1.msra.mxu0 %v3212
    %3261 = vmatprep.subr.mxu0 0.0
    %3262 = vmatpush2.msra.mxu0 0.0
    %3263 = vmatprep.subr.mxu0 0.0
    %3264 = vmatpush2.msra.mxu0 0.0
    %3265 = vmatprep.subr.mxu0 0.0
    %3266 = vmatpush2.msra.mxu0 0.0
    %3267 = vmatprep.subr.mxu0 0.0
    %3268 = vmatpush2.msra.mxu0 0.0
    %3269 = vmatprep.subr.mxu0 0.0
    %3270 = vmatpush2.msra.mxu0 0.0
    %3271 = vmatprep.subr.mxu0 0.0
    %3272 = vmatpush2.msra.mxu0 0.0
    %3273 = vmatprep.subr.mxu0 0.0
    %3274 = vmatpush2.msra.mxu0 0.0
    %3275 = vmatprep.subr.mxu0 0.0
    %3276 = vmatpush2.msra.mxu0 0.0
    %3277 = vmatprep.subr.mxu0 0.0
    %3278 = vmatpush2.msra.mxu0 0.0
    %3279 = vmatprep.subr.mxu0 0.0
    %3280 = vmatpush2.msra.mxu0 0.0
    %3281 = vmatprep.subr.mxu0 0.0
    %3282 = vmatpush2.msra.mxu0 0.0
    %3283 = vmatprep.subr.mxu0 0.0
    %3284 = vmatpush2.msra.mxu0 0.0
    %3285 = vmatprep.subr.mxu0 0.0
    %3286 = vmatpush2.msra.mxu0 0.0
    %3287 = vmatprep.subr.mxu0 0.0
    %3288 = vmatpush2.msra.mxu0 0.0
    %3289 = vmatprep.subr.mxu0 0.0
    %3290 = vmatpush2.msra.mxu0 0.0
    %3291 = vmatprep.subr.mxu0 0.0
    %3292 = vmatpush2.msra.mxu0 0.0
    %3293 = vmatprep.mubr.f32.mxu0 0.0
    %3294 = vmatmul.mubr.f32.gmra.mxu0 %v3224
    %v3295 = vpop.f32.mrf.mxu0
    %v3296 = vadd.f32 0.0, %v3295
    %v3297 = vpop.f32.mrf.mxu0
    %3298 = vmatprep.mubr.f32.mxu0 0.0
    %3299 = vmatmul.mubr.f32.gmra.mxu0 %v3227
    %v3300 = vpop.f32.mrf.mxu0
    %v3301 = vadd.f32 0.0, %v3300
    %v3302 = vpop.f32.mrf.mxu0
    %3303 = vdwg.mxu0
    %3306 = vrot.lane.b32.xlu0 %v2868, 8
    %v3307 = vpop.permute.xlu0 %3306
    %3308 = vrot.lane.b32.xlu0 %v2873, 8
    %v3309 = vpop.permute.xlu0 %3308
    %3314 = vrot.lane.b32.xlu0 %v3082, 16
    %v3315 = vpop.permute.xlu0 %3314
    %3316 = vrot.lane.b32.xlu0 %v3087, 16
    %v3317 = vpop.permute.xlu0 %3316
    %3322 = vrot.lane.b32.xlu0 %v3296, 24
    %v3323 = vpop.permute.xlu0 %3322
    %3324 = vrot.lane.b32.xlu0 %v3301, 24
    %v3325 = vpop.permute.xlu0 %3324
    %v3328 = vsel %vm128, %v2654, %v3307
    %v3329 = vsel %vm128, %v2659, %v3309
    %v3330 = vsel %vm212, %v3328, %v3315
    %v3331 = vsel %vm212, %v3329, %v3317
    %v3332 = vsel %vm950, %v3330, %v3323
    %v3333 = vsel %vm950, %v3331, %v3325
    %v3334 = vld [vmem:[%s6 + $0xe0] sm:$0xff]
    %v3335 = vld [vmem:[%s6 + $0xe8] sm:$0xff]
    %v3336 = vld [vmem:[%s6 + $0xf0] sm:$0xff]
    %v3337 = vld [vmem:[%s6 + $0xf8] sm:$0xff]
    %v3338 = vld [vmem:[%s6 + $0x167] sm:$0x1]
    %v3339 = vlaneseq
    %v3340 = vshrl.u32 %v3339, 7
    %v3341 = vsub.s32 0, %v3340
    %v3342 = vrot.slane %v3338, %v3341
    %v3344 = vsel %vm38, %v3332, 0
    %v3347 = vsel %vm38, %v3333, 0
    %3349 = vmatprep.subr.mxu0 0.0
    %3350 = vmatpush1.msra.mxu0 0.0
    %3351 = vmatprep.subr.mxu0 0.0
    %3352 = vmatpush1.msra.mxu0 0.0
    %3353 = vmatprep.subr.mxu0 0.0
    %3354 = vmatpush1.msra.mxu0 0.0
    %3355 = vmatprep.subr.mxu0 0.0
    %3356 = vmatpush1.msra.mxu0 0.0
    %3357 = vmatprep.subr.mxu0 0.0
    %3358 = vmatpush1.msra.mxu0 0.0
    %3359 = vmatprep.subr.mxu0 0.0
    %3360 = vmatpush1.msra.mxu0 0.0
    %3361 = vmatprep.subr.mxu0 0.0
    %3362 = vmatpush1.msra.mxu0 0.0
    %3363 = vmatprep.subr.mxu0 0.0
    %3364 = vmatpush1.msra.mxu0 0.0
    %3365 = vmatprep.subr.mxu0 0.0
    %3366 = vmatpush1.msra.mxu0 0.0
    %3367 = vmatprep.subr.mxu0 0.0
    %3368 = vmatpush1.msra.mxu0 0.0
    %3369 = vmatprep.subr.mxu0 0.0
    %3370 = vmatpush1.msra.mxu0 0.0
    %3371 = vmatprep.subr.mxu0 0.0
    %3372 = vmatpush1.msra.mxu0 0.0
    %3373 = vmatprep.subr.mxu0 0.0
    %3374 = vmatpush1.msra.mxu0 %v3337
    %3375 = vmatprep.subr.mxu0 0.0
    %3376 = vmatpush1.msra.mxu0 %v3336
    %3377 = vmatprep.subr.mxu0 0.0
    %3378 = vmatpush1.msra.mxu0 %v3335
    %3379 = vmatprep.subr.mxu0 0.0
    %3380 = vmatpush1.msra.mxu0 %v3334
    %3381 = vmatprep.subr.mxu0 0.0
    %3382 = vmatpush2.msra.mxu0 0.0
    %3383 = vmatprep.subr.mxu0 0.0
    %3384 = vmatpush2.msra.mxu0 0.0
    %3385 = vmatprep.subr.mxu0 0.0
    %3386 = vmatpush2.msra.mxu0 0.0
    %3387 = vmatprep.subr.mxu0 0.0
    %3388 = vmatpush2.msra.mxu0 0.0
    %3389 = vmatprep.subr.mxu0 0.0
    %3390 = vmatpush2.msra.mxu0 0.0
    %3391 = vmatprep.subr.mxu0 0.0
    %3392 = vmatpush2.msra.mxu0 0.0
    %3393 = vmatprep.subr.mxu0 0.0
    %3394 = vmatpush2.msra.mxu0 0.0
    %3395 = vmatprep.subr.mxu0 0.0
    %3396 = vmatpush2.msra.mxu0 0.0
    %3397 = vmatprep.subr.mxu0 0.0
    %3398 = vmatpush2.msra.mxu0 0.0
    %3399 = vmatprep.subr.mxu0 0.0
    %3400 = vmatpush2.msra.mxu0 0.0
    %3401 = vmatprep.subr.mxu0 0.0
    %3402 = vmatpush2.msra.mxu0 0.0
    %3403 = vmatprep.subr.mxu0 0.0
    %3404 = vmatpush2.msra.mxu0 0.0
    %3405 = vmatprep.subr.mxu0 0.0
    %3406 = vmatpush2.msra.mxu0 0.0
    %3407 = vmatprep.subr.mxu0 0.0
    %3408 = vmatpush2.msra.mxu0 0.0
    %3409 = vmatprep.subr.mxu0 0.0
    %3410 = vmatpush2.msra.mxu0 0.0
    %3411 = vmatprep.subr.mxu0 0.0
    %3412 = vmatpush2.msra.mxu0 0.0
    %3413 = vmatprep.mubr.f32.mxu0 0.0
    %3414 = vmatmul.mubr.f32.gmra.mxu0 %v3344
    %v3415 = vpop.f32.mrf.mxu0
    %v3416 = vadd.f32 %v3342, %v3415
    %v3417 = vpop.f32.mrf.mxu0
    %3418 = vmatprep.mubr.f32.mxu0 0.0
    %3419 = vmatmul.mubr.f32.gmra.mxu0 %v3347
    %v3420 = vpop.f32.mrf.mxu0
    %v3421 = vadd.f32 %v3342, %v3420
    %v3422 = vpop.f32.mrf.mxu0
    %3423 = vdwg.mxu0
    %v3424 = vmul.f32 %v1084, 4.0
    %v3425 = vmul.f32 %v1085, 4.0
    %v3426 = vadd.f32 %v3424, %v2250
    %v3427 = vadd.f32 %v3425, %v2255
    %v3428 = vadd.f32 %v3426, %v3416
    %v3429 = vadd.f32 %v3427, %v3421
    %v3430 = vsel %vm38, %v3428, 0.0
    %3431 = vadd.xlane.f32.xlu0 %v3430
    %v3432 = vpop.xlane.xlu0 %3431
    %v3433 = vsel %vm38, %v3429, 0.0
    %3434 = vadd.xlane.f32.xlu0 %v3433
    %v3435 = vpop.xlane.xlu0 %3434
    %v3436 = vmul.f32 %v3432, %v1051
    %v3437 = vmul.f32 %v3435, %v1051
    %v3438 = vsub.f32 %v3428, %v3436
    %v3439 = vsub.f32 %v3429, %v3437
    %v3440 = vmul.f32 %v3438, %v3438
    %v3441 = vmul.f32 %v3439, %v3439
    %v3442 = vsel %vm38, %v3440, 0.0
    %3443 = vadd.xlane.f32.xlu0 %v3442
    %v3444 = vpop.xlane.xlu0 %3443
    %v3445 = vsel %vm38, %v3441, 0.0
    %3446 = vadd.xlane.f32.xlu0 %v3445
    %v3447 = vpop.xlane.xlu0 %3446
    %v3448 = vmul.f32 %v3444, %v1051
    %v3449 = vmul.f32 %v3447, %v1051
    %v3450 = vadd.f32 %v3448, 1e-05
    %v3451 = vadd.f32 %v3449, 1e-05
    %v3452 = vrsqrt.pop %v3450
    %v3453 = vrsqrt.pop %v3451
    %v3454 = vmul.f32 %v3438, %v3452
    %v3455 = vmul.f32 %v3439, %v3453
    %v3456 = vld [vmem:[%s6 + $0x16c] sm:$0x1]
    %v3457 = vlaneseq
    %v3458 = vshrl.u32 %v3457, 7
    %v3459 = vsub.s32 0, %v3458
    %v3460 = vrot.slane %v3456, %v3459
    %v3461 = vmul.f32 %v3454, %v3460
    %v3462 = vmul.f32 %v3455, %v3460
    %v3463 = vld [vmem:[%s6 + $0x16d] sm:$0x1]
    %v3464 = vlaneseq
    %v3465 = vshrl.u32 %v3464, 7
    %v3466 = vsub.s32 0, %v3465
    %v3467 = vrot.slane %v3463, %v3466
    %v3468 = vadd.f32 %v3461, %v3467
    %v3469 = vadd.f32 %v3462, %v3467
    %v3470 = vld [vmem:[%s6 + $0x100] sm:$0xff]
    %v3471 = vld [vmem:[%s6 + $0x108] sm:$0xff]
    %v3472 = vld [vmem:[%s6 + $0x110] sm:$0xff]
    %v3473 = vld [vmem:[%s6 + $0x118] sm:$0xff]
    %v3474 = vld [vmem:[%s6 + $0x168] sm:$0x1]
    %v3475 = vlaneseq
    %v3476 = vshrl.u32 %v3475, 7
    %v3477 = vsub.s32 0, %v3476
    %v3478 = vrot.slane %v3474, %v3477
    %v3480 = vsel %vm38, %v3468, 0
    %v3483 = vsel %vm38, %v3469, 0
    %3485 = vmatprep.subr.mxu0 0.0
    %3486 = vmatpush1.msra.mxu0 0.0
    %3487 = vmatprep.subr.mxu0 0.0
    %3488 = vmatpush1.msra.mxu0 0.0
    %3489 = vmatprep.subr.mxu0 0.0
    %3490 = vmatpush1.msra.mxu0 0.0
    %3491 = vmatprep.subr.mxu0 0.0
    %3492 = vmatpush1.msra.mxu0 0.0
    %3493 = vmatprep.subr.mxu0 0.0
    %3494 = vmatpush1.msra.mxu0 0.0
    %3495 = vmatprep.subr.mxu0 0.0
    %3496 = vmatpush1.msra.mxu0 0.0
    %3497 = vmatprep.subr.mxu0 0.0
    %3498 = vmatpush1.msra.mxu0 0.0
    %3499 = vmatprep.subr.mxu0 0.0
    %3500 = vmatpush1.msra.mxu0 0.0
    %3501 = vmatprep.subr.mxu0 0.0
    %3502 = vmatpush1.msra.mxu0 0.0
    %3503 = vmatprep.subr.mxu0 0.0
    %3504 = vmatpush1.msra.mxu0 0.0
    %3505 = vmatprep.subr.mxu0 0.0
    %3506 = vmatpush1.msra.mxu0 0.0
    %3507 = vmatprep.subr.mxu0 0.0
    %3508 = vmatpush1.msra.mxu0 0.0
    %3509 = vmatprep.subr.mxu0 0.0
    %3510 = vmatpush1.msra.mxu0 %v3473
    %3511 = vmatprep.subr.mxu0 0.0
    %3512 = vmatpush1.msra.mxu0 %v3472
    %3513 = vmatprep.subr.mxu0 0.0
    %3514 = vmatpush1.msra.mxu0 %v3471
    %3515 = vmatprep.subr.mxu0 0.0
    %3516 = vmatpush1.msra.mxu0 %v3470
    %3517 = vmatprep.subr.mxu0 0.0
    %3518 = vmatpush2.msra.mxu0 0.0
    %3519 = vmatprep.subr.mxu0 0.0
    %3520 = vmatpush2.msra.mxu0 0.0
    %3521 = vmatprep.subr.mxu0 0.0
    %3522 = vmatpush2.msra.mxu0 0.0
    %3523 = vmatprep.subr.mxu0 0.0
    %3524 = vmatpush2.msra.mxu0 0.0
    %3525 = vmatprep.subr.mxu0 0.0
    %3526 = vmatpush2.msra.mxu0 0.0
    %3527 = vmatprep.subr.mxu0 0.0
    %3528 = vmatpush2.msra.mxu0 0.0
    %3529 = vmatprep.subr.mxu0 0.0
    %3530 = vmatpush2.msra.mxu0 0.0
    %3531 = vmatprep.subr.mxu0 0.0
    %3532 = vmatpush2.msra.mxu0 0.0
    %3533 = vmatprep.subr.mxu0 0.0
    %3534 = vmatpush2.msra.mxu0 0.0
    %3535 = vmatprep.subr.mxu0 0.0
    %3536 = vmatpush2.msra.mxu0 0.0
    %3537 = vmatprep.subr.mxu0 0.0
    %3538 = vmatpush2.msra.mxu0 0.0
    %3539 = vmatprep.subr.mxu0 0.0
    %3540 = vmatpush2.msra.mxu0 0.0
    %3541 = vmatprep.subr.mxu0 0.0
    %3542 = vmatpush2.msra.mxu0 0.0
    %3543 = vmatprep.subr.mxu0 0.0
    %3544 = vmatpush2.msra.mxu0 0.0
    %3545 = vmatprep.subr.mxu0 0.0
    %3546 = vmatpush2.msra.mxu0 0.0
    %3547 = vmatprep.subr.mxu0 0.0
    %3548 = vmatpush2.msra.mxu0 0.0
    %3549 = vmatprep.mubr.f32.mxu0 0.0
    %3550 = vmatmul.mubr.f32.gmra.mxu0 %v3480
    %v3551 = vpop.f32.mrf.mxu0
    %v3552 = vadd.f32 %v3478, %v3551
    %v3553 = vpop.f32.mrf.mxu0
    %3554 = vmatprep.mubr.f32.mxu0 0.0
    %3555 = vmatmul.mubr.f32.gmra.mxu0 %v3483
    %v3556 = vpop.f32.mrf.mxu0
    %v3557 = vadd.f32 %v3478, %v3556
    %v3558 = vpop.f32.mrf.mxu0
    %3559 = vdwg.mxu0
    %v3560 = vmul.f32 %v3552, 0.5
    %v3561 = vmul.f32 %v3557, 0.5
    %v3562 = vmul.f32 %v3552, 0.70710677
    %v3563 = vmul.f32 %v3557, 0.70710677
    %v3564 = verf.f32.pop %v3562
    %v3565 = verf.f32.pop %v3563
    %v3566 = vadd.f32 %v3564, 1.0
    %v3567 = vadd.f32 %v3565, 1.0
    %v3568 = vmul.f32 %v3560, %v3566
    %v3569 = vmul.f32 %v3561, %v3567
    %v3570 = vld [vmem:[%s6 + $0x120] sm:$0xff]
    %v3571 = vld [vmem:[%s6 + $0x128] sm:$0xff]
    %v3572 = vld [vmem:[%s6 + $0x130] sm:$0xff]
    %v3573 = vld [vmem:[%s6 + $0x138] sm:$0xff]
    %v3574 = vld [vmem:[%s6 + $0x140] sm:$0xff]
    %v3575 = vld [vmem:[%s6 + $0x148] sm:$0xff]
    %v3576 = vld [vmem:[%s6 + $0x150] sm:$0xff]
    %v3577 = vld [vmem:[%s6 + $0x158] sm:$0xff]
    %v3578 = vld [vmem:[%s6 + $0x169] sm:$0x1]
    %v3579 = vlaneseq
    %v3580 = vshrl.u32 %v3579, 7
    %v3581 = vsub.s32 0, %v3580
    %v3582 = vrot.slane %v3578, %v3581
    %vm3583 = vcmask 523264
    %v3585 = vsel %vm3583, %v3568, 0
    %v3588 = vsel %vm3583, %v3569, 0
    %3590 = vmatprep.subr.mxu0 0.0
    %3591 = vmatpush1.msra.mxu0 0.0
    %3592 = vmatprep.subr.mxu0 0.0
    %3593 = vmatpush1.msra.mxu0 0.0
    %3594 = vmatprep.subr.mxu0 0.0
    %3595 = vmatpush1.msra.mxu0 0.0
    %3596 = vmatprep.subr.mxu0 0.0
    %3597 = vmatpush1.msra.mxu0 0.0
    %3598 = vmatprep.subr.mxu0 0.0
    %3599 = vmatpush1.msra.mxu0 0.0
    %3600 = vmatprep.subr.mxu0 0.0
    %3601 = vmatpush1.msra.mxu0 0.0
    %3602 = vmatprep.subr.mxu0 0.0
    %3603 = vmatpush1.msra.mxu0 0.0
    %3604 = vmatprep.subr.mxu0 0.0
    %3605 = vmatpush1.msra.mxu0 0.0
    %3606 = vmatprep.subr.mxu0 0.0
    %3607 = vmatpush1.msra.mxu0 %v3577
    %3608 = vmatprep.subr.mxu0 0.0
    %3609 = vmatpush1.msra.mxu0 %v3576
    %3610 = vmatprep.subr.mxu0 0.0
    %3611 = vmatpush1.msra.mxu0 %v3575
    %3612 = vmatprep.subr.mxu0 0.0
    %3613 = vmatpush1.msra.mxu0 %v3574
    %3614 = vmatprep.subr.mxu0 0.0
    %3615 = vmatpush1.msra.mxu0 %v3573
    %3616 = vmatprep.subr.mxu0 0.0
    %3617 = vmatpush1.msra.mxu0 %v3572
    %3618 = vmatprep.subr.mxu0 0.0
    %3619 = vmatpush1.msra.mxu0 %v3571
    %3620 = vmatprep.subr.mxu0 0.0
    %3621 = vmatpush1.msra.mxu0 %v3570
    %3622 = vmatprep.subr.mxu0 0.0
    %3623 = vmatpush2.msra.mxu0 0.0
    %3624 = vmatprep.subr.mxu0 0.0
    %3625 = vmatpush2.msra.mxu0 0.0
    %3626 = vmatprep.subr.mxu0 0.0
    %3627 = vmatpush2.msra.mxu0 0.0
    %3628 = vmatprep.subr.mxu0 0.0
    %3629 = vmatpush2.msra.mxu0 0.0
    %3630 = vmatprep.subr.mxu0 0.0
    %3631 = vmatpush2.msra.mxu0 0.0
    %3632 = vmatprep.subr.mxu0 0.0
    %3633 = vmatpush2.msra.mxu0 0.0
    %3634 = vmatprep.subr.mxu0 0.0
    %3635 = vmatpush2.msra.mxu0 0.0
    %3636 = vmatprep.subr.mxu0 0.0
    %3637 = vmatpush2.msra.mxu0 0.0
    %3638 = vmatprep.subr.mxu0 0.0
    %3639 = vmatpush2.msra.mxu0 0.0
    %3640 = vmatprep.subr.mxu0 0.0
    %3641 = vmatpush2.msra.mxu0 0.0
    %3642 = vmatprep.subr.mxu0 0.0
    %3643 = vmatpush2.msra.mxu0 0.0
    %3644 = vmatprep.subr.mxu0 0.0
    %3645 = vmatpush2.msra.mxu0 0.0
    %3646 = vmatprep.subr.mxu0 0.0
    %3647 = vmatpush2.msra.mxu0 0.0
    %3648 = vmatprep.subr.mxu0 0.0
    %3649 = vmatpush2.msra.mxu0 0.0
    %3650 = vmatprep.subr.mxu0 0.0
    %3651 = vmatpush2.msra.mxu0 0.0
    %3652 = vmatprep.subr.mxu0 0.0
    %3653 = vmatpush2.msra.mxu0 0.0
    %3654 = vmatprep.mubr.f32.mxu0 0.0
    %3655 = vmatmul.mubr.f32.gmra.mxu0 %v3585
    %v3656 = vpop.f32.mrf.mxu0
    %v3657 = vadd.f32 %v3582, %v3656
    %v3658 = vpop.f32.mrf.mxu0
    %3659 = vmatprep.mubr.f32.mxu0 0.0
    %3660 = vmatmul.mubr.f32.gmra.mxu0 %v3588
    %v3661 = vpop.f32.mrf.mxu0
    %v3662 = vadd.f32 %v3582, %v3661
    %v3663 = vpop.f32.mrf.mxu0
    %3664 = vdwg.mxu0
    %v3665 = vadd.f32 %v3468, %v3657
    %v3666 = vadd.f32 %v3469, %v3662
    %v3667 = vsel %vm38, %v3665, 0.0
    %3668 = vadd.xlane.f32.xlu0 %v3667
    %v3669 = vpop.xlane.xlu0 %3668
    %v3670 = vsel %vm38, %v3666, 0.0
    %3671 = vadd.xlane.f32.xlu0 %v3670
    %v3672 = vpop.xlane.xlu0 %3671
    %v3673 = vmul.f32 %v3669, %v1051
    %v3674 = vmul.f32 %v3672, %v1051
    %v3675 = vsub.f32 %v3665, %v3673
    %v3676 = vsub.f32 %v3666, %v3674
    %v3677 = vmul.f32 %v3675, %v3675
    %v3678 = vmul.f32 %v3676, %v3676
    %v3679 = vsel %vm38, %v3677, 0.0
    %3680 = vadd.xlane.f32.xlu0 %v3679
    %v3681 = vpop.xlane.xlu0 %3680
    %v3682 = vsel %vm38, %v3678, 0.0
    %3683 = vadd.xlane.f32.xlu0 %v3682
    %v3684 = vpop.xlane.xlu0 %3683
    %v3685 = vmul.f32 %v3681, %v1051
    %v3686 = vmul.f32 %v3684, %v1051
    %v3687 = vadd.f32 %v3685, 1e-05
    %v3688 = vadd.f32 %v3686, 1e-05
    %v3689 = vrsqrt.pop %v3687
    %v3690 = vrsqrt.pop %v3688
    %v3691 = vmul.f32 %v3675, %v3689
    %v3692 = vmul.f32 %v3676, %v3690
    %v3693 = vld [vmem:[%s6 + $0x16e] sm:$0x1]
    %v3694 = vlaneseq
    %v3695 = vshrl.u32 %v3694, 7
    %v3696 = vsub.s32 0, %v3695
    %v3697 = vrot.slane %v3693, %v3696
    %v3698 = vmul.f32 %v3691, %v3697
    %v3699 = vmul.f32 %v3692, %v3697
    %v3700 = vld [vmem:[%s6 + $0x16f] sm:$0x1]
    %v3701 = vlaneseq
    %v3702 = vshrl.u32 %v3701, 7
    %v3703 = vsub.s32 0, %v3702
    %v3704 = vrot.slane %v3700, %v3703
    %v3705 = vadd.f32 %v3698, %v3704
    %v3706 = vadd.f32 %v3699, %v3704
    %3707 = vst.msk [vmem:[#allocation2] sm:$0xff] %vm38, %v3705
    %3708 = vst.msk [vmem:[#allocation2 + $0x8] sm:$0xff] %vm38, %v3706
    // Predicated region
    $region30: #{bart_decoder_layer.1} parent=1 // pred_check
      _
    $region31: #{bart_decoder_layer.1} parent=1 // pred_check_branch
      %3710 = sbr.rel (0) target = $region33
    $region32: #{bart_decoder_layer.1} parent=1 // pred_region
      %s3712 = ssub.s32 256, 256
      %3713 = vsyncadd [#allocation3], %s3712
      %s3714 = sshll.u32 [#allocation2], 4
      %s3715 = int_to_ptr.vmem [resolvable:$true] %s3714
      %3720 = dma.vmem_to_hbm [thread:$0]  %s3715, 256, %s7, [#allocation3], 128, 128, 8
    $region33: #{bart_decoder_layer.1} parent=1 // pred_fallthru
      _
    // Predicated region
    $region34: #{bart_decoder_layer.1} parent=1 // pred_check
      _
    $region35: #{bart_decoder_layer.1} parent=1 // pred_check_branch
      %3722 = sbr.rel (0) target = $region37
    $region36: #{bart_decoder_layer.1} parent=1 // pred_region
      %3723 = dma.done [#allocation3], 256
    $region37: #{bart_decoder_layer.1} parent=1 // pred_fallthru
      _
    %3724 = vsyncpa [#allocation3], 1

</llo_original>
